<compile_context>
chip_gen: v6e
topology: v6e:2x2x1
jax: 0.10.0
libtpu: 0.0.40
codegen_flags: <defaults>
</compile_context>

<pallas_src>
import functools
import numpy as np
import jax
import jax.numpy as jnp
from jax import lax
from jax.experimental import pallas as pl
from jax.experimental.pallas import tpu as pltpu


# --------------------------------------------------------------------------
# Host-side parameter setup (glue): StronglyEntanglingLayers unitaries, built
# exactly as PennyLane does, packed into real 2nn x 2nn matrices.
# --------------------------------------------------------------------------
def _rot_matrix_np(phi, theta, omega):
    """qml.Rot(phi, theta, omega) = RZ(omega) RY(theta) RZ(phi)."""
    c, s = np.cos(theta / 2.0), np.sin(theta / 2.0)
    return np.array(
        [[np.exp(-0.5j * (phi + omega)) * c, -np.exp(0.5j * (phi - omega)) * s],
         [np.exp(-0.5j * (phi - omega)) * s,  np.exp(0.5j * (phi + omega)) * c]],
        dtype=np.complex128)


def _sel_unitary_np(weights_r, num_nr):
    """Full NR-register unitary of qml.StronglyEntanglingLayers(weights_r)."""
    nn = 2 ** num_nr
    eye2 = np.eye(2, dtype=np.complex128)
    v = np.eye(nn, dtype=np.complex128)
    num_layers = weights_r.shape[0]
    for l in range(num_layers):
        # Rot on every wire (wire 0 = most significant qubit, PennyLane order)
        for w in range(num_nr):
            g = _rot_matrix_np(weights_r[l, w, 0], weights_r[l, w, 1],
                               weights_r[l, w, 2])
            mats = [eye2] * num_nr
            mats[w] = g
            full = mats[0]
            for mm in mats[1:]:
                full = np.kron(full, mm)
            v = full @ v
        # CNOT ring with default range = l % (n_wires - 1) + 1
        if num_nr > 1:
            rng = l % (num_nr - 1) + 1
            for i in range(num_nr):
                c, t = i, (i + rng) % num_nr
                cn = np.zeros((nn, nn), dtype=np.complex128)
                tbit = 1 << (num_nr - 1 - t)
                for p in range(nn):
                    q = p ^ tbit if (p >> (num_nr - 1 - c)) & 1 else p
                    cn[q, p] = 1.0
                v = cn @ v
    return v


def _build_constant_matrices(weights, num_nr, num_reupload):
    """[A2 (i-multiply), A3_w (partner), A4_w (i*partner), W_r (packed SEL)]."""
    nn = 2 ** num_nr
    nn2 = 2 * nn
    num_mats = 1 + 2 * num_nr + num_reupload
    mats = np.zeros((num_mats, nn2, nn2), np.float32)

    a2 = np.zeros((nn2, nn2), np.float64)       # [sr|si] @ A2 = [-si|sr] = i*s
    a2[:nn, nn:] = np.eye(nn)
    a2[nn:, :nn] = -np.eye(nn)
    mats[0] = a2

    for w in range(num_nr):
        stride = 1 << (num_nr - 1 - w)
        a3 = np.zeros((nn2, nn2), np.float64)   # partner swap: out[q]=s[q^stride]
        for p in range(nn2):
            a3[p, p ^ stride] = 1.0
        mats[1 + w] = a3
        mats[1 + num_nr + w] = a3 @ a2          # i * partner

    w_np = np.asarray(weights, dtype=np.float64)
    for r in range(num_reupload):
        vt = _sel_unitary_np(w_np[r], num_nr).T      # row-vector convention
        a, b = vt.real, vt.imag
        wp = np.zeros((nn2, nn2), np.float64)        # [sr|si]@[[A,B],[-B,A]]
        wp[:nn, :nn] = a
        wp[:nn, nn:] = b
        wp[nn:, :nn] = -b
        wp[nn:, nn:] = a
        mats[1 + 2 * num_nr + r] = wp
    return jnp.asarray(mats)


# --------------------------------------------------------------------------
# Pallas kernel: one batch tile (bt events = bt * 2**num_ir NR branches) per
# grid step.  State is lane-packed [Re | Im] over the NR basis.
# --------------------------------------------------------------------------
def _qcgnn_kernel(feat_ref, mats_ref, out_ref, *, num_ir, num_nr,
                  num_reupload, bt):
    nn = 2 ** num_nr
    nn2 = 2 * nn
    ni = 2 ** num_ir
    m = bt * ni                                   # rows: event-major, particle-minor

    f = feat_ref[...]                             # (m, 4) = [theta, phi, omega, alpha]
    theta, phi, omega, alpha = f[:, 0:1], f[:, 1:2], f[:, 2:3], f[:, 3:4]

    # Per-particle encoding gate  G = Rot(phi, theta, omega) @ H  (complex 2x2)
    ct, st = jnp.cos(theta * 0.5), jnp.sin(theta * 0.5)
    ca, sa = jnp.cos((phi + omega) * 0.5), jnp.sin((phi + omega) * 0.5)
    cb, sb = jnp.cos((phi - omega) * 0.5), jnp.sin((phi - omega) * 0.5)
    r00r, r00i = ca * ct, -sa * ct
    r01r, r01i = -cb * st, -sb * st
    r10r, r10i = cb * st, -sb * st
    r11r, r11i = ca * ct, sa * ct
    isq2 = jnp.float32(1.0 / np.sqrt(2.0))
    g00r, g00i = (r00r + r01r) * isq2, (r00i + r01i) * isq2
    g01r, g01i = (r00r - r01r) * isq2, (r00i - r01i) * isq2
    g10r, g10i = (r10r + r11r) * isq2, (r10i + r11i) * isq2
    g11r, g11i = (r10r - r11r) * isq2, (r10i - r11i) * isq2

    # Hoisted lane constants and per-wire coefficient tensors (traced once,
    # reused across every reupload iteration).
    lane = lax.broadcasted_iota(jnp.int32, (m, nn2), 1)
    col = lane & (nn - 1)                         # NR basis index within each half
    a2 = mats_ref[0]                              # "multiply by i" map
    wire_data = []
    for w in range(num_nr):
        stride = 1 << (num_nr - 1 - w)
        bit0 = (col & stride) == 0
        csr = jnp.where(bit0, g00r, g11r)         # diagonal coefficient (Re)
        csi = jnp.where(bit0, g00i, g11i)         # diagonal coefficient (Im)
        cpr = jnp.where(bit0, g01r, g10r)         # off-diagonal coefficient (Re)
        cpi = jnp.where(bit0, g01i, g10i)         # off-diagonal coefficient (Im)
        wire_data.append((csr, csi, cpr, cpi,
                          mats_ref[1 + w], mats_ref[1 + num_nr + w]))

    # Lane-packed state [Re | Im]; every NR branch starts in |0...0>.
    s = (lane == 0).astype(jnp.float32)           # (m, nn2)

    for r in range(num_reupload):
        # Controlled data (re)upload: same G on every NR wire of each branch.
        for csr, csi, cpr, cpi, a3, a4 in wire_data:
            u2 = jnp.dot(s, a2, preferred_element_type=jnp.float32)  # i * s
            u3 = jnp.dot(s, a3, preferred_element_type=jnp.float32)  # partner
            u4 = jnp.dot(s, a4, preferred_element_type=jnp.float32)  # i * partner
            s = csr * s + csi * u2 + cpr * u3 + cpi * u4
        # StronglyEntanglingLayers(weights[r]): one packed real matmul.
        wr = mats_ref[1 + 2 * num_nr + r]
        s = jnp.dot(s, wr, preferred_element_type=jnp.float32)

    # Per-event reduction  Phi_e = sum_i alpha_{e,i} phi_{e,i}  via one matmul
    # with the block-diagonal segment matrix (rows e*ni .. e*ni+ni-1 -> event e).
    ws = alpha * s                                # (m, nn2)
    ev_id = lax.broadcasted_iota(jnp.int32, (bt, m), 0)
    row_id = lax.broadcasted_iota(jnp.int32, (bt, m), 1)
    d = row_id - ev_id * ni
    seg = ((d >= 0) & (d < ni)).astype(jnp.float32)          # (bt, m)
    phi_p = jnp.dot(seg, ws, preferred_element_type=jnp.float32)   # (bt, nn2)
    out_ref[...] = phi_p * phi_p                  # [Re^2 | Im^2], summed in epilogue


# --------------------------------------------------------------------------
# Wrapper
# --------------------------------------------------------------------------
def qcgnn_forward(x, mask, weights, *, num_ir_qubits, num_nr_qubits,
                  num_reupload, aggregation='add', batch_tile=128):
    x = jnp.asarray(x, jnp.float32)
    mask = jnp.asarray(mask, bool)
    b, n_ptc, _ = x.shape
    ni = 2 ** num_ir_qubits
    assert n_ptc == ni, "number of particles must be 2**num_ir_qubits"
    nn = 2 ** num_nr_qubits
    nn2 = 2 * nn

    # Constant matrices (permutations + packed SEL unitaries), built on host.
    mats = _build_constant_matrices(weights, num_nr_qubits, num_reupload)

    # IR amplitudes: QubitStateVector(non_mask / ||non_mask||).  Masked and
    # all-zero particles are excluded consistently; norm is clamped so fully
    # masked events give 0 instead of NaN.
    nonzero = jnp.any(x != 0.0, axis=-1) & (~mask)            # (b, ni)
    cnt = jnp.sum(nonzero.astype(jnp.float32), axis=-1, keepdims=True)
    alpha = nonzero.astype(jnp.float32) / jnp.maximum(jnp.sqrt(cnt), 1e-12)

    feat = jnp.concatenate([x, alpha[..., None]], axis=-1)    # (b, ni, 4)

    # Batch tiling / padding (bt multiple of 8 for sublane alignment).
    batch_tile = max(8, (batch_tile // 8) * 8)
    bt = min(batch_tile, max(8, -(-b // 8) * 8))
    b_pad = -(-b // bt) * bt
    if b_pad != b:
        feat = jnp.pad(feat, ((0, b_pad - b), (0, 0), (0, 0)))
    feat = feat.reshape(b_pad * ni, 4)

    num_mats = 1 + 2 * num_nr_qubits + num_reupload
    kernel = functools.partial(_qcgnn_kernel, num_ir=num_ir_qubits,
                               num_nr=num_nr_qubits,
                               num_reupload=num_reupload, bt=bt)

    sq = pl.pallas_call(
        kernel,
        out_shape=jax.ShapeDtypeStruct((b_pad, nn2), jnp.float32),
        grid=(b_pad // bt,),
        in_specs=[
            pl.BlockSpec((bt * ni, 4), lambda i: (i, 0)),
            pl.BlockSpec((num_mats, nn2, nn2), lambda i: (0, 0, 0)),
        ],
        out_specs=pl.BlockSpec((bt, nn2), lambda i: (i, 0)),
        compiler_params=pltpu.CompilerParams(
            dimension_semantics=("parallel",),
            vmem_limit_bytes=32 * 1024 * 1024),
    )(feat, mats)

    # XLA epilogue: |Phi|^2, Z-diagonal readout, aggregation scaling.
    sq = sq[:b]
    prob = sq[:, :nn] + sq[:, nn:]                             # (b, nn)
    zmat = np.zeros((nn, num_nr_qubits), np.float32)
    for c in range(nn):
        for w in range(num_nr_qubits):
            zmat[c, w] = 1.0 - 2.0 * ((c >> (num_nr_qubits - 1 - w)) & 1)
    ev = prob @ jnp.asarray(zmat)                              # (b, num_nr)

    num_ptcs = jnp.sum((~mask).astype(jnp.float32), axis=-1, keepdims=True)
    if aggregation == 'add':
        return ev * num_ptcs
    return ev / jnp.maximum(num_ptcs, 1.0)                     # 'mean'


if __name__ == "__main__":
    # QCGNN_IX(num_ir_qubits=2, num_nr_qubits=3, num_layers=2, num_reupload=2)
    num_ir, num_nr, num_layers, num_reupload = 2, 3, 2, 2
    batch = 2
    n_ptc = 2 ** num_ir

    key = jax.random.PRNGKey(0)
    kx, kw = jax.random.split(key)

    x = jax.random.normal(kx, (batch, n_ptc, 3), dtype=jnp.float32)
    # Pad the last particle of the second event (mask=True, features zeroed).
    mask = jnp.zeros((batch, n_ptc), dtype=bool).at[1, n_ptc - 1].set(True)
    x = x * (~mask)[..., None].astype(jnp.float32)

    # weight_shapes = {'weights': (num_reupload, num_layers, num_nr_qubits, 3)}
    # TorchLayer default init for StronglyEntanglingLayers: U(0, 2*pi).
    weights = jax.random.uniform(
        kw, (num_reupload, num_layers, num_nr, 3),
        minval=0.0, maxval=2.0 * np.pi, dtype=jnp.float32)

    out = qcgnn_forward(x, mask, weights,
                        num_ir_qubits=num_ir, num_nr_qubits=num_nr,
                        num_reupload=num_reupload)
    out = jax.block_until_ready(out)
    assert out.shape == (batch, num_nr)
    print("KERNEL_OK")
</pallas_src>

<mosaic_0001>
module attributes {stable_mosaic.version = 11 : i64} {
  func.func @_qcgnn_kernel(%arg0: i32, %arg1: memref<32x4xf32, #tpu.memory_space<vmem>>, %arg2: memref<9x16x16xf32, #tpu.memory_space<vmem>>, %arg3: memref<8x16xf32, #tpu.memory_space<vmem>>) attributes {dimension_semantics = [#tpu.dimension_semantics<parallel>], iteration_bounds = array<i64: 1>, scalar_prefetch = 0 : i64, scratch_operands = 0 : i64, tpu.core_type = #tpu.core_type<tc>, window_params = [{transform_indices = @transform_0, window_bounds = array<i64: 32, 4>}, {pipeline_mode = #tpu.pipeline_mode<synchronous>, transform_indices = @transform_1, window_bounds = array<i64: 9, 16, 16>}, {transform_indices = @transform_2, window_bounds = array<i64: 8, 16>}]} {
    %c0 = arith.constant 0 : index
    %c0_0 = arith.constant 0 : index
    %0 = vector.load %arg1[%c0, %c0_0] : memref<32x4xf32, #tpu.memory_space<vmem>>, vector<32x4xf32>
    %1 = vector.extract_strided_slice %0 {offsets = [0, 0], sizes = [32, 1], strides = [1, 1]} : vector<32x4xf32> to vector<32x1xf32>
    %2 = vector.extract_strided_slice %0 {offsets = [0, 1], sizes = [32, 1], strides = [1, 1]} : vector<32x4xf32> to vector<32x1xf32>
    %3 = vector.extract_strided_slice %0 {offsets = [0, 2], sizes = [32, 1], strides = [1, 1]} : vector<32x4xf32> to vector<32x1xf32>
    %4 = vector.extract_strided_slice %0 {offsets = [0, 3], sizes = [32, 1], strides = [1, 1]} : vector<32x4xf32> to vector<32x1xf32>
    %cst = arith.constant 5.000000e-01 : f32
    %5 = vector.broadcast %cst : f32 to vector<32x1xf32>
    %6 = arith.mulf %1, %5 : vector<32x1xf32>
    %7 = math.cos %6 : vector<32x1xf32>
    %cst_1 = arith.constant 5.000000e-01 : f32
    %8 = vector.broadcast %cst_1 : f32 to vector<32x1xf32>
    %9 = arith.mulf %1, %8 : vector<32x1xf32>
    %10 = math.sin %9 : vector<32x1xf32>
    %11 = arith.addf %2, %3 : vector<32x1xf32>
    %cst_2 = arith.constant 5.000000e-01 : f32
    %12 = vector.broadcast %cst_2 : f32 to vector<32x1xf32>
    %13 = arith.mulf %11, %12 : vector<32x1xf32>
    %14 = math.cos %13 : vector<32x1xf32>
    %15 = arith.addf %2, %3 : vector<32x1xf32>
    %cst_3 = arith.constant 5.000000e-01 : f32
    %16 = vector.broadcast %cst_3 : f32 to vector<32x1xf32>
    %17 = arith.mulf %15, %16 : vector<32x1xf32>
    %18 = math.sin %17 : vector<32x1xf32>
    %19 = arith.subf %2, %3 : vector<32x1xf32>
    %cst_4 = arith.constant 5.000000e-01 : f32
    %20 = vector.broadcast %cst_4 : f32 to vector<32x1xf32>
    %21 = arith.mulf %19, %20 : vector<32x1xf32>
    %22 = math.cos %21 : vector<32x1xf32>
    %23 = arith.subf %2, %3 : vector<32x1xf32>
    %cst_5 = arith.constant 5.000000e-01 : f32
    %24 = vector.broadcast %cst_5 : f32 to vector<32x1xf32>
    %25 = arith.mulf %23, %24 : vector<32x1xf32>
    %26 = math.sin %25 : vector<32x1xf32>
    %27 = arith.mulf %14, %7 : vector<32x1xf32>
    %cst_6 = arith.constant 0.000000e+00 : f32
    %28 = vector.broadcast %cst_6 : f32 to vector<32x1xf32>
    %29 = arith.subf %28, %18 : vector<32x1xf32>
    %30 = arith.mulf %29, %7 : vector<32x1xf32>
    %cst_7 = arith.constant 0.000000e+00 : f32
    %31 = vector.broadcast %cst_7 : f32 to vector<32x1xf32>
    %32 = arith.subf %31, %22 : vector<32x1xf32>
    %33 = arith.mulf %32, %10 : vector<32x1xf32>
    %cst_8 = arith.constant 0.000000e+00 : f32
    %34 = vector.broadcast %cst_8 : f32 to vector<32x1xf32>
    %35 = arith.subf %34, %26 : vector<32x1xf32>
    %36 = arith.mulf %35, %10 : vector<32x1xf32>
    %37 = arith.mulf %22, %10 : vector<32x1xf32>
    %cst_9 = arith.constant 0.000000e+00 : f32
    %38 = vector.broadcast %cst_9 : f32 to vector<32x1xf32>
    %39 = arith.subf %38, %26 : vector<32x1xf32>
    %40 = arith.mulf %39, %10 : vector<32x1xf32>
    %41 = arith.mulf %14, %7 : vector<32x1xf32>
    %42 = arith.mulf %18, %7 : vector<32x1xf32>
    %43 = arith.addf %27, %33 : vector<32x1xf32>
    %cst_10 = arith.constant 0.707106769 : f32
    %44 = vector.broadcast %cst_10 : f32 to vector<32x1xf32>
    %45 = arith.mulf %43, %44 : vector<32x1xf32>
    %46 = arith.addf %30, %36 : vector<32x1xf32>
    %cst_11 = arith.constant 0.707106769 : f32
    %47 = vector.broadcast %cst_11 : f32 to vector<32x1xf32>
    %48 = arith.mulf %46, %47 : vector<32x1xf32>
    %49 = arith.subf %27, %33 : vector<32x1xf32>
    %cst_12 = arith.constant 0.707106769 : f32
    %50 = vector.broadcast %cst_12 : f32 to vector<32x1xf32>
    %51 = arith.mulf %49, %50 : vector<32x1xf32>
    %52 = arith.subf %30, %36 : vector<32x1xf32>
    %cst_13 = arith.constant 0.707106769 : f32
    %53 = vector.broadcast %cst_13 : f32 to vector<32x1xf32>
    %54 = arith.mulf %52, %53 : vector<32x1xf32>
    %55 = arith.addf %37, %41 : vector<32x1xf32>
    %cst_14 = arith.constant 0.707106769 : f32
    %56 = vector.broadcast %cst_14 : f32 to vector<32x1xf32>
    %57 = arith.mulf %55, %56 : vector<32x1xf32>
    %58 = arith.addf %40, %42 : vector<32x1xf32>
    %cst_15 = arith.constant 0.707106769 : f32
    %59 = vector.broadcast %cst_15 : f32 to vector<32x1xf32>
    %60 = arith.mulf %58, %59 : vector<32x1xf32>
    %61 = arith.subf %37, %41 : vector<32x1xf32>
    %cst_16 = arith.constant 0.707106769 : f32
    %62 = vector.broadcast %cst_16 : f32 to vector<32x1xf32>
    %63 = arith.mulf %61, %62 : vector<32x1xf32>
    %64 = arith.subf %40, %42 : vector<32x1xf32>
    %cst_17 = arith.constant 0.707106769 : f32
    %65 = vector.broadcast %cst_17 : f32 to vector<32x1xf32>
    %66 = arith.mulf %64, %65 : vector<32x1xf32>
    %67 = tpu.iota {dimensions = array<i32: 1>} : vector<32x16xi32>
    %c7_i32 = arith.constant 7 : i32
    %68 = vector.broadcast %c7_i32 : i32 to vector<32x16xi32>
    %69 = arith.andi %67, %68 : vector<32x16xi32>
    %c0_18 = arith.constant 0 : index
    %c0_19 = arith.constant 0 : index
    %c0_20 = arith.constant 0 : index
    %70 = vector.load %arg2[%c0_18, %c0_19, %c0_20] : memref<9x16x16xf32, #tpu.memory_space<vmem>>, vector<1x16x16xf32>
    %71 = vector.shape_cast %70 : vector<1x16x16xf32> to vector<16x16xf32>
    %c4_i32 = arith.constant 4 : i32
    %72 = vector.broadcast %c4_i32 : i32 to vector<32x16xi32>
    %73 = arith.andi %69, %72 : vector<32x16xi32>
    %c0_i32 = arith.constant 0 : i32
    %74 = vector.broadcast %c0_i32 : i32 to vector<32x16xi32>
    %75 = arith.cmpi eq, %73, %74 : vector<32x16xi32>
    %76 = vector.shape_cast %45 : vector<32x1xf32> to vector<32x1xf32>
    %77 = vector.broadcast %76 : vector<32x1xf32> to vector<32x16xf32>
    %78 = vector.shape_cast %63 : vector<32x1xf32> to vector<32x1xf32>
    %79 = vector.broadcast %78 : vector<32x1xf32> to vector<32x16xf32>
    %80 = arith.select %75, %77, %79 : vector<32x16xi1>, vector<32x16xf32>
    %81 = vector.shape_cast %48 : vector<32x1xf32> to vector<32x1xf32>
    %82 = vector.broadcast %81 : vector<32x1xf32> to vector<32x16xf32>
    %83 = vector.shape_cast %66 : vector<32x1xf32> to vector<32x1xf32>
    %84 = vector.broadcast %83 : vector<32x1xf32> to vector<32x16xf32>
    %85 = arith.select %75, %82, %84 : vector<32x16xi1>, vector<32x16xf32>
    %86 = vector.shape_cast %51 : vector<32x1xf32> to vector<32x1xf32>
    %87 = vector.broadcast %86 : vector<32x1xf32> to vector<32x16xf32>
    %88 = vector.shape_cast %57 : vector<32x1xf32> to vector<32x1xf32>
    %89 = vector.broadcast %88 : vector<32x1xf32> to vector<32x16xf32>
    %90 = arith.select %75, %87, %89 : vector<32x16xi1>, vector<32x16xf32>
    %91 = vector.shape_cast %54 : vector<32x1xf32> to vector<32x1xf32>
    %92 = vector.broadcast %91 : vector<32x1xf32> to vector<32x16xf32>
    %93 = vector.shape_cast %60 : vector<32x1xf32> to vector<32x1xf32>
    %94 = vector.broadcast %93 : vector<32x1xf32> to vector<32x16xf32>
    %95 = arith.select %75, %92, %94 : vector<32x16xi1>, vector<32x16xf32>
    %c1 = arith.constant 1 : index
    %c0_21 = arith.constant 0 : index
    %c0_22 = arith.constant 0 : index
    %96 = vector.load %arg2[%c1, %c0_21, %c0_22] : memref<9x16x16xf32, #tpu.memory_space<vmem>>, vector<1x16x16xf32>
    %97 = vector.shape_cast %96 : vector<1x16x16xf32> to vector<16x16xf32>
    %c4 = arith.constant 4 : index
    %c0_23 = arith.constant 0 : index
    %c0_24 = arith.constant 0 : index
    %98 = vector.load %arg2[%c4, %c0_23, %c0_24] : memref<9x16x16xf32, #tpu.memory_space<vmem>>, vector<1x16x16xf32>
    %99 = vector.shape_cast %98 : vector<1x16x16xf32> to vector<16x16xf32>
    %c2_i32 = arith.constant 2 : i32
    %100 = vector.broadcast %c2_i32 : i32 to vector<32x16xi32>
    %101 = arith.andi %69, %100 : vector<32x16xi32>
    %c0_i32_25 = arith.constant 0 : i32
    %102 = vector.broadcast %c0_i32_25 : i32 to vector<32x16xi32>
    %103 = arith.cmpi eq, %101, %102 : vector<32x16xi32>
    %104 = vector.shape_cast %45 : vector<32x1xf32> to vector<32x1xf32>
    %105 = vector.broadcast %104 : vector<32x1xf32> to vector<32x16xf32>
    %106 = vector.shape_cast %63 : vector<32x1xf32> to vector<32x1xf32>
    %107 = vector.broadcast %106 : vector<32x1xf32> to vector<32x16xf32>
    %108 = arith.select %103, %105, %107 : vector<32x16xi1>, vector<32x16xf32>
    %109 = vector.shape_cast %48 : vector<32x1xf32> to vector<32x1xf32>
    %110 = vector.broadcast %109 : vector<32x1xf32> to vector<32x16xf32>
    %111 = vector.shape_cast %66 : vector<32x1xf32> to vector<32x1xf32>
    %112 = vector.broadcast %111 : vector<32x1xf32> to vector<32x16xf32>
    %113 = arith.select %103, %110, %112 : vector<32x16xi1>, vector<32x16xf32>
    %114 = vector.shape_cast %51 : vector<32x1xf32> to vector<32x1xf32>
    %115 = vector.broadcast %114 : vector<32x1xf32> to vector<32x16xf32>
    %116 = vector.shape_cast %57 : vector<32x1xf32> to vector<32x1xf32>
    %117 = vector.broadcast %116 : vector<32x1xf32> to vector<32x16xf32>
    %118 = arith.select %103, %115, %117 : vector<32x16xi1>, vector<32x16xf32>
    %119 = vector.shape_cast %54 : vector<32x1xf32> to vector<32x1xf32>
    %120 = vector.broadcast %119 : vector<32x1xf32> to vector<32x16xf32>
    %121 = vector.shape_cast %60 : vector<32x1xf32> to vector<32x1xf32>
    %122 = vector.broadcast %121 : vector<32x1xf32> to vector<32x16xf32>
    %123 = arith.select %103, %120, %122 : vector<32x16xi1>, vector<32x16xf32>
    %c2 = arith.constant 2 : index
    %c0_26 = arith.constant 0 : index
    %c0_27 = arith.constant 0 : index
    %124 = vector.load %arg2[%c2, %c0_26, %c0_27] : memref<9x16x16xf32, #tpu.memory_space<vmem>>, vector<1x16x16xf32>
    %125 = vector.shape_cast %124 : vector<1x16x16xf32> to vector<16x16xf32>
    %c5 = arith.constant 5 : index
    %c0_28 = arith.constant 0 : index
    %c0_29 = arith.constant 0 : index
    %126 = vector.load %arg2[%c5, %c0_28, %c0_29] : memref<9x16x16xf32, #tpu.memory_space<vmem>>, vector<1x16x16xf32>
    %127 = vector.shape_cast %126 : vector<1x16x16xf32> to vector<16x16xf32>
    %c1_i32 = arith.constant 1 : i32
    %128 = vector.broadcast %c1_i32 : i32 to vector<32x16xi32>
    %129 = arith.andi %69, %128 : vector<32x16xi32>
    %c0_i32_30 = arith.constant 0 : i32
    %130 = vector.broadcast %c0_i32_30 : i32 to vector<32x16xi32>
    %131 = arith.cmpi eq, %129, %130 : vector<32x16xi32>
    %132 = vector.shape_cast %45 : vector<32x1xf32> to vector<32x1xf32>
    %133 = vector.broadcast %132 : vector<32x1xf32> to vector<32x16xf32>
    %134 = vector.shape_cast %63 : vector<32x1xf32> to vector<32x1xf32>
    %135 = vector.broadcast %134 : vector<32x1xf32> to vector<32x16xf32>
    %136 = arith.select %131, %133, %135 : vector<32x16xi1>, vector<32x16xf32>
    %137 = vector.shape_cast %48 : vector<32x1xf32> to vector<32x1xf32>
    %138 = vector.broadcast %137 : vector<32x1xf32> to vector<32x16xf32>
    %139 = vector.shape_cast %66 : vector<32x1xf32> to vector<32x1xf32>
    %140 = vector.broadcast %139 : vector<32x1xf32> to vector<32x16xf32>
    %141 = arith.select %131, %138, %140 : vector<32x16xi1>, vector<32x16xf32>
    %142 = vector.shape_cast %51 : vector<32x1xf32> to vector<32x1xf32>
    %143 = vector.broadcast %142 : vector<32x1xf32> to vector<32x16xf32>
    %144 = vector.shape_cast %57 : vector<32x1xf32> to vector<32x1xf32>
    %145 = vector.broadcast %144 : vector<32x1xf32> to vector<32x16xf32>
    %146 = arith.select %131, %143, %145 : vector<32x16xi1>, vector<32x16xf32>
    %147 = vector.shape_cast %54 : vector<32x1xf32> to vector<32x1xf32>
    %148 = vector.broadcast %147 : vector<32x1xf32> to vector<32x16xf32>
    %149 = vector.shape_cast %60 : vector<32x1xf32> to vector<32x1xf32>
    %150 = vector.broadcast %149 : vector<32x1xf32> to vector<32x16xf32>
    %151 = arith.select %131, %148, %150 : vector<32x16xi1>, vector<32x16xf32>
    %c3 = arith.constant 3 : index
    %c0_31 = arith.constant 0 : index
    %c0_32 = arith.constant 0 : index
    %152 = vector.load %arg2[%c3, %c0_31, %c0_32] : memref<9x16x16xf32, #tpu.memory_space<vmem>>, vector<1x16x16xf32>
    %153 = vector.shape_cast %152 : vector<1x16x16xf32> to vector<16x16xf32>
    %c6 = arith.constant 6 : index
    %c0_33 = arith.constant 0 : index
    %c0_34 = arith.constant 0 : index
    %154 = vector.load %arg2[%c6, %c0_33, %c0_34] : memref<9x16x16xf32, #tpu.memory_space<vmem>>, vector<1x16x16xf32>
    %155 = vector.shape_cast %154 : vector<1x16x16xf32> to vector<16x16xf32>
    %c0_i32_35 = arith.constant 0 : i32
    %156 = vector.broadcast %c0_i32_35 : i32 to vector<32x16xi32>
    %157 = arith.cmpi eq, %67, %156 : vector<32x16xi32>
    %158 = arith.extui %157 : vector<32x16xi1> to vector<32x16xi32>
    %159 = arith.sitofp %158 : vector<32x16xi32> to vector<32x16xf32>
    %cst_36 = arith.constant dense<0.000000e+00> : vector<32x16xf32>
    %160 = tpu.matmul %159, %71, %cst_36 {dimension_numbers = #tpu.dot_dimension_numbers<[1], [0], [0], [1], [0, 0, 1, 1], [], []>} : vector<32x16xf32>, vector<16x16xf32>, vector<32x16xf32> -> vector<32x16xf32>
    %cst_37 = arith.constant dense<0.000000e+00> : vector<32x16xf32>
    %161 = tpu.matmul %159, %97, %cst_37 {dimension_numbers = #tpu.dot_dimension_numbers<[1], [0], [0], [1], [0, 0, 1, 1], [], []>} : vector<32x16xf32>, vector<16x16xf32>, vector<32x16xf32> -> vector<32x16xf32>
    %cst_38 = arith.constant dense<0.000000e+00> : vector<32x16xf32>
    %162 = tpu.matmul %159, %99, %cst_38 {dimension_numbers = #tpu.dot_dimension_numbers<[1], [0], [0], [1], [0, 0, 1, 1], [], []>} : vector<32x16xf32>, vector<16x16xf32>, vector<32x16xf32> -> vector<32x16xf32>
    %163 = arith.mulf %80, %159 : vector<32x16xf32>
    %164 = arith.mulf %85, %160 : vector<32x16xf32>
    %165 = arith.addf %163, %164 : vector<32x16xf32>
    %166 = arith.mulf %90, %161 : vector<32x16xf32>
    %167 = arith.addf %165, %166 : vector<32x16xf32>
    %168 = arith.mulf %95, %162 : vector<32x16xf32>
    %169 = arith.addf %167, %168 : vector<32x16xf32>
    %cst_39 = arith.constant dense<0.000000e+00> : vector<32x16xf32>
    %170 = tpu.matmul %169, %71, %cst_39 {dimension_numbers = #tpu.dot_dimension_numbers<[1], [0], [0], [1], [0, 0, 1, 1], [], []>} : vector<32x16xf32>, vector<16x16xf32>, vector<32x16xf32> -> vector<32x16xf32>
    %cst_40 = arith.constant dense<0.000000e+00> : vector<32x16xf32>
    %171 = tpu.matmul %169, %125, %cst_40 {dimension_numbers = #tpu.dot_dimension_numbers<[1], [0], [0], [1], [0, 0, 1, 1], [], []>} : vector<32x16xf32>, vector<16x16xf32>, vector<32x16xf32> -> vector<32x16xf32>
    %cst_41 = arith.constant dense<0.000000e+00> : vector<32x16xf32>
    %172 = tpu.matmul %169, %127, %cst_41 {dimension_numbers = #tpu.dot_dimension_numbers<[1], [0], [0], [1], [0, 0, 1, 1], [], []>} : vector<32x16xf32>, vector<16x16xf32>, vector<32x16xf32> -> vector<32x16xf32>
    %173 = arith.mulf %108, %169 : vector<32x16xf32>
    %174 = arith.mulf %113, %170 : vector<32x16xf32>
    %175 = arith.addf %173, %174 : vector<32x16xf32>
    %176 = arith.mulf %118, %171 : vector<32x16xf32>
    %177 = arith.addf %175, %176 : vector<32x16xf32>
    %178 = arith.mulf %123, %172 : vector<32x16xf32>
    %179 = arith.addf %177, %178 : vector<32x16xf32>
    %cst_42 = arith.constant dense<0.000000e+00> : vector<32x16xf32>
    %180 = tpu.matmul %179, %71, %cst_42 {dimension_numbers = #tpu.dot_dimension_numbers<[1], [0], [0], [1], [0, 0, 1, 1], [], []>} : vector<32x16xf32>, vector<16x16xf32>, vector<32x16xf32> -> vector<32x16xf32>
    %cst_43 = arith.constant dense<0.000000e+00> : vector<32x16xf32>
    %181 = tpu.matmul %179, %153, %cst_43 {dimension_numbers = #tpu.dot_dimension_numbers<[1], [0], [0], [1], [0, 0, 1, 1], [], []>} : vector<32x16xf32>, vector<16x16xf32>, vector<32x16xf32> -> vector<32x16xf32>
    %cst_44 = arith.constant dense<0.000000e+00> : vector<32x16xf32>
    %182 = tpu.matmul %179, %155, %cst_44 {dimension_numbers = #tpu.dot_dimension_numbers<[1], [0], [0], [1], [0, 0, 1, 1], [], []>} : vector<32x16xf32>, vector<16x16xf32>, vector<32x16xf32> -> vector<32x16xf32>
    %183 = arith.mulf %136, %179 : vector<32x16xf32>
    %184 = arith.mulf %141, %180 : vector<32x16xf32>
    %185 = arith.addf %183, %184 : vector<32x16xf32>
    %186 = arith.mulf %146, %181 : vector<32x16xf32>
    %187 = arith.addf %185, %186 : vector<32x16xf32>
    %188 = arith.mulf %151, %182 : vector<32x16xf32>
    %189 = arith.addf %187, %188 : vector<32x16xf32>
    %c7 = arith.constant 7 : index
    %c0_45 = arith.constant 0 : index
    %c0_46 = arith.constant 0 : index
    %190 = vector.load %arg2[%c7, %c0_45, %c0_46] : memref<9x16x16xf32, #tpu.memory_space<vmem>>, vector<1x16x16xf32>
    %191 = vector.shape_cast %190 : vector<1x16x16xf32> to vector<16x16xf32>
    %cst_47 = arith.constant dense<0.000000e+00> : vector<32x16xf32>
    %192 = tpu.matmul %189, %191, %cst_47 {dimension_numbers = #tpu.dot_dimension_numbers<[1], [0], [0], [1], [0, 0, 1, 1], [], []>} : vector<32x16xf32>, vector<16x16xf32>, vector<32x16xf32> -> vector<32x16xf32>
    %cst_48 = arith.constant dense<0.000000e+00> : vector<32x16xf32>
    %193 = tpu.matmul %192, %71, %cst_48 {dimension_numbers = #tpu.dot_dimension_numbers<[1], [0], [0], [1], [0, 0, 1, 1], [], []>} : vector<32x16xf32>, vector<16x16xf32>, vector<32x16xf32> -> vector<32x16xf32>
    %cst_49 = arith.constant dense<0.000000e+00> : vector<32x16xf32>
    %194 = tpu.matmul %192, %97, %cst_49 {dimension_numbers = #tpu.dot_dimension_numbers<[1], [0], [0], [1], [0, 0, 1, 1], [], []>} : vector<32x16xf32>, vector<16x16xf32>, vector<32x16xf32> -> vector<32x16xf32>
    %cst_50 = arith.constant dense<0.000000e+00> : vector<32x16xf32>
    %195 = tpu.matmul %192, %99, %cst_50 {dimension_numbers = #tpu.dot_dimension_numbers<[1], [0], [0], [1], [0, 0, 1, 1], [], []>} : vector<32x16xf32>, vector<16x16xf32>, vector<32x16xf32> -> vector<32x16xf32>
    %196 = arith.mulf %80, %192 : vector<32x16xf32>
    %197 = arith.mulf %85, %193 : vector<32x16xf32>
    %198 = arith.addf %196, %197 : vector<32x16xf32>
    %199 = arith.mulf %90, %194 : vector<32x16xf32>
    %200 = arith.addf %198, %199 : vector<32x16xf32>
    %201 = arith.mulf %95, %195 : vector<32x16xf32>
    %202 = arith.addf %200, %201 : vector<32x16xf32>
    %cst_51 = arith.constant dense<0.000000e+00> : vector<32x16xf32>
    %203 = tpu.matmul %202, %71, %cst_51 {dimension_numbers = #tpu.dot_dimension_numbers<[1], [0], [0], [1], [0, 0, 1, 1], [], []>} : vector<32x16xf32>, vector<16x16xf32>, vector<32x16xf32> -> vector<32x16xf32>
    %cst_52 = arith.constant dense<0.000000e+00> : vector<32x16xf32>
    %204 = tpu.matmul %202, %125, %cst_52 {dimension_numbers = #tpu.dot_dimension_numbers<[1], [0], [0], [1], [0, 0, 1, 1], [], []>} : vector<32x16xf32>, vector<16x16xf32>, vector<32x16xf32> -> vector<32x16xf32>
    %cst_53 = arith.constant dense<0.000000e+00> : vector<32x16xf32>
    %205 = tpu.matmul %202, %127, %cst_53 {dimension_numbers = #tpu.dot_dimension_numbers<[1], [0], [0], [1], [0, 0, 1, 1], [], []>} : vector<32x16xf32>, vector<16x16xf32>, vector<32x16xf32> -> vector<32x16xf32>
    %206 = arith.mulf %108, %202 : vector<32x16xf32>
    %207 = arith.mulf %113, %203 : vector<32x16xf32>
    %208 = arith.addf %206, %207 : vector<32x16xf32>
    %209 = arith.mulf %118, %204 : vector<32x16xf32>
    %210 = arith.addf %208, %209 : vector<32x16xf32>
    %211 = arith.mulf %123, %205 : vector<32x16xf32>
    %212 = arith.addf %210, %211 : vector<32x16xf32>
    %cst_54 = arith.constant dense<0.000000e+00> : vector<32x16xf32>
    %213 = tpu.matmul %212, %71, %cst_54 {dimension_numbers = #tpu.dot_dimension_numbers<[1], [0], [0], [1], [0, 0, 1, 1], [], []>} : vector<32x16xf32>, vector<16x16xf32>, vector<32x16xf32> -> vector<32x16xf32>
    %cst_55 = arith.constant dense<0.000000e+00> : vector<32x16xf32>
    %214 = tpu.matmul %212, %153, %cst_55 {dimension_numbers = #tpu.dot_dimension_numbers<[1], [0], [0], [1], [0, 0, 1, 1], [], []>} : vector<32x16xf32>, vector<16x16xf32>, vector<32x16xf32> -> vector<32x16xf32>
    %cst_56 = arith.constant dense<0.000000e+00> : vector<32x16xf32>
    %215 = tpu.matmul %212, %155, %cst_56 {dimension_numbers = #tpu.dot_dimension_numbers<[1], [0], [0], [1], [0, 0, 1, 1], [], []>} : vector<32x16xf32>, vector<16x16xf32>, vector<32x16xf32> -> vector<32x16xf32>
    %216 = arith.mulf %136, %212 : vector<32x16xf32>
    %217 = arith.mulf %141, %213 : vector<32x16xf32>
    %218 = arith.addf %216, %217 : vector<32x16xf32>
    %219 = arith.mulf %146, %214 : vector<32x16xf32>
    %220 = arith.addf %218, %219 : vector<32x16xf32>
    %221 = arith.mulf %151, %215 : vector<32x16xf32>
    %222 = arith.addf %220, %221 : vector<32x16xf32>
    %c8 = arith.constant 8 : index
    %c0_57 = arith.constant 0 : index
    %c0_58 = arith.constant 0 : index
    %223 = vector.load %arg2[%c8, %c0_57, %c0_58] : memref<9x16x16xf32, #tpu.memory_space<vmem>>, vector<1x16x16xf32>
    %224 = vector.shape_cast %223 : vector<1x16x16xf32> to vector<16x16xf32>
    %cst_59 = arith.constant dense<0.000000e+00> : vector<32x16xf32>
    %225 = tpu.matmul %222, %224, %cst_59 {dimension_numbers = #tpu.dot_dimension_numbers<[1], [0], [0], [1], [0, 0, 1, 1], [], []>} : vector<32x16xf32>, vector<16x16xf32>, vector<32x16xf32> -> vector<32x16xf32>
    %226 = vector.broadcast %4 : vector<32x1xf32> to vector<32x16xf32>
    %227 = arith.mulf %226, %225 : vector<32x16xf32>
    %228 = tpu.iota {dimensions = array<i32: 0>} : vector<8x32xi32>
    %229 = tpu.iota {dimensions = array<i32: 1>} : vector<8x32xi32>
    %c4_i32_60 = arith.constant 4 : i32
    %230 = vector.broadcast %c4_i32_60 : i32 to vector<8x32xi32>
    %231 = arith.muli %228, %230 : vector<8x32xi32>
    %232 = arith.subi %229, %231 : vector<8x32xi32>
    %c0_i32_61 = arith.constant 0 : i32
    %233 = vector.broadcast %c0_i32_61 : i32 to vector<8x32xi32>
    %234 = arith.cmpi sge, %232, %233 : vector<8x32xi32>
    %c4_i32_62 = arith.constant 4 : i32
    %235 = vector.broadcast %c4_i32_62 : i32 to vector<8x32xi32>
    %236 = arith.cmpi slt, %232, %235 : vector<8x32xi32>
    %237 = arith.andi %234, %236 : vector<8x32xi1>
    %238 = arith.extui %237 : vector<8x32xi1> to vector<8x32xi32>
    %239 = arith.sitofp %238 : vector<8x32xi32> to vector<8x32xf32>
    %cst_63 = arith.constant dense<0.000000e+00> : vector<8x16xf32>
    %240 = tpu.matmul %239, %227, %cst_63 {dimension_numbers = #tpu.dot_dimension_numbers<[1], [0], [0], [1], [0, 0, 1, 1], [], []>} : vector<8x32xf32>, vector<32x16xf32>, vector<8x16xf32> -> vector<8x16xf32>
    %241 = arith.mulf %240, %240 : vector<8x16xf32>
    %c0_64 = arith.constant 0 : index
    %c0_65 = arith.constant 0 : index
    %242 = vector.load %arg3[%c0_64, %c0_65] : memref<8x16xf32, #tpu.memory_space<vmem>>, vector<8x16xf32>
    tpu.vector_store %arg3[%c0_64, %c0_65], %241 {strides = array<i32>} : memref<8x16xf32, #tpu.memory_space<vmem>>, vector<8x16xf32>,
    return
  }
  func.func @transform_0(%arg0: i32) -> (i32, i32) {
    %c0_i32 = arith.constant 0 : i32
    %c0_i32_0 = arith.constant 0 : i32
    return %arg0, %c0_i32 : i32, i32
  }
  func.func @transform_1(%arg0: i32) -> (i32, i32, i32) {
    %c0_i32 = arith.constant 0 : i32
    %c0_i32_0 = arith.constant 0 : i32
    %c0_i32_1 = arith.constant 0 : i32
    %c0_i32_2 = arith.constant 0 : i32
    return %c0_i32, %c0_i32_0, %c0_i32_1 : i32, i32, i32
  }
  func.func @transform_2(%arg0: i32) -> (i32, i32) {
    %c0_i32 = arith.constant 0 : i32
    %c0_i32_0 = arith.constant 0 : i32
    return %arg0, %c0_i32 : i32, i32
  }
}

</mosaic_0001>

<llo_original>
// kernel: tpu_custom_call.1
$region0: #{tpu_custom_call.1}
  #allocation0 [shape = 'u32[]', space=smem, size = 0x4, offset = 0x4, fixed_abs, tag = 'smem constant byte address 0x4 - core index']
  #allocation1 [shape = 'u32[144,128]{1,0:T(1,128)}', space=vmem, size = 0x12000, scoped, tag = 'internal scratch']
  %s0 = inlined_call_operand.vmem [shape: f32[32,4], index: 0, kind: input, shape index: {}]
  %s1 = inlined_call_operand.hbm [shape: f32[9,16,16], index: 1, kind: input, shape index: {}]
  %s2 = inlined_call_operand.hbm [shape: f32[8,16], index: 2, kind: output, shape index: {}]
  %s3 = sld [smem:[#allocation0]]
  $region22: #{tpu_custom_call.1} parent=0
    _
  %s5 = ssub.s32 1, %s3
  %s6 = scalar_select 0, %s5, %s3
  $region1: #{tpu_custom_call.1} parent=0
    #allocation2 [shape = 'u8[73728]{0}', space=vmem, size = 0x12000, scoped, tag = 'input window, operand 1, single buffered']
    #allocation3 [shape = 's32[1]{0}', space=sflag, size = 0x4, scoped, tag = 'scoped memory for tpu_custom_call.1']
    #allocation4 [shape = 's32[1]{0}', space=sflag, size = 0x4, scoped, tag = 'scoped memory for tpu_custom_call.1']
    #allocation5 [shape = 'u8[4096]{0}', space=vmem, size = 0x1000, scoped, tag = 'output window, operand 0, single buffered']
    %7 = vsyncpa [#allocation3], 0
    %8 = vsyncpa [#allocation4], 0
    // Predicated region
    $region2: #{tpu_custom_call.1} parent=1 // pred_check
      _
    $region3: #{tpu_custom_call.1} parent=1 // pred_check_branch
      %10 = sbr.rel (0) target = $region5
    $region4: #{tpu_custom_call.1} parent=1 // pred_region
      _
    $region5: #{tpu_custom_call.1} parent=1 // pred_fallthru
      _
    // Predicated region
    $region6: #{tpu_custom_call.1} parent=1 // pred_check
      _
    $region7: #{tpu_custom_call.1} parent=1 // pred_check_branch
      %12 = sbr.rel (0) target = $region9
    $region8: #{tpu_custom_call.1} parent=1 // pred_region
      %s14 = ssub.s32 2304, 2304
      %15 = vsyncadd [#allocation3], %s14
      %s16 = sshll.u32 [#allocation2], 4
      %s17 = int_to_ptr.vmem [resolvable:$true] %s16
      %22 = dma.hbm_to_vmem [thread:$0]  %s1, 2304, %s17, [#allocation3], 128, 128, 8
    $region9: #{tpu_custom_call.1} parent=1 // pred_fallthru
      _
    // Predicated region
    $region10: #{tpu_custom_call.1} parent=1 // pred_check
      _
    $region11: #{tpu_custom_call.1} parent=1 // pred_check_branch
      %24 = sbr.rel (0) target = $region13
    $region12: #{tpu_custom_call.1} parent=1 // pred_region
      %25 = dma.done [#allocation3], 2304
    $region13: #{tpu_custom_call.1} parent=1 // pred_fallthru
      _
    %v26 = vld [vmem:[%s0] sm:$0xff]
    %v27 = vld [vmem:[%s0 + $0x8] sm:$0xff]
    %v28 = vld [vmem:[%s0 + $0x10] sm:$0xff]
    %v29 = vld [vmem:[%s0 + $0x18] sm:$0xff]
    %v30 = vmul.f32 %v26, 0.5
    %v31 = vmul.f32 %v27, 0.5
    %v32 = vmul.f32 %v28, 0.5
    %v33 = vmul.f32 %v29, 0.5
    %v34 = vand.u32 2147483647, %v30
    %vm35 = vcmp.le.f32.partialorder %v34, 0.7853982
    %vm36 = vcmp.lt.s32.totalorder %v30, 0
    %v37 = vand.u32 %v30, 2139095040
    %v38 = vshrl.u32 %v37, 23
    %v39 = vsub.s32 %v38, 127
    %v40 = vand.u32 2147483647, %v30
    %v41 = vand.u32 %v40, 8388607
    %v42 = vor.u32 %v41, 8388608
    %v43 = vsub.s32 0, %v42
    %v44 = vadd.s32 %v39, 1
    %vm45 = vcmp.gt.s32.totalorder %v44, 0
    %v46 = vsel %vm45, %v44, 0
    %v47 = vshrl.u32 %v46, 5
    %v48 = vand.u32 %v46, 31
    %v49 = vsub.s32 32, %v48
    %v50 = vshrl.u32 683565275, %v49
    %v51 = vshll.u32 683565275, %v48
    %v52 = vshrl.u32 2475754826, %v49
    %v53 = vor.u32 %v51, %v52
    %v54 = vshll.u32 2475754826, %v48
    %v55 = vshrl.u32 2131351028, %v49
    %v56 = vor.u32 %v54, %v55
    %v57 = vshll.u32 2131351028, %v48
    %v58 = vshrl.u32 2102212464, %v49
    %v59 = vor.u32 %v57, %v58
    %v60 = vshll.u32 2102212464, %v48
    %v61 = vshrl.u32 920167782, %v49
    %v62 = vor.u32 %v60, %v61
    %v63 = vshll.u32 920167782, %v48
    %v64 = vshrl.u32 1326507024, %v49
    %v65 = vor.u32 %v63, %v64
    %vm66 = vcmp.lt.s32.totalorder %v47, 1
    %vm67 = vcmp.lt.s32.totalorder %v47, 2
    %vm68 = vcmp.lt.s32.totalorder %v47, 3
    %vm69 = vcmp.lt.s32.totalorder %v47, 4
    %v70 = vsel %vm66, %v50, %v53
    %v71 = vsel %vm69, %v59, 2102212464
    %v72 = vsel %vm68, %v56, %v71
    %v73 = vsel %vm67, %v70, %v72
    %v74 = vsel %vm66, %v53, %v56
    %v75 = vsel %vm69, %v62, 920167782
    %v76 = vsel %vm68, %v59, %v75
    %v77 = vsel %vm67, %v74, %v76
    %v78 = vsel %vm66, %v56, %v59
    %v79 = vsel %vm69, %v65, 1326507024
    %v80 = vsel %vm68, %v62, %v79
    %v81 = vsel %vm67, %v78, %v80
    %v82 = vshll.u32 %v42, 8
    %v83 = vmul.u32.u64.compose %v82, %v81
    %v84 = vextract.low.u32 %v83
    %v85 = vextract.high.u32 %v83
    %v86 = vmul.u32.u64.compose %v82, %v77
    %v87 = vextract.low.u32 %v86
    %v88 = vextract.high.u32 %v86
    %v89 = vmul.u32 %v82, %v73
    %v90 = vadd.s32 %v85, %v87
    %vm91 = vc.u32 %v85, %v87
    %v92 = vadd.s32 %v88, 1
    %v93 = vsel %vm91, %v92, %v88
    %v94 = vadd.s32 %v89, %v93
    %v95 = vadd.s32 %v94, 536870912
    %v96 = vshrl.u32 %v95, 30
    %v97 = vshll.u32 %v96, 30
    %v98 = vsub.s32 %v94, %v97
    %vm99 = vcmp.lt.s32.totalorder %v98, 0
    %v100 = vsub.s32 0, %v98
    %v101 = vsel %vm99, %v100, %v98
    %v102 = vclz %v101
    %v103 = vsub.s32 %v102, 2
    %vm104 = vcmp.gt.s32.totalorder 0, %v103
    %v105 = vsel %vm104, 0, %v103
    %v106 = vsub.s32 32, %v105
    %v107 = vshll.u32 %v98, %v105
    %v108 = vshrl.u32 %v90, %v106
    %v109 = vor.u32 %v107, %v108
    %v110 = vsub.s32 4294967266, %v105
    %v111 = vadd.s32 %v110, 127
    %v112 = vshll.u32 %v111, 23
    %v113 = vor.u32 4788187, %v112
    %v114 = vand.u32 2147483647, %v113
    %v116 = vcvt.s32.f32 %v109
    %v117 = vmul.f32 %v116, %v114
    %v118 = vxor.u32 %v117, 2147483648
    %v119 = vsel %vm36, %v118, %v117
    %v120 = vsub.s32 4, %v96
    %v121 = vsel %vm36, %v120, %v96
    %v122 = vsel %vm35, %v30, %v119
    %v123 = vsel %vm35, 0, %v121
    %v124 = vcosq.f32.pop %v122
    %v125 = vsinq.f32.pop %v122
    %vm126 = vweird.f32 %v30
    %v127 = vand.u32 %v123, 3
    %vm128 = vcmp.lt.s32.totalorder %v127, 2
    %vm129 = vcmp.eq.s32.totalorder %v127, 0
    %v130 = vxor.u32 %v125, 2147483648
    %v131 = vsel %vm129, %v124, %v130
    %vm132 = vcmp.eq.s32.totalorder %v127, 2
    %v133 = vxor.u32 %v124, 2147483648
    %v134 = vsel %vm132, %v133, %v125
    %v135 = vsel %vm128, %v131, %v134
    %v136 = vsel %vm126, nan, %v135
    %v137 = vand.u32 2147483647, %v31
    %vm138 = vcmp.le.f32.partialorder %v137, 0.7853982
    %vm139 = vcmp.lt.s32.totalorder %v31, 0
    %v140 = vand.u32 %v31, 2139095040
    %v141 = vshrl.u32 %v140, 23
    %v142 = vsub.s32 %v141, 127
    %v143 = vand.u32 2147483647, %v31
    %v144 = vand.u32 %v143, 8388607
    %v145 = vor.u32 %v144, 8388608
    %v146 = vsub.s32 0, %v145
    %v147 = vadd.s32 %v142, 1
    %vm148 = vcmp.gt.s32.totalorder %v147, 0
    %v149 = vsel %vm148, %v147, 0
    %v150 = vshrl.u32 %v149, 5
    %v151 = vand.u32 %v149, 31
    %v152 = vsub.s32 32, %v151
    %v153 = vshrl.u32 683565275, %v152
    %v154 = vshll.u32 683565275, %v151
    %v155 = vshrl.u32 2475754826, %v152
    %v156 = vor.u32 %v154, %v155
    %v157 = vshll.u32 2475754826, %v151
    %v158 = vshrl.u32 2131351028, %v152
    %v159 = vor.u32 %v157, %v158
    %v160 = vshll.u32 2131351028, %v151
    %v161 = vshrl.u32 2102212464, %v152
    %v162 = vor.u32 %v160, %v161
    %v163 = vshll.u32 2102212464, %v151
    %v164 = vshrl.u32 920167782, %v152
    %v165 = vor.u32 %v163, %v164
    %v166 = vshll.u32 920167782, %v151
    %v167 = vshrl.u32 1326507024, %v152
    %v168 = vor.u32 %v166, %v167
    %vm169 = vcmp.lt.s32.totalorder %v150, 1
    %vm170 = vcmp.lt.s32.totalorder %v150, 2
    %vm171 = vcmp.lt.s32.totalorder %v150, 3
    %vm172 = vcmp.lt.s32.totalorder %v150, 4
    %v173 = vsel %vm169, %v153, %v156
    %v174 = vsel %vm172, %v162, 2102212464
    %v175 = vsel %vm171, %v159, %v174
    %v176 = vsel %vm170, %v173, %v175
    %v177 = vsel %vm169, %v156, %v159
    %v178 = vsel %vm172, %v165, 920167782
    %v179 = vsel %vm171, %v162, %v178
    %v180 = vsel %vm170, %v177, %v179
    %v181 = vsel %vm169, %v159, %v162
    %v182 = vsel %vm172, %v168, 1326507024
    %v183 = vsel %vm171, %v165, %v182
    %v184 = vsel %vm170, %v181, %v183
    %v185 = vshll.u32 %v145, 8
    %v186 = vmul.u32.u64.compose %v185, %v184
    %v187 = vextract.low.u32 %v186
    %v188 = vextract.high.u32 %v186
    %v189 = vmul.u32.u64.compose %v185, %v180
    %v190 = vextract.low.u32 %v189
    %v191 = vextract.high.u32 %v189
    %v192 = vmul.u32 %v185, %v176
    %v193 = vadd.s32 %v188, %v190
    %vm194 = vc.u32 %v188, %v190
    %v195 = vadd.s32 %v191, 1
    %v196 = vsel %vm194, %v195, %v191
    %v197 = vadd.s32 %v192, %v196
    %v198 = vadd.s32 %v197, 536870912
    %v199 = vshrl.u32 %v198, 30
    %v200 = vshll.u32 %v199, 30
    %v201 = vsub.s32 %v197, %v200
    %vm202 = vcmp.lt.s32.totalorder %v201, 0
    %v203 = vsub.s32 0, %v201
    %v204 = vsel %vm202, %v203, %v201
    %v205 = vclz %v204
    %v206 = vsub.s32 %v205, 2
    %vm207 = vcmp.gt.s32.totalorder 0, %v206
    %v208 = vsel %vm207, 0, %v206
    %v209 = vsub.s32 32, %v208
    %v210 = vshll.u32 %v201, %v208
    %v211 = vshrl.u32 %v193, %v209
    %v212 = vor.u32 %v210, %v211
    %v213 = vsub.s32 4294967266, %v208
    %v214 = vadd.s32 %v213, 127
    %v215 = vshll.u32 %v214, 23
    %v216 = vor.u32 4788187, %v215
    %v217 = vand.u32 2147483647, %v216
    %v219 = vcvt.s32.f32 %v212
    %v220 = vmul.f32 %v219, %v217
    %v221 = vxor.u32 %v220, 2147483648
    %v222 = vsel %vm139, %v221, %v220
    %v223 = vsub.s32 4, %v199
    %v224 = vsel %vm139, %v223, %v199
    %v225 = vsel %vm138, %v31, %v222
    %v226 = vsel %vm138, 0, %v224
    %v227 = vcosq.f32.pop %v225
    %v228 = vsinq.f32.pop %v225
    %vm229 = vweird.f32 %v31
    %v230 = vand.u32 %v226, 3
    %vm231 = vcmp.lt.s32.totalorder %v230, 2
    %vm232 = vcmp.eq.s32.totalorder %v230, 0
    %v233 = vxor.u32 %v228, 2147483648
    %v234 = vsel %vm232, %v227, %v233
    %vm235 = vcmp.eq.s32.totalorder %v230, 2
    %v236 = vxor.u32 %v227, 2147483648
    %v237 = vsel %vm235, %v236, %v228
    %v238 = vsel %vm231, %v234, %v237
    %v239 = vsel %vm229, nan, %v238
    %v240 = vand.u32 2147483647, %v32
    %vm241 = vcmp.le.f32.partialorder %v240, 0.7853982
    %vm242 = vcmp.lt.s32.totalorder %v32, 0
    %v243 = vand.u32 %v32, 2139095040
    %v244 = vshrl.u32 %v243, 23
    %v245 = vsub.s32 %v244, 127
    %v246 = vand.u32 2147483647, %v32
    %v247 = vand.u32 %v246, 8388607
    %v248 = vor.u32 %v247, 8388608
    %v249 = vsub.s32 0, %v248
    %v250 = vadd.s32 %v245, 1
    %vm251 = vcmp.gt.s32.totalorder %v250, 0
    %v252 = vsel %vm251, %v250, 0
    %v253 = vshrl.u32 %v252, 5
    %v254 = vand.u32 %v252, 31
    %v255 = vsub.s32 32, %v254
    %v256 = vshrl.u32 683565275, %v255
    %v257 = vshll.u32 683565275, %v254
    %v258 = vshrl.u32 2475754826, %v255
    %v259 = vor.u32 %v257, %v258
    %v260 = vshll.u32 2475754826, %v254
    %v261 = vshrl.u32 2131351028, %v255
    %v262 = vor.u32 %v260, %v261
    %v263 = vshll.u32 2131351028, %v254
    %v264 = vshrl.u32 2102212464, %v255
    %v265 = vor.u32 %v263, %v264
    %v266 = vshll.u32 2102212464, %v254
    %v267 = vshrl.u32 920167782, %v255
    %v268 = vor.u32 %v266, %v267
    %v269 = vshll.u32 920167782, %v254
    %v270 = vshrl.u32 1326507024, %v255
    %v271 = vor.u32 %v269, %v270
    %vm272 = vcmp.lt.s32.totalorder %v253, 1
    %vm273 = vcmp.lt.s32.totalorder %v253, 2
    %vm274 = vcmp.lt.s32.totalorder %v253, 3
    %vm275 = vcmp.lt.s32.totalorder %v253, 4
    %v276 = vsel %vm272, %v256, %v259
    %v277 = vsel %vm275, %v265, 2102212464
    %v278 = vsel %vm274, %v262, %v277
    %v279 = vsel %vm273, %v276, %v278
    %v280 = vsel %vm272, %v259, %v262
    %v281 = vsel %vm275, %v268, 920167782
    %v282 = vsel %vm274, %v265, %v281
    %v283 = vsel %vm273, %v280, %v282
    %v284 = vsel %vm272, %v262, %v265
    %v285 = vsel %vm275, %v271, 1326507024
    %v286 = vsel %vm274, %v268, %v285
    %v287 = vsel %vm273, %v284, %v286
    %v288 = vshll.u32 %v248, 8
    %v289 = vmul.u32.u64.compose %v288, %v287
    %v290 = vextract.low.u32 %v289
    %v291 = vextract.high.u32 %v289
    %v292 = vmul.u32.u64.compose %v288, %v283
    %v293 = vextract.low.u32 %v292
    %v294 = vextract.high.u32 %v292
    %v295 = vmul.u32 %v288, %v279
    %v296 = vadd.s32 %v291, %v293
    %vm297 = vc.u32 %v291, %v293
    %v298 = vadd.s32 %v294, 1
    %v299 = vsel %vm297, %v298, %v294
    %v300 = vadd.s32 %v295, %v299
    %v301 = vadd.s32 %v300, 536870912
    %v302 = vshrl.u32 %v301, 30
    %v303 = vshll.u32 %v302, 30
    %v304 = vsub.s32 %v300, %v303
    %vm305 = vcmp.lt.s32.totalorder %v304, 0
    %v306 = vsub.s32 0, %v304
    %v307 = vsel %vm305, %v306, %v304
    %v308 = vclz %v307
    %v309 = vsub.s32 %v308, 2
    %vm310 = vcmp.gt.s32.totalorder 0, %v309
    %v311 = vsel %vm310, 0, %v309
    %v312 = vsub.s32 32, %v311
    %v313 = vshll.u32 %v304, %v311
    %v314 = vshrl.u32 %v296, %v312
    %v315 = vor.u32 %v313, %v314
    %v316 = vsub.s32 4294967266, %v311
    %v317 = vadd.s32 %v316, 127
    %v318 = vshll.u32 %v317, 23
    %v319 = vor.u32 4788187, %v318
    %v320 = vand.u32 2147483647, %v319
    %v322 = vcvt.s32.f32 %v315
    %v323 = vmul.f32 %v322, %v320
    %v324 = vxor.u32 %v323, 2147483648
    %v325 = vsel %vm242, %v324, %v323
    %v326 = vsub.s32 4, %v302
    %v327 = vsel %vm242, %v326, %v302
    %v328 = vsel %vm241, %v32, %v325
    %v329 = vsel %vm241, 0, %v327
    %v330 = vcosq.f32.pop %v328
    %v331 = vsinq.f32.pop %v328
    %vm332 = vweird.f32 %v32
    %v333 = vand.u32 %v329, 3
    %vm334 = vcmp.lt.s32.totalorder %v333, 2
    %vm335 = vcmp.eq.s32.totalorder %v333, 0
    %v336 = vxor.u32 %v331, 2147483648
    %v337 = vsel %vm335, %v330, %v336
    %vm338 = vcmp.eq.s32.totalorder %v333, 2
    %v339 = vxor.u32 %v330, 2147483648
    %v340 = vsel %vm338, %v339, %v331
    %v341 = vsel %vm334, %v337, %v340
    %v342 = vsel %vm332, nan, %v341
    %v343 = vand.u32 2147483647, %v33
    %vm344 = vcmp.le.f32.partialorder %v343, 0.7853982
    %vm345 = vcmp.lt.s32.totalorder %v33, 0
    %v346 = vand.u32 %v33, 2139095040
    %v347 = vshrl.u32 %v346, 23
    %v348 = vsub.s32 %v347, 127
    %v349 = vand.u32 2147483647, %v33
    %v350 = vand.u32 %v349, 8388607
    %v351 = vor.u32 %v350, 8388608
    %v352 = vsub.s32 0, %v351
    %v353 = vadd.s32 %v348, 1
    %vm354 = vcmp.gt.s32.totalorder %v353, 0
    %v355 = vsel %vm354, %v353, 0
    %v356 = vshrl.u32 %v355, 5
    %v357 = vand.u32 %v355, 31
    %v358 = vsub.s32 32, %v357
    %v359 = vshrl.u32 683565275, %v358
    %v360 = vshll.u32 683565275, %v357
    %v361 = vshrl.u32 2475754826, %v358
    %v362 = vor.u32 %v360, %v361
    %v363 = vshll.u32 2475754826, %v357
    %v364 = vshrl.u32 2131351028, %v358
    %v365 = vor.u32 %v363, %v364
    %v366 = vshll.u32 2131351028, %v357
    %v367 = vshrl.u32 2102212464, %v358
    %v368 = vor.u32 %v366, %v367
    %v369 = vshll.u32 2102212464, %v357
    %v370 = vshrl.u32 920167782, %v358
    %v371 = vor.u32 %v369, %v370
    %v372 = vshll.u32 920167782, %v357
    %v373 = vshrl.u32 1326507024, %v358
    %v374 = vor.u32 %v372, %v373
    %vm375 = vcmp.lt.s32.totalorder %v356, 1
    %vm376 = vcmp.lt.s32.totalorder %v356, 2
    %vm377 = vcmp.lt.s32.totalorder %v356, 3
    %vm378 = vcmp.lt.s32.totalorder %v356, 4
    %v379 = vsel %vm375, %v359, %v362
    %v380 = vsel %vm378, %v368, 2102212464
    %v381 = vsel %vm377, %v365, %v380
    %v382 = vsel %vm376, %v379, %v381
    %v383 = vsel %vm375, %v362, %v365
    %v384 = vsel %vm378, %v371, 920167782
    %v385 = vsel %vm377, %v368, %v384
    %v386 = vsel %vm376, %v383, %v385
    %v387 = vsel %vm375, %v365, %v368
    %v388 = vsel %vm378, %v374, 1326507024
    %v389 = vsel %vm377, %v371, %v388
    %v390 = vsel %vm376, %v387, %v389
    %v391 = vshll.u32 %v351, 8
    %v392 = vmul.u32.u64.compose %v391, %v390
    %v393 = vextract.low.u32 %v392
    %v394 = vextract.high.u32 %v392
    %v395 = vmul.u32.u64.compose %v391, %v386
    %v396 = vextract.low.u32 %v395
    %v397 = vextract.high.u32 %v395
    %v398 = vmul.u32 %v391, %v382
    %v399 = vadd.s32 %v394, %v396
    %vm400 = vc.u32 %v394, %v396
    %v401 = vadd.s32 %v397, 1
    %v402 = vsel %vm400, %v401, %v397
    %v403 = vadd.s32 %v398, %v402
    %v404 = vadd.s32 %v403, 536870912
    %v405 = vshrl.u32 %v404, 30
    %v406 = vshll.u32 %v405, 30
    %v407 = vsub.s32 %v403, %v406
    %vm408 = vcmp.lt.s32.totalorder %v407, 0
    %v409 = vsub.s32 0, %v407
    %v410 = vsel %vm408, %v409, %v407
    %v411 = vclz %v410
    %v412 = vsub.s32 %v411, 2
    %vm413 = vcmp.gt.s32.totalorder 0, %v412
    %v414 = vsel %vm413, 0, %v412
    %v415 = vsub.s32 32, %v414
    %v416 = vshll.u32 %v407, %v414
    %v417 = vshrl.u32 %v399, %v415
    %v418 = vor.u32 %v416, %v417
    %v419 = vsub.s32 4294967266, %v414
    %v420 = vadd.s32 %v419, 127
    %v421 = vshll.u32 %v420, 23
    %v422 = vor.u32 4788187, %v421
    %v423 = vand.u32 2147483647, %v422
    %v425 = vcvt.s32.f32 %v418
    %v426 = vmul.f32 %v425, %v423
    %v427 = vxor.u32 %v426, 2147483648
    %v428 = vsel %vm345, %v427, %v426
    %v429 = vsub.s32 4, %v405
    %v430 = vsel %vm345, %v429, %v405
    %v431 = vsel %vm344, %v33, %v428
    %v432 = vsel %vm344, 0, %v430
    %v433 = vcosq.f32.pop %v431
    %v434 = vsinq.f32.pop %v431
    %vm435 = vweird.f32 %v33
    %v436 = vand.u32 %v432, 3
    %vm437 = vcmp.lt.s32.totalorder %v436, 2
    %vm438 = vcmp.eq.s32.totalorder %v436, 0
    %v439 = vxor.u32 %v434, 2147483648
    %v440 = vsel %vm438, %v433, %v439
    %vm441 = vcmp.eq.s32.totalorder %v436, 2
    %v442 = vxor.u32 %v433, 2147483648
    %v443 = vsel %vm441, %v442, %v434
    %v444 = vsel %vm437, %v440, %v443
    %v445 = vsel %vm435, nan, %v444
    %v446 = vand.u32 2147483647, %v30
    %vm447 = vcmp.le.f32.partialorder %v446, 0.7853982
    %vm448 = vcmp.lt.s32.totalorder %v30, 0
    %v449 = vand.u32 %v30, 2139095040
    %v450 = vshrl.u32 %v449, 23
    %v451 = vsub.s32 %v450, 127
    %v452 = vand.u32 2147483647, %v30
    %v453 = vand.u32 %v452, 8388607
    %v454 = vor.u32 %v453, 8388608
    %v455 = vsub.s32 0, %v454
    %v456 = vadd.s32 %v451, 1
    %vm457 = vcmp.gt.s32.totalorder %v456, 0
    %v458 = vsel %vm457, %v456, 0
    %v459 = vshrl.u32 %v458, 5
    %v460 = vand.u32 %v458, 31
    %v461 = vsub.s32 32, %v460
    %v462 = vshrl.u32 683565275, %v461
    %v463 = vshll.u32 683565275, %v460
    %v464 = vshrl.u32 2475754826, %v461
    %v465 = vor.u32 %v463, %v464
    %v466 = vshll.u32 2475754826, %v460
    %v467 = vshrl.u32 2131351028, %v461
    %v468 = vor.u32 %v466, %v467
    %v469 = vshll.u32 2131351028, %v460
    %v470 = vshrl.u32 2102212464, %v461
    %v471 = vor.u32 %v469, %v470
    %v472 = vshll.u32 2102212464, %v460
    %v473 = vshrl.u32 920167782, %v461
    %v474 = vor.u32 %v472, %v473
    %v475 = vshll.u32 920167782, %v460
    %v476 = vshrl.u32 1326507024, %v461
    %v477 = vor.u32 %v475, %v476
    %vm478 = vcmp.lt.s32.totalorder %v459, 1
    %vm479 = vcmp.lt.s32.totalorder %v459, 2
    %vm480 = vcmp.lt.s32.totalorder %v459, 3
    %vm481 = vcmp.lt.s32.totalorder %v459, 4
    %v482 = vsel %vm478, %v462, %v465
    %v483 = vsel %vm481, %v471, 2102212464
    %v484 = vsel %vm480, %v468, %v483
    %v485 = vsel %vm479, %v482, %v484
    %v486 = vsel %vm478, %v465, %v468
    %v487 = vsel %vm481, %v474, 920167782
    %v488 = vsel %vm480, %v471, %v487
    %v489 = vsel %vm479, %v486, %v488
    %v490 = vsel %vm478, %v468, %v471
    %v491 = vsel %vm481, %v477, 1326507024
    %v492 = vsel %vm480, %v474, %v491
    %v493 = vsel %vm479, %v490, %v492
    %v494 = vshll.u32 %v454, 8
    %v495 = vmul.u32.u64.compose %v494, %v493
    %v496 = vextract.low.u32 %v495
    %v497 = vextract.high.u32 %v495
    %v498 = vmul.u32.u64.compose %v494, %v489
    %v499 = vextract.low.u32 %v498
    %v500 = vextract.high.u32 %v498
    %v501 = vmul.u32 %v494, %v485
    %v502 = vadd.s32 %v497, %v499
    %vm503 = vc.u32 %v497, %v499
    %v504 = vadd.s32 %v500, 1
    %v505 = vsel %vm503, %v504, %v500
    %v506 = vadd.s32 %v501, %v505
    %v507 = vadd.s32 %v506, 536870912
    %v508 = vshrl.u32 %v507, 30
    %v509 = vshll.u32 %v508, 30
    %v510 = vsub.s32 %v506, %v509
    %vm511 = vcmp.lt.s32.totalorder %v510, 0
    %v512 = vsub.s32 0, %v510
    %v513 = vsel %vm511, %v512, %v510
    %v514 = vclz %v513
    %v515 = vsub.s32 %v514, 2
    %vm516 = vcmp.gt.s32.totalorder 0, %v515
    %v517 = vsel %vm516, 0, %v515
    %v518 = vsub.s32 32, %v517
    %v519 = vshll.u32 %v510, %v517
    %v520 = vshrl.u32 %v502, %v518
    %v521 = vor.u32 %v519, %v520
    %v522 = vsub.s32 4294967266, %v517
    %v523 = vadd.s32 %v522, 127
    %v524 = vshll.u32 %v523, 23
    %v525 = vor.u32 4788187, %v524
    %v526 = vand.u32 2147483647, %v525
    %v528 = vcvt.s32.f32 %v521
    %v529 = vmul.f32 %v528, %v526
    %v530 = vxor.u32 %v529, 2147483648
    %v531 = vsel %vm448, %v530, %v529
    %v532 = vsub.s32 4, %v508
    %v533 = vsel %vm448, %v532, %v508
    %v534 = vsel %vm447, %v30, %v531
    %v535 = vsel %vm447, 0, %v533
    %v536 = vcosq.f32.pop %v534
    %v537 = vsinq.f32.pop %v534
    %vm538 = vweird.f32 %v30
    %v539 = vadd.s32 %v535, 3
    %v540 = vand.u32 %v539, 3
    %vm541 = vcmp.lt.s32.totalorder %v540, 2
    %vm542 = vcmp.eq.s32.totalorder %v540, 0
    %v543 = vxor.u32 %v537, 2147483648
    %v544 = vsel %vm542, %v536, %v543
    %vm545 = vcmp.eq.s32.totalorder %v540, 2
    %v546 = vxor.u32 %v536, 2147483648
    %v547 = vsel %vm545, %v546, %v537
    %v548 = vsel %vm541, %v544, %v547
    %v549 = vsel %vm538, nan, %v548
    %v550 = vand.u32 2147483647, %v31
    %vm551 = vcmp.le.f32.partialorder %v550, 0.7853982
    %vm552 = vcmp.lt.s32.totalorder %v31, 0
    %v553 = vand.u32 %v31, 2139095040
    %v554 = vshrl.u32 %v553, 23
    %v555 = vsub.s32 %v554, 127
    %v556 = vand.u32 2147483647, %v31
    %v557 = vand.u32 %v556, 8388607
    %v558 = vor.u32 %v557, 8388608
    %v559 = vsub.s32 0, %v558
    %v560 = vadd.s32 %v555, 1
    %vm561 = vcmp.gt.s32.totalorder %v560, 0
    %v562 = vsel %vm561, %v560, 0
    %v563 = vshrl.u32 %v562, 5
    %v564 = vand.u32 %v562, 31
    %v565 = vsub.s32 32, %v564
    %v566 = vshrl.u32 683565275, %v565
    %v567 = vshll.u32 683565275, %v564
    %v568 = vshrl.u32 2475754826, %v565
    %v569 = vor.u32 %v567, %v568
    %v570 = vshll.u32 2475754826, %v564
    %v571 = vshrl.u32 2131351028, %v565
    %v572 = vor.u32 %v570, %v571
    %v573 = vshll.u32 2131351028, %v564
    %v574 = vshrl.u32 2102212464, %v565
    %v575 = vor.u32 %v573, %v574
    %v576 = vshll.u32 2102212464, %v564
    %v577 = vshrl.u32 920167782, %v565
    %v578 = vor.u32 %v576, %v577
    %v579 = vshll.u32 920167782, %v564
    %v580 = vshrl.u32 1326507024, %v565
    %v581 = vor.u32 %v579, %v580
    %vm582 = vcmp.lt.s32.totalorder %v563, 1
    %vm583 = vcmp.lt.s32.totalorder %v563, 2
    %vm584 = vcmp.lt.s32.totalorder %v563, 3
    %vm585 = vcmp.lt.s32.totalorder %v563, 4
    %v586 = vsel %vm582, %v566, %v569
    %v587 = vsel %vm585, %v575, 2102212464
    %v588 = vsel %vm584, %v572, %v587
    %v589 = vsel %vm583, %v586, %v588
    %v590 = vsel %vm582, %v569, %v572
    %v591 = vsel %vm585, %v578, 920167782
    %v592 = vsel %vm584, %v575, %v591
    %v593 = vsel %vm583, %v590, %v592
    %v594 = vsel %vm582, %v572, %v575
    %v595 = vsel %vm585, %v581, 1326507024
    %v596 = vsel %vm584, %v578, %v595
    %v597 = vsel %vm583, %v594, %v596
    %v598 = vshll.u32 %v558, 8
    %v599 = vmul.u32.u64.compose %v598, %v597
    %v600 = vextract.low.u32 %v599
    %v601 = vextract.high.u32 %v599
    %v602 = vmul.u32.u64.compose %v598, %v593
    %v603 = vextract.low.u32 %v602
    %v604 = vextract.high.u32 %v602
    %v605 = vmul.u32 %v598, %v589
    %v606 = vadd.s32 %v601, %v603
    %vm607 = vc.u32 %v601, %v603
    %v608 = vadd.s32 %v604, 1
    %v609 = vsel %vm607, %v608, %v604
    %v610 = vadd.s32 %v605, %v609
    %v611 = vadd.s32 %v610, 536870912
    %v612 = vshrl.u32 %v611, 30
    %v613 = vshll.u32 %v612, 30
    %v614 = vsub.s32 %v610, %v613
    %vm615 = vcmp.lt.s32.totalorder %v614, 0
    %v616 = vsub.s32 0, %v614
    %v617 = vsel %vm615, %v616, %v614
    %v618 = vclz %v617
    %v619 = vsub.s32 %v618, 2
    %vm620 = vcmp.gt.s32.totalorder 0, %v619
    %v621 = vsel %vm620, 0, %v619
    %v622 = vsub.s32 32, %v621
    %v623 = vshll.u32 %v614, %v621
    %v624 = vshrl.u32 %v606, %v622
    %v625 = vor.u32 %v623, %v624
    %v626 = vsub.s32 4294967266, %v621
    %v627 = vadd.s32 %v626, 127
    %v628 = vshll.u32 %v627, 23
    %v629 = vor.u32 4788187, %v628
    %v630 = vand.u32 2147483647, %v629
    %v632 = vcvt.s32.f32 %v625
    %v633 = vmul.f32 %v632, %v630
    %v634 = vxor.u32 %v633, 2147483648
    %v635 = vsel %vm552, %v634, %v633
    %v636 = vsub.s32 4, %v612
    %v637 = vsel %vm552, %v636, %v612
    %v638 = vsel %vm551, %v31, %v635
    %v639 = vsel %vm551, 0, %v637
    %v640 = vcosq.f32.pop %v638
    %v641 = vsinq.f32.pop %v638
    %vm642 = vweird.f32 %v31
    %v643 = vadd.s32 %v639, 3
    %v644 = vand.u32 %v643, 3
    %vm645 = vcmp.lt.s32.totalorder %v644, 2
    %vm646 = vcmp.eq.s32.totalorder %v644, 0
    %v647 = vxor.u32 %v641, 2147483648
    %v648 = vsel %vm646, %v640, %v647
    %vm649 = vcmp.eq.s32.totalorder %v644, 2
    %v650 = vxor.u32 %v640, 2147483648
    %v651 = vsel %vm649, %v650, %v641
    %v652 = vsel %vm645, %v648, %v651
    %v653 = vsel %vm642, nan, %v652
    %v654 = vand.u32 2147483647, %v32
    %vm655 = vcmp.le.f32.partialorder %v654, 0.7853982
    %vm656 = vcmp.lt.s32.totalorder %v32, 0
    %v657 = vand.u32 %v32, 2139095040
    %v658 = vshrl.u32 %v657, 23
    %v659 = vsub.s32 %v658, 127
    %v660 = vand.u32 2147483647, %v32
    %v661 = vand.u32 %v660, 8388607
    %v662 = vor.u32 %v661, 8388608
    %v663 = vsub.s32 0, %v662
    %v664 = vadd.s32 %v659, 1
    %vm665 = vcmp.gt.s32.totalorder %v664, 0
    %v666 = vsel %vm665, %v664, 0
    %v667 = vshrl.u32 %v666, 5
    %v668 = vand.u32 %v666, 31
    %v669 = vsub.s32 32, %v668
    %v670 = vshrl.u32 683565275, %v669
    %v671 = vshll.u32 683565275, %v668
    %v672 = vshrl.u32 2475754826, %v669
    %v673 = vor.u32 %v671, %v672
    %v674 = vshll.u32 2475754826, %v668
    %v675 = vshrl.u32 2131351028, %v669
    %v676 = vor.u32 %v674, %v675
    %v677 = vshll.u32 2131351028, %v668
    %v678 = vshrl.u32 2102212464, %v669
    %v679 = vor.u32 %v677, %v678
    %v680 = vshll.u32 2102212464, %v668
    %v681 = vshrl.u32 920167782, %v669
    %v682 = vor.u32 %v680, %v681
    %v683 = vshll.u32 920167782, %v668
    %v684 = vshrl.u32 1326507024, %v669
    %v685 = vor.u32 %v683, %v684
    %vm686 = vcmp.lt.s32.totalorder %v667, 1
    %vm687 = vcmp.lt.s32.totalorder %v667, 2
    %vm688 = vcmp.lt.s32.totalorder %v667, 3
    %vm689 = vcmp.lt.s32.totalorder %v667, 4
    %v690 = vsel %vm686, %v670, %v673
    %v691 = vsel %vm689, %v679, 2102212464
    %v692 = vsel %vm688, %v676, %v691
    %v693 = vsel %vm687, %v690, %v692
    %v694 = vsel %vm686, %v673, %v676
    %v695 = vsel %vm689, %v682, 920167782
    %v696 = vsel %vm688, %v679, %v695
    %v697 = vsel %vm687, %v694, %v696
    %v698 = vsel %vm686, %v676, %v679
    %v699 = vsel %vm689, %v685, 1326507024
    %v700 = vsel %vm688, %v682, %v699
    %v701 = vsel %vm687, %v698, %v700
    %v702 = vshll.u32 %v662, 8
    %v703 = vmul.u32.u64.compose %v702, %v701
    %v704 = vextract.low.u32 %v703
    %v705 = vextract.high.u32 %v703
    %v706 = vmul.u32.u64.compose %v702, %v697
    %v707 = vextract.low.u32 %v706
    %v708 = vextract.high.u32 %v706
    %v709 = vmul.u32 %v702, %v693
    %v710 = vadd.s32 %v705, %v707
    %vm711 = vc.u32 %v705, %v707
    %v712 = vadd.s32 %v708, 1
    %v713 = vsel %vm711, %v712, %v708
    %v714 = vadd.s32 %v709, %v713
    %v715 = vadd.s32 %v714, 536870912
    %v716 = vshrl.u32 %v715, 30
    %v717 = vshll.u32 %v716, 30
    %v718 = vsub.s32 %v714, %v717
    %vm719 = vcmp.lt.s32.totalorder %v718, 0
    %v720 = vsub.s32 0, %v718
    %v721 = vsel %vm719, %v720, %v718
    %v722 = vclz %v721
    %v723 = vsub.s32 %v722, 2
    %vm724 = vcmp.gt.s32.totalorder 0, %v723
    %v725 = vsel %vm724, 0, %v723
    %v726 = vsub.s32 32, %v725
    %v727 = vshll.u32 %v718, %v725
    %v728 = vshrl.u32 %v710, %v726
    %v729 = vor.u32 %v727, %v728
    %v730 = vsub.s32 4294967266, %v725
    %v731 = vadd.s32 %v730, 127
    %v732 = vshll.u32 %v731, 23
    %v733 = vor.u32 4788187, %v732
    %v734 = vand.u32 2147483647, %v733
    %v736 = vcvt.s32.f32 %v729
    %v737 = vmul.f32 %v736, %v734
    %v738 = vxor.u32 %v737, 2147483648
    %v739 = vsel %vm656, %v738, %v737
    %v740 = vsub.s32 4, %v716
    %v741 = vsel %vm656, %v740, %v716
    %v742 = vsel %vm655, %v32, %v739
    %v743 = vsel %vm655, 0, %v741
    %v744 = vcosq.f32.pop %v742
    %v745 = vsinq.f32.pop %v742
    %vm746 = vweird.f32 %v32
    %v747 = vadd.s32 %v743, 3
    %v748 = vand.u32 %v747, 3
    %vm749 = vcmp.lt.s32.totalorder %v748, 2
    %vm750 = vcmp.eq.s32.totalorder %v748, 0
    %v751 = vxor.u32 %v745, 2147483648
    %v752 = vsel %vm750, %v744, %v751
    %vm753 = vcmp.eq.s32.totalorder %v748, 2
    %v754 = vxor.u32 %v744, 2147483648
    %v755 = vsel %vm753, %v754, %v745
    %v756 = vsel %vm749, %v752, %v755
    %v757 = vsel %vm746, nan, %v756
    %v758 = vand.u32 2147483647, %v33
    %vm759 = vcmp.le.f32.partialorder %v758, 0.7853982
    %vm760 = vcmp.lt.s32.totalorder %v33, 0
    %v761 = vand.u32 %v33, 2139095040
    %v762 = vshrl.u32 %v761, 23
    %v763 = vsub.s32 %v762, 127
    %v764 = vand.u32 2147483647, %v33
    %v765 = vand.u32 %v764, 8388607
    %v766 = vor.u32 %v765, 8388608
    %v767 = vsub.s32 0, %v766
    %v768 = vadd.s32 %v763, 1
    %vm769 = vcmp.gt.s32.totalorder %v768, 0
    %v770 = vsel %vm769, %v768, 0
    %v771 = vshrl.u32 %v770, 5
    %v772 = vand.u32 %v770, 31
    %v773 = vsub.s32 32, %v772
    %v774 = vshrl.u32 683565275, %v773
    %v775 = vshll.u32 683565275, %v772
    %v776 = vshrl.u32 2475754826, %v773
    %v777 = vor.u32 %v775, %v776
    %v778 = vshll.u32 2475754826, %v772
    %v779 = vshrl.u32 2131351028, %v773
    %v780 = vor.u32 %v778, %v779
    %v781 = vshll.u32 2131351028, %v772
    %v782 = vshrl.u32 2102212464, %v773
    %v783 = vor.u32 %v781, %v782
    %v784 = vshll.u32 2102212464, %v772
    %v785 = vshrl.u32 920167782, %v773
    %v786 = vor.u32 %v784, %v785
    %v787 = vshll.u32 920167782, %v772
    %v788 = vshrl.u32 1326507024, %v773
    %v789 = vor.u32 %v787, %v788
    %vm790 = vcmp.lt.s32.totalorder %v771, 1
    %vm791 = vcmp.lt.s32.totalorder %v771, 2
    %vm792 = vcmp.lt.s32.totalorder %v771, 3
    %vm793 = vcmp.lt.s32.totalorder %v771, 4
    %v794 = vsel %vm790, %v774, %v777
    %v795 = vsel %vm793, %v783, 2102212464
    %v796 = vsel %vm792, %v780, %v795
    %v797 = vsel %vm791, %v794, %v796
    %v798 = vsel %vm790, %v777, %v780
    %v799 = vsel %vm793, %v786, 920167782
    %v800 = vsel %vm792, %v783, %v799
    %v801 = vsel %vm791, %v798, %v800
    %v802 = vsel %vm790, %v780, %v783
    %v803 = vsel %vm793, %v789, 1326507024
    %v804 = vsel %vm792, %v786, %v803
    %v805 = vsel %vm791, %v802, %v804
    %v806 = vshll.u32 %v766, 8
    %v807 = vmul.u32.u64.compose %v806, %v805
    %v808 = vextract.low.u32 %v807
    %v809 = vextract.high.u32 %v807
    %v810 = vmul.u32.u64.compose %v806, %v801
    %v811 = vextract.low.u32 %v810
    %v812 = vextract.high.u32 %v810
    %v813 = vmul.u32 %v806, %v797
    %v814 = vadd.s32 %v809, %v811
    %vm815 = vc.u32 %v809, %v811
    %v816 = vadd.s32 %v812, 1
    %v817 = vsel %vm815, %v816, %v812
    %v818 = vadd.s32 %v813, %v817
    %v819 = vadd.s32 %v818, 536870912
    %v820 = vshrl.u32 %v819, 30
    %v821 = vshll.u32 %v820, 30
    %v822 = vsub.s32 %v818, %v821
    %vm823 = vcmp.lt.s32.totalorder %v822, 0
    %v824 = vsub.s32 0, %v822
    %v825 = vsel %vm823, %v824, %v822
    %v826 = vclz %v825
    %v827 = vsub.s32 %v826, 2
    %vm828 = vcmp.gt.s32.totalorder 0, %v827
    %v829 = vsel %vm828, 0, %v827
    %v830 = vsub.s32 32, %v829
    %v831 = vshll.u32 %v822, %v829
    %v832 = vshrl.u32 %v814, %v830
    %v833 = vor.u32 %v831, %v832
    %v834 = vsub.s32 4294967266, %v829
    %v835 = vadd.s32 %v834, 127
    %v836 = vshll.u32 %v835, 23
    %v837 = vor.u32 4788187, %v836
    %v838 = vand.u32 2147483647, %v837
    %v840 = vcvt.s32.f32 %v833
    %v841 = vmul.f32 %v840, %v838
    %v842 = vxor.u32 %v841, 2147483648
    %v843 = vsel %vm760, %v842, %v841
    %v844 = vsub.s32 4, %v820
    %v845 = vsel %vm760, %v844, %v820
    %v846 = vsel %vm759, %v33, %v843
    %v847 = vsel %vm759, 0, %v845
    %v848 = vcosq.f32.pop %v846
    %v849 = vsinq.f32.pop %v846
    %vm850 = vweird.f32 %v33
    %v851 = vadd.s32 %v847, 3
    %v852 = vand.u32 %v851, 3
    %vm853 = vcmp.lt.s32.totalorder %v852, 2
    %vm854 = vcmp.eq.s32.totalorder %v852, 0
    %v855 = vxor.u32 %v849, 2147483648
    %v856 = vsel %vm854, %v848, %v855
    %vm857 = vcmp.eq.s32.totalorder %v852, 2
    %v858 = vxor.u32 %v848, 2147483648
    %v859 = vsel %vm857, %v858, %v849
    %v860 = vsel %vm853, %v856, %v859
    %v861 = vsel %vm850, nan, %v860
    %866 = vrot.lane.b32.xlu0 %v26, 127
    %v867 = vpop.permute.xlu0 %866
    %868 = vrot.lane.b32.xlu0 %v27, 127
    %v869 = vpop.permute.xlu0 %868
    %870 = vrot.lane.b32.xlu0 %v28, 127
    %v871 = vpop.permute.xlu0 %870
    %872 = vrot.lane.b32.xlu0 %v29, 127
    %v873 = vpop.permute.xlu0 %872
    %v878 = vadd.f32 %v26, %v867
    %v879 = vadd.f32 %v27, %v869
    %v880 = vadd.f32 %v28, %v871
    %v881 = vadd.f32 %v29, %v873
    %v882 = vmul.f32 %v878, 0.5
    %v883 = vmul.f32 %v879, 0.5
    %v884 = vmul.f32 %v880, 0.5
    %v885 = vmul.f32 %v881, 0.5
    %v886 = vand.u32 2147483647, %v882
    %vm887 = vcmp.le.f32.partialorder %v886, 0.7853982
    %vm888 = vcmp.lt.s32.totalorder %v882, 0
    %v889 = vand.u32 %v882, 2139095040
    %v890 = vshrl.u32 %v889, 23
    %v891 = vsub.s32 %v890, 127
    %v892 = vand.u32 2147483647, %v882
    %v893 = vand.u32 %v892, 8388607
    %v894 = vor.u32 %v893, 8388608
    %v895 = vsub.s32 0, %v894
    %v896 = vadd.s32 %v891, 1
    %vm897 = vcmp.gt.s32.totalorder %v896, 0
    %v898 = vsel %vm897, %v896, 0
    %v899 = vshrl.u32 %v898, 5
    %v900 = vand.u32 %v898, 31
    %v901 = vsub.s32 32, %v900
    %v902 = vshrl.u32 683565275, %v901
    %v903 = vshll.u32 683565275, %v900
    %v904 = vshrl.u32 2475754826, %v901
    %v905 = vor.u32 %v903, %v904
    %v906 = vshll.u32 2475754826, %v900
    %v907 = vshrl.u32 2131351028, %v901
    %v908 = vor.u32 %v906, %v907
    %v909 = vshll.u32 2131351028, %v900
    %v910 = vshrl.u32 2102212464, %v901
    %v911 = vor.u32 %v909, %v910
    %v912 = vshll.u32 2102212464, %v900
    %v913 = vshrl.u32 920167782, %v901
    %v914 = vor.u32 %v912, %v913
    %v915 = vshll.u32 920167782, %v900
    %v916 = vshrl.u32 1326507024, %v901
    %v917 = vor.u32 %v915, %v916
    %vm918 = vcmp.lt.s32.totalorder %v899, 1
    %vm919 = vcmp.lt.s32.totalorder %v899, 2
    %vm920 = vcmp.lt.s32.totalorder %v899, 3
    %vm921 = vcmp.lt.s32.totalorder %v899, 4
    %v922 = vsel %vm918, %v902, %v905
    %v923 = vsel %vm921, %v911, 2102212464
    %v924 = vsel %vm920, %v908, %v923
    %v925 = vsel %vm919, %v922, %v924
    %v926 = vsel %vm918, %v905, %v908
    %v927 = vsel %vm921, %v914, 920167782
    %v928 = vsel %vm920, %v911, %v927
    %v929 = vsel %vm919, %v926, %v928
    %v930 = vsel %vm918, %v908, %v911
    %v931 = vsel %vm921, %v917, 1326507024
    %v932 = vsel %vm920, %v914, %v931
    %v933 = vsel %vm919, %v930, %v932
    %v934 = vshll.u32 %v894, 8
    %v935 = vmul.u32.u64.compose %v934, %v933
    %v936 = vextract.low.u32 %v935
    %v937 = vextract.high.u32 %v935
    %v938 = vmul.u32.u64.compose %v934, %v929
    %v939 = vextract.low.u32 %v938
    %v940 = vextract.high.u32 %v938
    %v941 = vmul.u32 %v934, %v925
    %v942 = vadd.s32 %v937, %v939
    %vm943 = vc.u32 %v937, %v939
    %v944 = vadd.s32 %v940, 1
    %v945 = vsel %vm943, %v944, %v940
    %v946 = vadd.s32 %v941, %v945
    %v947 = vadd.s32 %v946, 536870912
    %v948 = vshrl.u32 %v947, 30
    %v949 = vshll.u32 %v948, 30
    %v950 = vsub.s32 %v946, %v949
    %vm951 = vcmp.lt.s32.totalorder %v950, 0
    %v952 = vsub.s32 0, %v950
    %v953 = vsel %vm951, %v952, %v950
    %v954 = vclz %v953
    %v955 = vsub.s32 %v954, 2
    %vm956 = vcmp.gt.s32.totalorder 0, %v955
    %v957 = vsel %vm956, 0, %v955
    %v958 = vsub.s32 32, %v957
    %v959 = vshll.u32 %v950, %v957
    %v960 = vshrl.u32 %v942, %v958
    %v961 = vor.u32 %v959, %v960
    %v962 = vsub.s32 4294967266, %v957
    %v963 = vadd.s32 %v962, 127
    %v964 = vshll.u32 %v963, 23
    %v965 = vor.u32 4788187, %v964
    %v966 = vand.u32 2147483647, %v965
    %v968 = vcvt.s32.f32 %v961
    %v969 = vmul.f32 %v968, %v966
    %v970 = vxor.u32 %v969, 2147483648
    %v971 = vsel %vm888, %v970, %v969
    %v972 = vsub.s32 4, %v948
    %v973 = vsel %vm888, %v972, %v948
    %v974 = vsel %vm887, %v882, %v971
    %v975 = vsel %vm887, 0, %v973
    %v976 = vcosq.f32.pop %v974
    %v977 = vsinq.f32.pop %v974
    %vm978 = vweird.f32 %v882
    %v979 = vand.u32 %v975, 3
    %vm980 = vcmp.lt.s32.totalorder %v979, 2
    %vm981 = vcmp.eq.s32.totalorder %v979, 0
    %v982 = vxor.u32 %v977, 2147483648
    %v983 = vsel %vm981, %v976, %v982
    %vm984 = vcmp.eq.s32.totalorder %v979, 2
    %v985 = vxor.u32 %v976, 2147483648
    %v986 = vsel %vm984, %v985, %v977
    %v987 = vsel %vm980, %v983, %v986
    %v988 = vsel %vm978, nan, %v987
    %v989 = vand.u32 2147483647, %v883
    %vm990 = vcmp.le.f32.partialorder %v989, 0.7853982
    %vm991 = vcmp.lt.s32.totalorder %v883, 0
    %v992 = vand.u32 %v883, 2139095040
    %v993 = vshrl.u32 %v992, 23
    %v994 = vsub.s32 %v993, 127
    %v995 = vand.u32 2147483647, %v883
    %v996 = vand.u32 %v995, 8388607
    %v997 = vor.u32 %v996, 8388608
    %v998 = vsub.s32 0, %v997
    %v999 = vadd.s32 %v994, 1
    %vm1000 = vcmp.gt.s32.totalorder %v999, 0
    %v1001 = vsel %vm1000, %v999, 0
    %v1002 = vshrl.u32 %v1001, 5
    %v1003 = vand.u32 %v1001, 31
    %v1004 = vsub.s32 32, %v1003
    %v1005 = vshrl.u32 683565275, %v1004
    %v1006 = vshll.u32 683565275, %v1003
    %v1007 = vshrl.u32 2475754826, %v1004
    %v1008 = vor.u32 %v1006, %v1007
    %v1009 = vshll.u32 2475754826, %v1003
    %v1010 = vshrl.u32 2131351028, %v1004
    %v1011 = vor.u32 %v1009, %v1010
    %v1012 = vshll.u32 2131351028, %v1003
    %v1013 = vshrl.u32 2102212464, %v1004
    %v1014 = vor.u32 %v1012, %v1013
    %v1015 = vshll.u32 2102212464, %v1003
    %v1016 = vshrl.u32 920167782, %v1004
    %v1017 = vor.u32 %v1015, %v1016
    %v1018 = vshll.u32 920167782, %v1003
    %v1019 = vshrl.u32 1326507024, %v1004
    %v1020 = vor.u32 %v1018, %v1019
    %vm1021 = vcmp.lt.s32.totalorder %v1002, 1
    %vm1022 = vcmp.lt.s32.totalorder %v1002, 2
    %vm1023 = vcmp.lt.s32.totalorder %v1002, 3
    %vm1024 = vcmp.lt.s32.totalorder %v1002, 4
    %v1025 = vsel %vm1021, %v1005, %v1008
    %v1026 = vsel %vm1024, %v1014, 2102212464
    %v1027 = vsel %vm1023, %v1011, %v1026
    %v1028 = vsel %vm1022, %v1025, %v1027
    %v1029 = vsel %vm1021, %v1008, %v1011
    %v1030 = vsel %vm1024, %v1017, 920167782
    %v1031 = vsel %vm1023, %v1014, %v1030
    %v1032 = vsel %vm1022, %v1029, %v1031
    %v1033 = vsel %vm1021, %v1011, %v1014
    %v1034 = vsel %vm1024, %v1020, 1326507024
    %v1035 = vsel %vm1023, %v1017, %v1034
    %v1036 = vsel %vm1022, %v1033, %v1035
    %v1037 = vshll.u32 %v997, 8
    %v1038 = vmul.u32.u64.compose %v1037, %v1036
    %v1039 = vextract.low.u32 %v1038
    %v1040 = vextract.high.u32 %v1038
    %v1041 = vmul.u32.u64.compose %v1037, %v1032
    %v1042 = vextract.low.u32 %v1041
    %v1043 = vextract.high.u32 %v1041
    %v1044 = vmul.u32 %v1037, %v1028
    %v1045 = vadd.s32 %v1040, %v1042
    %vm1046 = vc.u32 %v1040, %v1042
    %v1047 = vadd.s32 %v1043, 1
    %v1048 = vsel %vm1046, %v1047, %v1043
    %v1049 = vadd.s32 %v1044, %v1048
    %v1050 = vadd.s32 %v1049, 536870912
    %v1051 = vshrl.u32 %v1050, 30
    %v1052 = vshll.u32 %v1051, 30
    %v1053 = vsub.s32 %v1049, %v1052
    %vm1054 = vcmp.lt.s32.totalorder %v1053, 0
    %v1055 = vsub.s32 0, %v1053
    %v1056 = vsel %vm1054, %v1055, %v1053
    %v1057 = vclz %v1056
    %v1058 = vsub.s32 %v1057, 2
    %vm1059 = vcmp.gt.s32.totalorder 0, %v1058
    %v1060 = vsel %vm1059, 0, %v1058
    %v1061 = vsub.s32 32, %v1060
    %v1062 = vshll.u32 %v1053, %v1060
    %v1063 = vshrl.u32 %v1045, %v1061
    %v1064 = vor.u32 %v1062, %v1063
    %v1065 = vsub.s32 4294967266, %v1060
    %v1066 = vadd.s32 %v1065, 127
    %v1067 = vshll.u32 %v1066, 23
    %v1068 = vor.u32 4788187, %v1067
    %v1069 = vand.u32 2147483647, %v1068
    %v1071 = vcvt.s32.f32 %v1064
    %v1072 = vmul.f32 %v1071, %v1069
    %v1073 = vxor.u32 %v1072, 2147483648
    %v1074 = vsel %vm991, %v1073, %v1072
    %v1075 = vsub.s32 4, %v1051
    %v1076 = vsel %vm991, %v1075, %v1051
    %v1077 = vsel %vm990, %v883, %v1074
    %v1078 = vsel %vm990, 0, %v1076
    %v1079 = vcosq.f32.pop %v1077
    %v1080 = vsinq.f32.pop %v1077
    %vm1081 = vweird.f32 %v883
    %v1082 = vand.u32 %v1078, 3
    %vm1083 = vcmp.lt.s32.totalorder %v1082, 2
    %vm1084 = vcmp.eq.s32.totalorder %v1082, 0
    %v1085 = vxor.u32 %v1080, 2147483648
    %v1086 = vsel %vm1084, %v1079, %v1085
    %vm1087 = vcmp.eq.s32.totalorder %v1082, 2
    %v1088 = vxor.u32 %v1079, 2147483648
    %v1089 = vsel %vm1087, %v1088, %v1080
    %v1090 = vsel %vm1083, %v1086, %v1089
    %v1091 = vsel %vm1081, nan, %v1090
    %v1092 = vand.u32 2147483647, %v884
    %vm1093 = vcmp.le.f32.partialorder %v1092, 0.7853982
    %vm1094 = vcmp.lt.s32.totalorder %v884, 0
    %v1095 = vand.u32 %v884, 2139095040
    %v1096 = vshrl.u32 %v1095, 23
    %v1097 = vsub.s32 %v1096, 127
    %v1098 = vand.u32 2147483647, %v884
    %v1099 = vand.u32 %v1098, 8388607
    %v1100 = vor.u32 %v1099, 8388608
    %v1101 = vsub.s32 0, %v1100
    %v1102 = vadd.s32 %v1097, 1
    %vm1103 = vcmp.gt.s32.totalorder %v1102, 0
    %v1104 = vsel %vm1103, %v1102, 0
    %v1105 = vshrl.u32 %v1104, 5
    %v1106 = vand.u32 %v1104, 31
    %v1107 = vsub.s32 32, %v1106
    %v1108 = vshrl.u32 683565275, %v1107
    %v1109 = vshll.u32 683565275, %v1106
    %v1110 = vshrl.u32 2475754826, %v1107
    %v1111 = vor.u32 %v1109, %v1110
    %v1112 = vshll.u32 2475754826, %v1106
    %v1113 = vshrl.u32 2131351028, %v1107
    %v1114 = vor.u32 %v1112, %v1113
    %v1115 = vshll.u32 2131351028, %v1106
    %v1116 = vshrl.u32 2102212464, %v1107
    %v1117 = vor.u32 %v1115, %v1116
    %v1118 = vshll.u32 2102212464, %v1106
    %v1119 = vshrl.u32 920167782, %v1107
    %v1120 = vor.u32 %v1118, %v1119
    %v1121 = vshll.u32 920167782, %v1106
    %v1122 = vshrl.u32 1326507024, %v1107
    %v1123 = vor.u32 %v1121, %v1122
    %vm1124 = vcmp.lt.s32.totalorder %v1105, 1
    %vm1125 = vcmp.lt.s32.totalorder %v1105, 2
    %vm1126 = vcmp.lt.s32.totalorder %v1105, 3
    %vm1127 = vcmp.lt.s32.totalorder %v1105, 4
    %v1128 = vsel %vm1124, %v1108, %v1111
    %v1129 = vsel %vm1127, %v1117, 2102212464
    %v1130 = vsel %vm1126, %v1114, %v1129
    %v1131 = vsel %vm1125, %v1128, %v1130
    %v1132 = vsel %vm1124, %v1111, %v1114
    %v1133 = vsel %vm1127, %v1120, 920167782
    %v1134 = vsel %vm1126, %v1117, %v1133
    %v1135 = vsel %vm1125, %v1132, %v1134
    %v1136 = vsel %vm1124, %v1114, %v1117
    %v1137 = vsel %vm1127, %v1123, 1326507024
    %v1138 = vsel %vm1126, %v1120, %v1137
    %v1139 = vsel %vm1125, %v1136, %v1138
    %v1140 = vshll.u32 %v1100, 8
    %v1141 = vmul.u32.u64.compose %v1140, %v1139
    %v1142 = vextract.low.u32 %v1141
    %v1143 = vextract.high.u32 %v1141
    %v1144 = vmul.u32.u64.compose %v1140, %v1135
    %v1145 = vextract.low.u32 %v1144
    %v1146 = vextract.high.u32 %v1144
    %v1147 = vmul.u32 %v1140, %v1131
    %v1148 = vadd.s32 %v1143, %v1145
    %vm1149 = vc.u32 %v1143, %v1145
    %v1150 = vadd.s32 %v1146, 1
    %v1151 = vsel %vm1149, %v1150, %v1146
    %v1152 = vadd.s32 %v1147, %v1151
    %v1153 = vadd.s32 %v1152, 536870912
    %v1154 = vshrl.u32 %v1153, 30
    %v1155 = vshll.u32 %v1154, 30
    %v1156 = vsub.s32 %v1152, %v1155
    %vm1157 = vcmp.lt.s32.totalorder %v1156, 0
    %v1158 = vsub.s32 0, %v1156
    %v1159 = vsel %vm1157, %v1158, %v1156
    %v1160 = vclz %v1159
    %v1161 = vsub.s32 %v1160, 2
    %vm1162 = vcmp.gt.s32.totalorder 0, %v1161
    %v1163 = vsel %vm1162, 0, %v1161
    %v1164 = vsub.s32 32, %v1163
    %v1165 = vshll.u32 %v1156, %v1163
    %v1166 = vshrl.u32 %v1148, %v1164
    %v1167 = vor.u32 %v1165, %v1166
    %v1168 = vsub.s32 4294967266, %v1163
    %v1169 = vadd.s32 %v1168, 127
    %v1170 = vshll.u32 %v1169, 23
    %v1171 = vor.u32 4788187, %v1170
    %v1172 = vand.u32 2147483647, %v1171
    %v1174 = vcvt.s32.f32 %v1167
    %v1175 = vmul.f32 %v1174, %v1172
    %v1176 = vxor.u32 %v1175, 2147483648
    %v1177 = vsel %vm1094, %v1176, %v1175
    %v1178 = vsub.s32 4, %v1154
    %v1179 = vsel %vm1094, %v1178, %v1154
    %v1180 = vsel %vm1093, %v884, %v1177
    %v1181 = vsel %vm1093, 0, %v1179
    %v1182 = vcosq.f32.pop %v1180
    %v1183 = vsinq.f32.pop %v1180
    %vm1184 = vweird.f32 %v884
    %v1185 = vand.u32 %v1181, 3
    %vm1186 = vcmp.lt.s32.totalorder %v1185, 2
    %vm1187 = vcmp.eq.s32.totalorder %v1185, 0
    %v1188 = vxor.u32 %v1183, 2147483648
    %v1189 = vsel %vm1187, %v1182, %v1188
    %vm1190 = vcmp.eq.s32.totalorder %v1185, 2
    %v1191 = vxor.u32 %v1182, 2147483648
    %v1192 = vsel %vm1190, %v1191, %v1183
    %v1193 = vsel %vm1186, %v1189, %v1192
    %v1194 = vsel %vm1184, nan, %v1193
    %v1195 = vand.u32 2147483647, %v885
    %vm1196 = vcmp.le.f32.partialorder %v1195, 0.7853982
    %vm1197 = vcmp.lt.s32.totalorder %v885, 0
    %v1198 = vand.u32 %v885, 2139095040
    %v1199 = vshrl.u32 %v1198, 23
    %v1200 = vsub.s32 %v1199, 127
    %v1201 = vand.u32 2147483647, %v885
    %v1202 = vand.u32 %v1201, 8388607
    %v1203 = vor.u32 %v1202, 8388608
    %v1204 = vsub.s32 0, %v1203
    %v1205 = vadd.s32 %v1200, 1
    %vm1206 = vcmp.gt.s32.totalorder %v1205, 0
    %v1207 = vsel %vm1206, %v1205, 0
    %v1208 = vshrl.u32 %v1207, 5
    %v1209 = vand.u32 %v1207, 31
    %v1210 = vsub.s32 32, %v1209
    %v1211 = vshrl.u32 683565275, %v1210
    %v1212 = vshll.u32 683565275, %v1209
    %v1213 = vshrl.u32 2475754826, %v1210
    %v1214 = vor.u32 %v1212, %v1213
    %v1215 = vshll.u32 2475754826, %v1209
    %v1216 = vshrl.u32 2131351028, %v1210
    %v1217 = vor.u32 %v1215, %v1216
    %v1218 = vshll.u32 2131351028, %v1209
    %v1219 = vshrl.u32 2102212464, %v1210
    %v1220 = vor.u32 %v1218, %v1219
    %v1221 = vshll.u32 2102212464, %v1209
    %v1222 = vshrl.u32 920167782, %v1210
    %v1223 = vor.u32 %v1221, %v1222
    %v1224 = vshll.u32 920167782, %v1209
    %v1225 = vshrl.u32 1326507024, %v1210
    %v1226 = vor.u32 %v1224, %v1225
    %vm1227 = vcmp.lt.s32.totalorder %v1208, 1
    %vm1228 = vcmp.lt.s32.totalorder %v1208, 2
    %vm1229 = vcmp.lt.s32.totalorder %v1208, 3
    %vm1230 = vcmp.lt.s32.totalorder %v1208, 4
    %v1231 = vsel %vm1227, %v1211, %v1214
    %v1232 = vsel %vm1230, %v1220, 2102212464
    %v1233 = vsel %vm1229, %v1217, %v1232
    %v1234 = vsel %vm1228, %v1231, %v1233
    %v1235 = vsel %vm1227, %v1214, %v1217
    %v1236 = vsel %vm1230, %v1223, 920167782
    %v1237 = vsel %vm1229, %v1220, %v1236
    %v1238 = vsel %vm1228, %v1235, %v1237
    %v1239 = vsel %vm1227, %v1217, %v1220
    %v1240 = vsel %vm1230, %v1226, 1326507024
    %v1241 = vsel %vm1229, %v1223, %v1240
    %v1242 = vsel %vm1228, %v1239, %v1241
    %v1243 = vshll.u32 %v1203, 8
    %v1244 = vmul.u32.u64.compose %v1243, %v1242
    %v1245 = vextract.low.u32 %v1244
    %v1246 = vextract.high.u32 %v1244
    %v1247 = vmul.u32.u64.compose %v1243, %v1238
    %v1248 = vextract.low.u32 %v1247
    %v1249 = vextract.high.u32 %v1247
    %v1250 = vmul.u32 %v1243, %v1234
    %v1251 = vadd.s32 %v1246, %v1248
    %vm1252 = vc.u32 %v1246, %v1248
    %v1253 = vadd.s32 %v1249, 1
    %v1254 = vsel %vm1252, %v1253, %v1249
    %v1255 = vadd.s32 %v1250, %v1254
    %v1256 = vadd.s32 %v1255, 536870912
    %v1257 = vshrl.u32 %v1256, 30
    %v1258 = vshll.u32 %v1257, 30
    %v1259 = vsub.s32 %v1255, %v1258
    %vm1260 = vcmp.lt.s32.totalorder %v1259, 0
    %v1261 = vsub.s32 0, %v1259
    %v1262 = vsel %vm1260, %v1261, %v1259
    %v1263 = vclz %v1262
    %v1264 = vsub.s32 %v1263, 2
    %vm1265 = vcmp.gt.s32.totalorder 0, %v1264
    %v1266 = vsel %vm1265, 0, %v1264
    %v1267 = vsub.s32 32, %v1266
    %v1268 = vshll.u32 %v1259, %v1266
    %v1269 = vshrl.u32 %v1251, %v1267
    %v1270 = vor.u32 %v1268, %v1269
    %v1271 = vsub.s32 4294967266, %v1266
    %v1272 = vadd.s32 %v1271, 127
    %v1273 = vshll.u32 %v1272, 23
    %v1274 = vor.u32 4788187, %v1273
    %v1275 = vand.u32 2147483647, %v1274
    %v1277 = vcvt.s32.f32 %v1270
    %v1278 = vmul.f32 %v1277, %v1275
    %v1279 = vxor.u32 %v1278, 2147483648
    %v1280 = vsel %vm1197, %v1279, %v1278
    %v1281 = vsub.s32 4, %v1257
    %v1282 = vsel %vm1197, %v1281, %v1257
    %v1283 = vsel %vm1196, %v885, %v1280
    %v1284 = vsel %vm1196, 0, %v1282
    %v1285 = vcosq.f32.pop %v1283
    %v1286 = vsinq.f32.pop %v1283
    %vm1287 = vweird.f32 %v885
    %v1288 = vand.u32 %v1284, 3
    %vm1289 = vcmp.lt.s32.totalorder %v1288, 2
    %vm1290 = vcmp.eq.s32.totalorder %v1288, 0
    %v1291 = vxor.u32 %v1286, 2147483648
    %v1292 = vsel %vm1290, %v1285, %v1291
    %vm1293 = vcmp.eq.s32.totalorder %v1288, 2
    %v1294 = vxor.u32 %v1285, 2147483648
    %v1295 = vsel %vm1293, %v1294, %v1286
    %v1296 = vsel %vm1289, %v1292, %v1295
    %v1297 = vsel %vm1287, nan, %v1296
    %v1298 = vand.u32 2147483647, %v882
    %vm1299 = vcmp.le.f32.partialorder %v1298, 0.7853982
    %vm1300 = vcmp.lt.s32.totalorder %v882, 0
    %v1301 = vand.u32 %v882, 2139095040
    %v1302 = vshrl.u32 %v1301, 23
    %v1303 = vsub.s32 %v1302, 127
    %v1304 = vand.u32 2147483647, %v882
    %v1305 = vand.u32 %v1304, 8388607
    %v1306 = vor.u32 %v1305, 8388608
    %v1307 = vsub.s32 0, %v1306
    %v1308 = vadd.s32 %v1303, 1
    %vm1309 = vcmp.gt.s32.totalorder %v1308, 0
    %v1310 = vsel %vm1309, %v1308, 0
    %v1311 = vshrl.u32 %v1310, 5
    %v1312 = vand.u32 %v1310, 31
    %v1313 = vsub.s32 32, %v1312
    %v1314 = vshrl.u32 683565275, %v1313
    %v1315 = vshll.u32 683565275, %v1312
    %v1316 = vshrl.u32 2475754826, %v1313
    %v1317 = vor.u32 %v1315, %v1316
    %v1318 = vshll.u32 2475754826, %v1312
    %v1319 = vshrl.u32 2131351028, %v1313
    %v1320 = vor.u32 %v1318, %v1319
    %v1321 = vshll.u32 2131351028, %v1312
    %v1322 = vshrl.u32 2102212464, %v1313
    %v1323 = vor.u32 %v1321, %v1322
    %v1324 = vshll.u32 2102212464, %v1312
    %v1325 = vshrl.u32 920167782, %v1313
    %v1326 = vor.u32 %v1324, %v1325
    %v1327 = vshll.u32 920167782, %v1312
    %v1328 = vshrl.u32 1326507024, %v1313
    %v1329 = vor.u32 %v1327, %v1328
    %vm1330 = vcmp.lt.s32.totalorder %v1311, 1
    %vm1331 = vcmp.lt.s32.totalorder %v1311, 2
    %vm1332 = vcmp.lt.s32.totalorder %v1311, 3
    %vm1333 = vcmp.lt.s32.totalorder %v1311, 4
    %v1334 = vsel %vm1330, %v1314, %v1317
    %v1335 = vsel %vm1333, %v1323, 2102212464
    %v1336 = vsel %vm1332, %v1320, %v1335
    %v1337 = vsel %vm1331, %v1334, %v1336
    %v1338 = vsel %vm1330, %v1317, %v1320
    %v1339 = vsel %vm1333, %v1326, 920167782
    %v1340 = vsel %vm1332, %v1323, %v1339
    %v1341 = vsel %vm1331, %v1338, %v1340
    %v1342 = vsel %vm1330, %v1320, %v1323
    %v1343 = vsel %vm1333, %v1329, 1326507024
    %v1344 = vsel %vm1332, %v1326, %v1343
    %v1345 = vsel %vm1331, %v1342, %v1344
    %v1346 = vshll.u32 %v1306, 8
    %v1347 = vmul.u32.u64.compose %v1346, %v1345
    %v1348 = vextract.low.u32 %v1347
    %v1349 = vextract.high.u32 %v1347
    %v1350 = vmul.u32.u64.compose %v1346, %v1341
    %v1351 = vextract.low.u32 %v1350
    %v1352 = vextract.high.u32 %v1350
    %v1353 = vmul.u32 %v1346, %v1337
    %v1354 = vadd.s32 %v1349, %v1351
    %vm1355 = vc.u32 %v1349, %v1351
    %v1356 = vadd.s32 %v1352, 1
    %v1357 = vsel %vm1355, %v1356, %v1352
    %v1358 = vadd.s32 %v1353, %v1357
    %v1359 = vadd.s32 %v1358, 536870912
    %v1360 = vshrl.u32 %v1359, 30
    %v1361 = vshll.u32 %v1360, 30
    %v1362 = vsub.s32 %v1358, %v1361
    %vm1363 = vcmp.lt.s32.totalorder %v1362, 0
    %v1364 = vsub.s32 0, %v1362
    %v1365 = vsel %vm1363, %v1364, %v1362
    %v1366 = vclz %v1365
    %v1367 = vsub.s32 %v1366, 2
    %vm1368 = vcmp.gt.s32.totalorder 0, %v1367
    %v1369 = vsel %vm1368, 0, %v1367
    %v1370 = vsub.s32 32, %v1369
    %v1371 = vshll.u32 %v1362, %v1369
    %v1372 = vshrl.u32 %v1354, %v1370
    %v1373 = vor.u32 %v1371, %v1372
    %v1374 = vsub.s32 4294967266, %v1369
    %v1375 = vadd.s32 %v1374, 127
    %v1376 = vshll.u32 %v1375, 23
    %v1377 = vor.u32 4788187, %v1376
    %v1378 = vand.u32 2147483647, %v1377
    %v1380 = vcvt.s32.f32 %v1373
    %v1381 = vmul.f32 %v1380, %v1378
    %v1382 = vxor.u32 %v1381, 2147483648
    %v1383 = vsel %vm1300, %v1382, %v1381
    %v1384 = vsub.s32 4, %v1360
    %v1385 = vsel %vm1300, %v1384, %v1360
    %v1386 = vsel %vm1299, %v882, %v1383
    %v1387 = vsel %vm1299, 0, %v1385
    %v1388 = vcosq.f32.pop %v1386
    %v1389 = vsinq.f32.pop %v1386
    %vm1390 = vweird.f32 %v882
    %v1391 = vadd.s32 %v1387, 3
    %v1392 = vand.u32 %v1391, 3
    %vm1393 = vcmp.lt.s32.totalorder %v1392, 2
    %vm1394 = vcmp.eq.s32.totalorder %v1392, 0
    %v1395 = vxor.u32 %v1389, 2147483648
    %v1396 = vsel %vm1394, %v1388, %v1395
    %vm1397 = vcmp.eq.s32.totalorder %v1392, 2
    %v1398 = vxor.u32 %v1388, 2147483648
    %v1399 = vsel %vm1397, %v1398, %v1389
    %v1400 = vsel %vm1393, %v1396, %v1399
    %v1401 = vsel %vm1390, nan, %v1400
    %v1402 = vand.u32 2147483647, %v883
    %vm1403 = vcmp.le.f32.partialorder %v1402, 0.7853982
    %vm1404 = vcmp.lt.s32.totalorder %v883, 0
    %v1405 = vand.u32 %v883, 2139095040
    %v1406 = vshrl.u32 %v1405, 23
    %v1407 = vsub.s32 %v1406, 127
    %v1408 = vand.u32 2147483647, %v883
    %v1409 = vand.u32 %v1408, 8388607
    %v1410 = vor.u32 %v1409, 8388608
    %v1411 = vsub.s32 0, %v1410
    %v1412 = vadd.s32 %v1407, 1
    %vm1413 = vcmp.gt.s32.totalorder %v1412, 0
    %v1414 = vsel %vm1413, %v1412, 0
    %v1415 = vshrl.u32 %v1414, 5
    %v1416 = vand.u32 %v1414, 31
    %v1417 = vsub.s32 32, %v1416
    %v1418 = vshrl.u32 683565275, %v1417
    %v1419 = vshll.u32 683565275, %v1416
    %v1420 = vshrl.u32 2475754826, %v1417
    %v1421 = vor.u32 %v1419, %v1420
    %v1422 = vshll.u32 2475754826, %v1416
    %v1423 = vshrl.u32 2131351028, %v1417
    %v1424 = vor.u32 %v1422, %v1423
    %v1425 = vshll.u32 2131351028, %v1416
    %v1426 = vshrl.u32 2102212464, %v1417
    %v1427 = vor.u32 %v1425, %v1426
    %v1428 = vshll.u32 2102212464, %v1416
    %v1429 = vshrl.u32 920167782, %v1417
    %v1430 = vor.u32 %v1428, %v1429
    %v1431 = vshll.u32 920167782, %v1416
    %v1432 = vshrl.u32 1326507024, %v1417
    %v1433 = vor.u32 %v1431, %v1432
    %vm1434 = vcmp.lt.s32.totalorder %v1415, 1
    %vm1435 = vcmp.lt.s32.totalorder %v1415, 2
    %vm1436 = vcmp.lt.s32.totalorder %v1415, 3
    %vm1437 = vcmp.lt.s32.totalorder %v1415, 4
    %v1438 = vsel %vm1434, %v1418, %v1421
    %v1439 = vsel %vm1437, %v1427, 2102212464
    %v1440 = vsel %vm1436, %v1424, %v1439
    %v1441 = vsel %vm1435, %v1438, %v1440
    %v1442 = vsel %vm1434, %v1421, %v1424
    %v1443 = vsel %vm1437, %v1430, 920167782
    %v1444 = vsel %vm1436, %v1427, %v1443
    %v1445 = vsel %vm1435, %v1442, %v1444
    %v1446 = vsel %vm1434, %v1424, %v1427
    %v1447 = vsel %vm1437, %v1433, 1326507024
    %v1448 = vsel %vm1436, %v1430, %v1447
    %v1449 = vsel %vm1435, %v1446, %v1448
    %v1450 = vshll.u32 %v1410, 8
    %v1451 = vmul.u32.u64.compose %v1450, %v1449
    %v1452 = vextract.low.u32 %v1451
    %v1453 = vextract.high.u32 %v1451
    %v1454 = vmul.u32.u64.compose %v1450, %v1445
    %v1455 = vextract.low.u32 %v1454
    %v1456 = vextract.high.u32 %v1454
    %v1457 = vmul.u32 %v1450, %v1441
    %v1458 = vadd.s32 %v1453, %v1455
    %vm1459 = vc.u32 %v1453, %v1455
    %v1460 = vadd.s32 %v1456, 1
    %v1461 = vsel %vm1459, %v1460, %v1456
    %v1462 = vadd.s32 %v1457, %v1461
    %v1463 = vadd.s32 %v1462, 536870912
    %v1464 = vshrl.u32 %v1463, 30
    %v1465 = vshll.u32 %v1464, 30
    %v1466 = vsub.s32 %v1462, %v1465
    %vm1467 = vcmp.lt.s32.totalorder %v1466, 0
    %v1468 = vsub.s32 0, %v1466
    %v1469 = vsel %vm1467, %v1468, %v1466
    %v1470 = vclz %v1469
    %v1471 = vsub.s32 %v1470, 2
    %vm1472 = vcmp.gt.s32.totalorder 0, %v1471
    %v1473 = vsel %vm1472, 0, %v1471
    %v1474 = vsub.s32 32, %v1473
    %v1475 = vshll.u32 %v1466, %v1473
    %v1476 = vshrl.u32 %v1458, %v1474
    %v1477 = vor.u32 %v1475, %v1476
    %v1478 = vsub.s32 4294967266, %v1473
    %v1479 = vadd.s32 %v1478, 127
    %v1480 = vshll.u32 %v1479, 23
    %v1481 = vor.u32 4788187, %v1480
    %v1482 = vand.u32 2147483647, %v1481
    %v1484 = vcvt.s32.f32 %v1477
    %v1485 = vmul.f32 %v1484, %v1482
    %v1486 = vxor.u32 %v1485, 2147483648
    %v1487 = vsel %vm1404, %v1486, %v1485
    %v1488 = vsub.s32 4, %v1464
    %v1489 = vsel %vm1404, %v1488, %v1464
    %v1490 = vsel %vm1403, %v883, %v1487
    %v1491 = vsel %vm1403, 0, %v1489
    %v1492 = vcosq.f32.pop %v1490
    %v1493 = vsinq.f32.pop %v1490
    %vm1494 = vweird.f32 %v883
    %v1495 = vadd.s32 %v1491, 3
    %v1496 = vand.u32 %v1495, 3
    %vm1497 = vcmp.lt.s32.totalorder %v1496, 2
    %vm1498 = vcmp.eq.s32.totalorder %v1496, 0
    %v1499 = vxor.u32 %v1493, 2147483648
    %v1500 = vsel %vm1498, %v1492, %v1499
    %vm1501 = vcmp.eq.s32.totalorder %v1496, 2
    %v1502 = vxor.u32 %v1492, 2147483648
    %v1503 = vsel %vm1501, %v1502, %v1493
    %v1504 = vsel %vm1497, %v1500, %v1503
    %v1505 = vsel %vm1494, nan, %v1504
    %v1506 = vand.u32 2147483647, %v884
    %vm1507 = vcmp.le.f32.partialorder %v1506, 0.7853982
    %vm1508 = vcmp.lt.s32.totalorder %v884, 0
    %v1509 = vand.u32 %v884, 2139095040
    %v1510 = vshrl.u32 %v1509, 23
    %v1511 = vsub.s32 %v1510, 127
    %v1512 = vand.u32 2147483647, %v884
    %v1513 = vand.u32 %v1512, 8388607
    %v1514 = vor.u32 %v1513, 8388608
    %v1515 = vsub.s32 0, %v1514
    %v1516 = vadd.s32 %v1511, 1
    %vm1517 = vcmp.gt.s32.totalorder %v1516, 0
    %v1518 = vsel %vm1517, %v1516, 0
    %v1519 = vshrl.u32 %v1518, 5
    %v1520 = vand.u32 %v1518, 31
    %v1521 = vsub.s32 32, %v1520
    %v1522 = vshrl.u32 683565275, %v1521
    %v1523 = vshll.u32 683565275, %v1520
    %v1524 = vshrl.u32 2475754826, %v1521
    %v1525 = vor.u32 %v1523, %v1524
    %v1526 = vshll.u32 2475754826, %v1520
    %v1527 = vshrl.u32 2131351028, %v1521
    %v1528 = vor.u32 %v1526, %v1527
    %v1529 = vshll.u32 2131351028, %v1520
    %v1530 = vshrl.u32 2102212464, %v1521
    %v1531 = vor.u32 %v1529, %v1530
    %v1532 = vshll.u32 2102212464, %v1520
    %v1533 = vshrl.u32 920167782, %v1521
    %v1534 = vor.u32 %v1532, %v1533
    %v1535 = vshll.u32 920167782, %v1520
    %v1536 = vshrl.u32 1326507024, %v1521
    %v1537 = vor.u32 %v1535, %v1536
    %vm1538 = vcmp.lt.s32.totalorder %v1519, 1
    %vm1539 = vcmp.lt.s32.totalorder %v1519, 2
    %vm1540 = vcmp.lt.s32.totalorder %v1519, 3
    %vm1541 = vcmp.lt.s32.totalorder %v1519, 4
    %v1542 = vsel %vm1538, %v1522, %v1525
    %v1543 = vsel %vm1541, %v1531, 2102212464
    %v1544 = vsel %vm1540, %v1528, %v1543
    %v1545 = vsel %vm1539, %v1542, %v1544
    %v1546 = vsel %vm1538, %v1525, %v1528
    %v1547 = vsel %vm1541, %v1534, 920167782
    %v1548 = vsel %vm1540, %v1531, %v1547
    %v1549 = vsel %vm1539, %v1546, %v1548
    %v1550 = vsel %vm1538, %v1528, %v1531
    %v1551 = vsel %vm1541, %v1537, 1326507024
    %v1552 = vsel %vm1540, %v1534, %v1551
    %v1553 = vsel %vm1539, %v1550, %v1552
    %v1554 = vshll.u32 %v1514, 8
    %v1555 = vmul.u32.u64.compose %v1554, %v1553
    %v1556 = vextract.low.u32 %v1555
    %v1557 = vextract.high.u32 %v1555
    %v1558 = vmul.u32.u64.compose %v1554, %v1549
    %v1559 = vextract.low.u32 %v1558
    %v1560 = vextract.high.u32 %v1558
    %v1561 = vmul.u32 %v1554, %v1545
    %v1562 = vadd.s32 %v1557, %v1559
    %vm1563 = vc.u32 %v1557, %v1559
    %v1564 = vadd.s32 %v1560, 1
    %v1565 = vsel %vm1563, %v1564, %v1560
    %v1566 = vadd.s32 %v1561, %v1565
    %v1567 = vadd.s32 %v1566, 536870912
    %v1568 = vshrl.u32 %v1567, 30
    %v1569 = vshll.u32 %v1568, 30
    %v1570 = vsub.s32 %v1566, %v1569
    %vm1571 = vcmp.lt.s32.totalorder %v1570, 0
    %v1572 = vsub.s32 0, %v1570
    %v1573 = vsel %vm1571, %v1572, %v1570
    %v1574 = vclz %v1573
    %v1575 = vsub.s32 %v1574, 2
    %vm1576 = vcmp.gt.s32.totalorder 0, %v1575
    %v1577 = vsel %vm1576, 0, %v1575
    %v1578 = vsub.s32 32, %v1577
    %v1579 = vshll.u32 %v1570, %v1577
    %v1580 = vshrl.u32 %v1562, %v1578
    %v1581 = vor.u32 %v1579, %v1580
    %v1582 = vsub.s32 4294967266, %v1577
    %v1583 = vadd.s32 %v1582, 127
    %v1584 = vshll.u32 %v1583, 23
    %v1585 = vor.u32 4788187, %v1584
    %v1586 = vand.u32 2147483647, %v1585
    %v1588 = vcvt.s32.f32 %v1581
    %v1589 = vmul.f32 %v1588, %v1586
    %v1590 = vxor.u32 %v1589, 2147483648
    %v1591 = vsel %vm1508, %v1590, %v1589
    %v1592 = vsub.s32 4, %v1568
    %v1593 = vsel %vm1508, %v1592, %v1568
    %v1594 = vsel %vm1507, %v884, %v1591
    %v1595 = vsel %vm1507, 0, %v1593
    %v1596 = vcosq.f32.pop %v1594
    %v1597 = vsinq.f32.pop %v1594
    %vm1598 = vweird.f32 %v884
    %v1599 = vadd.s32 %v1595, 3
    %v1600 = vand.u32 %v1599, 3
    %vm1601 = vcmp.lt.s32.totalorder %v1600, 2
    %vm1602 = vcmp.eq.s32.totalorder %v1600, 0
    %v1603 = vxor.u32 %v1597, 2147483648
    %v1604 = vsel %vm1602, %v1596, %v1603
    %vm1605 = vcmp.eq.s32.totalorder %v1600, 2
    %v1606 = vxor.u32 %v1596, 2147483648
    %v1607 = vsel %vm1605, %v1606, %v1597
    %v1608 = vsel %vm1601, %v1604, %v1607
    %v1609 = vsel %vm1598, nan, %v1608
    %v1610 = vand.u32 2147483647, %v885
    %vm1611 = vcmp.le.f32.partialorder %v1610, 0.7853982
    %vm1612 = vcmp.lt.s32.totalorder %v885, 0
    %v1613 = vand.u32 %v885, 2139095040
    %v1614 = vshrl.u32 %v1613, 23
    %v1615 = vsub.s32 %v1614, 127
    %v1616 = vand.u32 2147483647, %v885
    %v1617 = vand.u32 %v1616, 8388607
    %v1618 = vor.u32 %v1617, 8388608
    %v1619 = vsub.s32 0, %v1618
    %v1620 = vadd.s32 %v1615, 1
    %vm1621 = vcmp.gt.s32.totalorder %v1620, 0
    %v1622 = vsel %vm1621, %v1620, 0
    %v1623 = vshrl.u32 %v1622, 5
    %v1624 = vand.u32 %v1622, 31
    %v1625 = vsub.s32 32, %v1624
    %v1626 = vshrl.u32 683565275, %v1625
    %v1627 = vshll.u32 683565275, %v1624
    %v1628 = vshrl.u32 2475754826, %v1625
    %v1629 = vor.u32 %v1627, %v1628
    %v1630 = vshll.u32 2475754826, %v1624
    %v1631 = vshrl.u32 2131351028, %v1625
    %v1632 = vor.u32 %v1630, %v1631
    %v1633 = vshll.u32 2131351028, %v1624
    %v1634 = vshrl.u32 2102212464, %v1625
    %v1635 = vor.u32 %v1633, %v1634
    %v1636 = vshll.u32 2102212464, %v1624
    %v1637 = vshrl.u32 920167782, %v1625
    %v1638 = vor.u32 %v1636, %v1637
    %v1639 = vshll.u32 920167782, %v1624
    %v1640 = vshrl.u32 1326507024, %v1625
    %v1641 = vor.u32 %v1639, %v1640
    %vm1642 = vcmp.lt.s32.totalorder %v1623, 1
    %vm1643 = vcmp.lt.s32.totalorder %v1623, 2
    %vm1644 = vcmp.lt.s32.totalorder %v1623, 3
    %vm1645 = vcmp.lt.s32.totalorder %v1623, 4
    %v1646 = vsel %vm1642, %v1626, %v1629
    %v1647 = vsel %vm1645, %v1635, 2102212464
    %v1648 = vsel %vm1644, %v1632, %v1647
    %v1649 = vsel %vm1643, %v1646, %v1648
    %v1650 = vsel %vm1642, %v1629, %v1632
    %v1651 = vsel %vm1645, %v1638, 920167782
    %v1652 = vsel %vm1644, %v1635, %v1651
    %v1653 = vsel %vm1643, %v1650, %v1652
    %v1654 = vsel %vm1642, %v1632, %v1635
    %v1655 = vsel %vm1645, %v1641, 1326507024
    %v1656 = vsel %vm1644, %v1638, %v1655
    %v1657 = vsel %vm1643, %v1654, %v1656
    %v1658 = vshll.u32 %v1618, 8
    %v1659 = vmul.u32.u64.compose %v1658, %v1657
    %v1660 = vextract.low.u32 %v1659
    %v1661 = vextract.high.u32 %v1659
    %v1662 = vmul.u32.u64.compose %v1658, %v1653
    %v1663 = vextract.low.u32 %v1662
    %v1664 = vextract.high.u32 %v1662
    %v1665 = vmul.u32 %v1658, %v1649
    %v1666 = vadd.s32 %v1661, %v1663
    %vm1667 = vc.u32 %v1661, %v1663
    %v1668 = vadd.s32 %v1664, 1
    %v1669 = vsel %vm1667, %v1668, %v1664
    %v1670 = vadd.s32 %v1665, %v1669
    %v1671 = vadd.s32 %v1670, 536870912
    %v1672 = vshrl.u32 %v1671, 30
    %v1673 = vshll.u32 %v1672, 30
    %v1674 = vsub.s32 %v1670, %v1673
    %vm1675 = vcmp.lt.s32.totalorder %v1674, 0
    %v1676 = vsub.s32 0, %v1674
    %v1677 = vsel %vm1675, %v1676, %v1674
    %v1678 = vclz %v1677
    %v1679 = vsub.s32 %v1678, 2
    %vm1680 = vcmp.gt.s32.totalorder 0, %v1679
    %v1681 = vsel %vm1680, 0, %v1679
    %v1682 = vsub.s32 32, %v1681
    %v1683 = vshll.u32 %v1674, %v1681
    %v1684 = vshrl.u32 %v1666, %v1682
    %v1685 = vor.u32 %v1683, %v1684
    %v1686 = vsub.s32 4294967266, %v1681
    %v1687 = vadd.s32 %v1686, 127
    %v1688 = vshll.u32 %v1687, 23
    %v1689 = vor.u32 4788187, %v1688
    %v1690 = vand.u32 2147483647, %v1689
    %v1692 = vcvt.s32.f32 %v1685
    %v1693 = vmul.f32 %v1692, %v1690
    %v1694 = vxor.u32 %v1693, 2147483648
    %v1695 = vsel %vm1612, %v1694, %v1693
    %v1696 = vsub.s32 4, %v1672
    %v1697 = vsel %vm1612, %v1696, %v1672
    %v1698 = vsel %vm1611, %v885, %v1695
    %v1699 = vsel %vm1611, 0, %v1697
    %v1700 = vcosq.f32.pop %v1698
    %v1701 = vsinq.f32.pop %v1698
    %vm1702 = vweird.f32 %v885
    %v1703 = vadd.s32 %v1699, 3
    %v1704 = vand.u32 %v1703, 3
    %vm1705 = vcmp.lt.s32.totalorder %v1704, 2
    %vm1706 = vcmp.eq.s32.totalorder %v1704, 0
    %v1707 = vxor.u32 %v1701, 2147483648
    %v1708 = vsel %vm1706, %v1700, %v1707
    %vm1709 = vcmp.eq.s32.totalorder %v1704, 2
    %v1710 = vxor.u32 %v1700, 2147483648
    %v1711 = vsel %vm1709, %v1710, %v1701
    %v1712 = vsel %vm1705, %v1708, %v1711
    %v1713 = vsel %vm1702, nan, %v1712
    %v1714 = vsub.f32 %v26, %v867
    %v1715 = vsub.f32 %v27, %v869
    %v1716 = vsub.f32 %v28, %v871
    %v1717 = vsub.f32 %v29, %v873
    %v1718 = vmul.f32 %v1714, 0.5
    %v1719 = vmul.f32 %v1715, 0.5
    %v1720 = vmul.f32 %v1716, 0.5
    %v1721 = vmul.f32 %v1717, 0.5
    %v1722 = vand.u32 2147483647, %v1718
    %vm1723 = vcmp.le.f32.partialorder %v1722, 0.7853982
    %vm1724 = vcmp.lt.s32.totalorder %v1718, 0
    %v1725 = vand.u32 %v1718, 2139095040
    %v1726 = vshrl.u32 %v1725, 23
    %v1727 = vsub.s32 %v1726, 127
    %v1728 = vand.u32 2147483647, %v1718
    %v1729 = vand.u32 %v1728, 8388607
    %v1730 = vor.u32 %v1729, 8388608
    %v1731 = vsub.s32 0, %v1730
    %v1732 = vadd.s32 %v1727, 1
    %vm1733 = vcmp.gt.s32.totalorder %v1732, 0
    %v1734 = vsel %vm1733, %v1732, 0
    %v1735 = vshrl.u32 %v1734, 5
    %v1736 = vand.u32 %v1734, 31
    %v1737 = vsub.s32 32, %v1736
    %v1738 = vshrl.u32 683565275, %v1737
    %v1739 = vshll.u32 683565275, %v1736
    %v1740 = vshrl.u32 2475754826, %v1737
    %v1741 = vor.u32 %v1739, %v1740
    %v1742 = vshll.u32 2475754826, %v1736
    %v1743 = vshrl.u32 2131351028, %v1737
    %v1744 = vor.u32 %v1742, %v1743
    %v1745 = vshll.u32 2131351028, %v1736
    %v1746 = vshrl.u32 2102212464, %v1737
    %v1747 = vor.u32 %v1745, %v1746
    %v1748 = vshll.u32 2102212464, %v1736
    %v1749 = vshrl.u32 920167782, %v1737
    %v1750 = vor.u32 %v1748, %v1749
    %v1751 = vshll.u32 920167782, %v1736
    %v1752 = vshrl.u32 1326507024, %v1737
    %v1753 = vor.u32 %v1751, %v1752
    %vm1754 = vcmp.lt.s32.totalorder %v1735, 1
    %vm1755 = vcmp.lt.s32.totalorder %v1735, 2
    %vm1756 = vcmp.lt.s32.totalorder %v1735, 3
    %vm1757 = vcmp.lt.s32.totalorder %v1735, 4
    %v1758 = vsel %vm1754, %v1738, %v1741
    %v1759 = vsel %vm1757, %v1747, 2102212464
    %v1760 = vsel %vm1756, %v1744, %v1759
    %v1761 = vsel %vm1755, %v1758, %v1760
    %v1762 = vsel %vm1754, %v1741, %v1744
    %v1763 = vsel %vm1757, %v1750, 920167782
    %v1764 = vsel %vm1756, %v1747, %v1763
    %v1765 = vsel %vm1755, %v1762, %v1764
    %v1766 = vsel %vm1754, %v1744, %v1747
    %v1767 = vsel %vm1757, %v1753, 1326507024
    %v1768 = vsel %vm1756, %v1750, %v1767
    %v1769 = vsel %vm1755, %v1766, %v1768
    %v1770 = vshll.u32 %v1730, 8
    %v1771 = vmul.u32.u64.compose %v1770, %v1769
    %v1772 = vextract.low.u32 %v1771
    %v1773 = vextract.high.u32 %v1771
    %v1774 = vmul.u32.u64.compose %v1770, %v1765
    %v1775 = vextract.low.u32 %v1774
    %v1776 = vextract.high.u32 %v1774
    %v1777 = vmul.u32 %v1770, %v1761
    %v1778 = vadd.s32 %v1773, %v1775
    %vm1779 = vc.u32 %v1773, %v1775
    %v1780 = vadd.s32 %v1776, 1
    %v1781 = vsel %vm1779, %v1780, %v1776
    %v1782 = vadd.s32 %v1777, %v1781
    %v1783 = vadd.s32 %v1782, 536870912
    %v1784 = vshrl.u32 %v1783, 30
    %v1785 = vshll.u32 %v1784, 30
    %v1786 = vsub.s32 %v1782, %v1785
    %vm1787 = vcmp.lt.s32.totalorder %v1786, 0
    %v1788 = vsub.s32 0, %v1786
    %v1789 = vsel %vm1787, %v1788, %v1786
    %v1790 = vclz %v1789
    %v1791 = vsub.s32 %v1790, 2
    %vm1792 = vcmp.gt.s32.totalorder 0, %v1791
    %v1793 = vsel %vm1792, 0, %v1791
    %v1794 = vsub.s32 32, %v1793
    %v1795 = vshll.u32 %v1786, %v1793
    %v1796 = vshrl.u32 %v1778, %v1794
    %v1797 = vor.u32 %v1795, %v1796
    %v1798 = vsub.s32 4294967266, %v1793
    %v1799 = vadd.s32 %v1798, 127
    %v1800 = vshll.u32 %v1799, 23
    %v1801 = vor.u32 4788187, %v1800
    %v1802 = vand.u32 2147483647, %v1801
    %v1804 = vcvt.s32.f32 %v1797
    %v1805 = vmul.f32 %v1804, %v1802
    %v1806 = vxor.u32 %v1805, 2147483648
    %v1807 = vsel %vm1724, %v1806, %v1805
    %v1808 = vsub.s32 4, %v1784
    %v1809 = vsel %vm1724, %v1808, %v1784
    %v1810 = vsel %vm1723, %v1718, %v1807
    %v1811 = vsel %vm1723, 0, %v1809
    %v1812 = vcosq.f32.pop %v1810
    %v1813 = vsinq.f32.pop %v1810
    %vm1814 = vweird.f32 %v1718
    %v1815 = vand.u32 %v1811, 3
    %vm1816 = vcmp.lt.s32.totalorder %v1815, 2
    %vm1817 = vcmp.eq.s32.totalorder %v1815, 0
    %v1818 = vxor.u32 %v1813, 2147483648
    %v1819 = vsel %vm1817, %v1812, %v1818
    %vm1820 = vcmp.eq.s32.totalorder %v1815, 2
    %v1821 = vxor.u32 %v1812, 2147483648
    %v1822 = vsel %vm1820, %v1821, %v1813
    %v1823 = vsel %vm1816, %v1819, %v1822
    %v1824 = vsel %vm1814, nan, %v1823
    %v1825 = vand.u32 2147483647, %v1719
    %vm1826 = vcmp.le.f32.partialorder %v1825, 0.7853982
    %vm1827 = vcmp.lt.s32.totalorder %v1719, 0
    %v1828 = vand.u32 %v1719, 2139095040
    %v1829 = vshrl.u32 %v1828, 23
    %v1830 = vsub.s32 %v1829, 127
    %v1831 = vand.u32 2147483647, %v1719
    %v1832 = vand.u32 %v1831, 8388607
    %v1833 = vor.u32 %v1832, 8388608
    %v1834 = vsub.s32 0, %v1833
    %v1835 = vadd.s32 %v1830, 1
    %vm1836 = vcmp.gt.s32.totalorder %v1835, 0
    %v1837 = vsel %vm1836, %v1835, 0
    %v1838 = vshrl.u32 %v1837, 5
    %v1839 = vand.u32 %v1837, 31
    %v1840 = vsub.s32 32, %v1839
    %v1841 = vshrl.u32 683565275, %v1840
    %v1842 = vshll.u32 683565275, %v1839
    %v1843 = vshrl.u32 2475754826, %v1840
    %v1844 = vor.u32 %v1842, %v1843
    %v1845 = vshll.u32 2475754826, %v1839
    %v1846 = vshrl.u32 2131351028, %v1840
    %v1847 = vor.u32 %v1845, %v1846
    %v1848 = vshll.u32 2131351028, %v1839
    %v1849 = vshrl.u32 2102212464, %v1840
    %v1850 = vor.u32 %v1848, %v1849
    %v1851 = vshll.u32 2102212464, %v1839
    %v1852 = vshrl.u32 920167782, %v1840
    %v1853 = vor.u32 %v1851, %v1852
    %v1854 = vshll.u32 920167782, %v1839
    %v1855 = vshrl.u32 1326507024, %v1840
    %v1856 = vor.u32 %v1854, %v1855
    %vm1857 = vcmp.lt.s32.totalorder %v1838, 1
    %vm1858 = vcmp.lt.s32.totalorder %v1838, 2
    %vm1859 = vcmp.lt.s32.totalorder %v1838, 3
    %vm1860 = vcmp.lt.s32.totalorder %v1838, 4
    %v1861 = vsel %vm1857, %v1841, %v1844
    %v1862 = vsel %vm1860, %v1850, 2102212464
    %v1863 = vsel %vm1859, %v1847, %v1862
    %v1864 = vsel %vm1858, %v1861, %v1863
    %v1865 = vsel %vm1857, %v1844, %v1847
    %v1866 = vsel %vm1860, %v1853, 920167782
    %v1867 = vsel %vm1859, %v1850, %v1866
    %v1868 = vsel %vm1858, %v1865, %v1867
    %v1869 = vsel %vm1857, %v1847, %v1850
    %v1870 = vsel %vm1860, %v1856, 1326507024
    %v1871 = vsel %vm1859, %v1853, %v1870
    %v1872 = vsel %vm1858, %v1869, %v1871
    %v1873 = vshll.u32 %v1833, 8
    %v1874 = vmul.u32.u64.compose %v1873, %v1872
    %v1875 = vextract.low.u32 %v1874
    %v1876 = vextract.high.u32 %v1874
    %v1877 = vmul.u32.u64.compose %v1873, %v1868
    %v1878 = vextract.low.u32 %v1877
    %v1879 = vextract.high.u32 %v1877
    %v1880 = vmul.u32 %v1873, %v1864
    %v1881 = vadd.s32 %v1876, %v1878
    %vm1882 = vc.u32 %v1876, %v1878
    %v1883 = vadd.s32 %v1879, 1
    %v1884 = vsel %vm1882, %v1883, %v1879
    %v1885 = vadd.s32 %v1880, %v1884
    %v1886 = vadd.s32 %v1885, 536870912
    %v1887 = vshrl.u32 %v1886, 30
    %v1888 = vshll.u32 %v1887, 30
    %v1889 = vsub.s32 %v1885, %v1888
    %vm1890 = vcmp.lt.s32.totalorder %v1889, 0
    %v1891 = vsub.s32 0, %v1889
    %v1892 = vsel %vm1890, %v1891, %v1889
    %v1893 = vclz %v1892
    %v1894 = vsub.s32 %v1893, 2
    %vm1895 = vcmp.gt.s32.totalorder 0, %v1894
    %v1896 = vsel %vm1895, 0, %v1894
    %v1897 = vsub.s32 32, %v1896
    %v1898 = vshll.u32 %v1889, %v1896
    %v1899 = vshrl.u32 %v1881, %v1897
    %v1900 = vor.u32 %v1898, %v1899
    %v1901 = vsub.s32 4294967266, %v1896
    %v1902 = vadd.s32 %v1901, 127
    %v1903 = vshll.u32 %v1902, 23
    %v1904 = vor.u32 4788187, %v1903
    %v1905 = vand.u32 2147483647, %v1904
    %v1907 = vcvt.s32.f32 %v1900
    %v1908 = vmul.f32 %v1907, %v1905
    %v1909 = vxor.u32 %v1908, 2147483648
    %v1910 = vsel %vm1827, %v1909, %v1908
    %v1911 = vsub.s32 4, %v1887
    %v1912 = vsel %vm1827, %v1911, %v1887
    %v1913 = vsel %vm1826, %v1719, %v1910
    %v1914 = vsel %vm1826, 0, %v1912
    %v1915 = vcosq.f32.pop %v1913
    %v1916 = vsinq.f32.pop %v1913
    %vm1917 = vweird.f32 %v1719
    %v1918 = vand.u32 %v1914, 3
    %vm1919 = vcmp.lt.s32.totalorder %v1918, 2
    %vm1920 = vcmp.eq.s32.totalorder %v1918, 0
    %v1921 = vxor.u32 %v1916, 2147483648
    %v1922 = vsel %vm1920, %v1915, %v1921
    %vm1923 = vcmp.eq.s32.totalorder %v1918, 2
    %v1924 = vxor.u32 %v1915, 2147483648
    %v1925 = vsel %vm1923, %v1924, %v1916
    %v1926 = vsel %vm1919, %v1922, %v1925
    %v1927 = vsel %vm1917, nan, %v1926
    %v1928 = vand.u32 2147483647, %v1720
    %vm1929 = vcmp.le.f32.partialorder %v1928, 0.7853982
    %vm1930 = vcmp.lt.s32.totalorder %v1720, 0
    %v1931 = vand.u32 %v1720, 2139095040
    %v1932 = vshrl.u32 %v1931, 23
    %v1933 = vsub.s32 %v1932, 127
    %v1934 = vand.u32 2147483647, %v1720
    %v1935 = vand.u32 %v1934, 8388607
    %v1936 = vor.u32 %v1935, 8388608
    %v1937 = vsub.s32 0, %v1936
    %v1938 = vadd.s32 %v1933, 1
    %vm1939 = vcmp.gt.s32.totalorder %v1938, 0
    %v1940 = vsel %vm1939, %v1938, 0
    %v1941 = vshrl.u32 %v1940, 5
    %v1942 = vand.u32 %v1940, 31
    %v1943 = vsub.s32 32, %v1942
    %v1944 = vshrl.u32 683565275, %v1943
    %v1945 = vshll.u32 683565275, %v1942
    %v1946 = vshrl.u32 2475754826, %v1943
    %v1947 = vor.u32 %v1945, %v1946
    %v1948 = vshll.u32 2475754826, %v1942
    %v1949 = vshrl.u32 2131351028, %v1943
    %v1950 = vor.u32 %v1948, %v1949
    %v1951 = vshll.u32 2131351028, %v1942
    %v1952 = vshrl.u32 2102212464, %v1943
    %v1953 = vor.u32 %v1951, %v1952
    %v1954 = vshll.u32 2102212464, %v1942
    %v1955 = vshrl.u32 920167782, %v1943
    %v1956 = vor.u32 %v1954, %v1955
    %v1957 = vshll.u32 920167782, %v1942
    %v1958 = vshrl.u32 1326507024, %v1943
    %v1959 = vor.u32 %v1957, %v1958
    %vm1960 = vcmp.lt.s32.totalorder %v1941, 1
    %vm1961 = vcmp.lt.s32.totalorder %v1941, 2
    %vm1962 = vcmp.lt.s32.totalorder %v1941, 3
    %vm1963 = vcmp.lt.s32.totalorder %v1941, 4
    %v1964 = vsel %vm1960, %v1944, %v1947
    %v1965 = vsel %vm1963, %v1953, 2102212464
    %v1966 = vsel %vm1962, %v1950, %v1965
    %v1967 = vsel %vm1961, %v1964, %v1966
    %v1968 = vsel %vm1960, %v1947, %v1950
    %v1969 = vsel %vm1963, %v1956, 920167782
    %v1970 = vsel %vm1962, %v1953, %v1969
    %v1971 = vsel %vm1961, %v1968, %v1970
    %v1972 = vsel %vm1960, %v1950, %v1953
    %v1973 = vsel %vm1963, %v1959, 1326507024
    %v1974 = vsel %vm1962, %v1956, %v1973
    %v1975 = vsel %vm1961, %v1972, %v1974
    %v1976 = vshll.u32 %v1936, 8
    %v1977 = vmul.u32.u64.compose %v1976, %v1975
    %v1978 = vextract.low.u32 %v1977
    %v1979 = vextract.high.u32 %v1977
    %v1980 = vmul.u32.u64.compose %v1976, %v1971
    %v1981 = vextract.low.u32 %v1980
    %v1982 = vextract.high.u32 %v1980
    %v1983 = vmul.u32 %v1976, %v1967
    %v1984 = vadd.s32 %v1979, %v1981
    %vm1985 = vc.u32 %v1979, %v1981
    %v1986 = vadd.s32 %v1982, 1
    %v1987 = vsel %vm1985, %v1986, %v1982
    %v1988 = vadd.s32 %v1983, %v1987
    %v1989 = vadd.s32 %v1988, 536870912
    %v1990 = vshrl.u32 %v1989, 30
    %v1991 = vshll.u32 %v1990, 30
    %v1992 = vsub.s32 %v1988, %v1991
    %vm1993 = vcmp.lt.s32.totalorder %v1992, 0
    %v1994 = vsub.s32 0, %v1992
    %v1995 = vsel %vm1993, %v1994, %v1992
    %v1996 = vclz %v1995
    %v1997 = vsub.s32 %v1996, 2
    %vm1998 = vcmp.gt.s32.totalorder 0, %v1997
    %v1999 = vsel %vm1998, 0, %v1997
    %v2000 = vsub.s32 32, %v1999
    %v2001 = vshll.u32 %v1992, %v1999
    %v2002 = vshrl.u32 %v1984, %v2000
    %v2003 = vor.u32 %v2001, %v2002
    %v2004 = vsub.s32 4294967266, %v1999
    %v2005 = vadd.s32 %v2004, 127
    %v2006 = vshll.u32 %v2005, 23
    %v2007 = vor.u32 4788187, %v2006
    %v2008 = vand.u32 2147483647, %v2007
    %v2010 = vcvt.s32.f32 %v2003
    %v2011 = vmul.f32 %v2010, %v2008
    %v2012 = vxor.u32 %v2011, 2147483648
    %v2013 = vsel %vm1930, %v2012, %v2011
    %v2014 = vsub.s32 4, %v1990
    %v2015 = vsel %vm1930, %v2014, %v1990
    %v2016 = vsel %vm1929, %v1720, %v2013
    %v2017 = vsel %vm1929, 0, %v2015
    %v2018 = vcosq.f32.pop %v2016
    %v2019 = vsinq.f32.pop %v2016
    %vm2020 = vweird.f32 %v1720
    %v2021 = vand.u32 %v2017, 3
    %vm2022 = vcmp.lt.s32.totalorder %v2021, 2
    %vm2023 = vcmp.eq.s32.totalorder %v2021, 0
    %v2024 = vxor.u32 %v2019, 2147483648
    %v2025 = vsel %vm2023, %v2018, %v2024
    %vm2026 = vcmp.eq.s32.totalorder %v2021, 2
    %v2027 = vxor.u32 %v2018, 2147483648
    %v2028 = vsel %vm2026, %v2027, %v2019
    %v2029 = vsel %vm2022, %v2025, %v2028
    %v2030 = vsel %vm2020, nan, %v2029
    %v2031 = vand.u32 2147483647, %v1721
    %vm2032 = vcmp.le.f32.partialorder %v2031, 0.7853982
    %vm2033 = vcmp.lt.s32.totalorder %v1721, 0
    %v2034 = vand.u32 %v1721, 2139095040
    %v2035 = vshrl.u32 %v2034, 23
    %v2036 = vsub.s32 %v2035, 127
    %v2037 = vand.u32 2147483647, %v1721
    %v2038 = vand.u32 %v2037, 8388607
    %v2039 = vor.u32 %v2038, 8388608
    %v2040 = vsub.s32 0, %v2039
    %v2041 = vadd.s32 %v2036, 1
    %vm2042 = vcmp.gt.s32.totalorder %v2041, 0
    %v2043 = vsel %vm2042, %v2041, 0
    %v2044 = vshrl.u32 %v2043, 5
    %v2045 = vand.u32 %v2043, 31
    %v2046 = vsub.s32 32, %v2045
    %v2047 = vshrl.u32 683565275, %v2046
    %v2048 = vshll.u32 683565275, %v2045
    %v2049 = vshrl.u32 2475754826, %v2046
    %v2050 = vor.u32 %v2048, %v2049
    %v2051 = vshll.u32 2475754826, %v2045
    %v2052 = vshrl.u32 2131351028, %v2046
    %v2053 = vor.u32 %v2051, %v2052
    %v2054 = vshll.u32 2131351028, %v2045
    %v2055 = vshrl.u32 2102212464, %v2046
    %v2056 = vor.u32 %v2054, %v2055
    %v2057 = vshll.u32 2102212464, %v2045
    %v2058 = vshrl.u32 920167782, %v2046
    %v2059 = vor.u32 %v2057, %v2058
    %v2060 = vshll.u32 920167782, %v2045
    %v2061 = vshrl.u32 1326507024, %v2046
    %v2062 = vor.u32 %v2060, %v2061
    %vm2063 = vcmp.lt.s32.totalorder %v2044, 1
    %vm2064 = vcmp.lt.s32.totalorder %v2044, 2
    %vm2065 = vcmp.lt.s32.totalorder %v2044, 3
    %vm2066 = vcmp.lt.s32.totalorder %v2044, 4
    %v2067 = vsel %vm2063, %v2047, %v2050
    %v2068 = vsel %vm2066, %v2056, 2102212464
    %v2069 = vsel %vm2065, %v2053, %v2068
    %v2070 = vsel %vm2064, %v2067, %v2069
    %v2071 = vsel %vm2063, %v2050, %v2053
    %v2072 = vsel %vm2066, %v2059, 920167782
    %v2073 = vsel %vm2065, %v2056, %v2072
    %v2074 = vsel %vm2064, %v2071, %v2073
    %v2075 = vsel %vm2063, %v2053, %v2056
    %v2076 = vsel %vm2066, %v2062, 1326507024
    %v2077 = vsel %vm2065, %v2059, %v2076
    %v2078 = vsel %vm2064, %v2075, %v2077
    %v2079 = vshll.u32 %v2039, 8
    %v2080 = vmul.u32.u64.compose %v2079, %v2078
    %v2081 = vextract.low.u32 %v2080
    %v2082 = vextract.high.u32 %v2080
    %v2083 = vmul.u32.u64.compose %v2079, %v2074
    %v2084 = vextract.low.u32 %v2083
    %v2085 = vextract.high.u32 %v2083
    %v2086 = vmul.u32 %v2079, %v2070
    %v2087 = vadd.s32 %v2082, %v2084
    %vm2088 = vc.u32 %v2082, %v2084
    %v2089 = vadd.s32 %v2085, 1
    %v2090 = vsel %vm2088, %v2089, %v2085
    %v2091 = vadd.s32 %v2086, %v2090
    %v2092 = vadd.s32 %v2091, 536870912
    %v2093 = vshrl.u32 %v2092, 30
    %v2094 = vshll.u32 %v2093, 30
    %v2095 = vsub.s32 %v2091, %v2094
    %vm2096 = vcmp.lt.s32.totalorder %v2095, 0
    %v2097 = vsub.s32 0, %v2095
    %v2098 = vsel %vm2096, %v2097, %v2095
    %v2099 = vclz %v2098
    %v2100 = vsub.s32 %v2099, 2
    %vm2101 = vcmp.gt.s32.totalorder 0, %v2100
    %v2102 = vsel %vm2101, 0, %v2100
    %v2103 = vsub.s32 32, %v2102
    %v2104 = vshll.u32 %v2095, %v2102
    %v2105 = vshrl.u32 %v2087, %v2103
    %v2106 = vor.u32 %v2104, %v2105
    %v2107 = vsub.s32 4294967266, %v2102
    %v2108 = vadd.s32 %v2107, 127
    %v2109 = vshll.u32 %v2108, 23
    %v2110 = vor.u32 4788187, %v2109
    %v2111 = vand.u32 2147483647, %v2110
    %v2113 = vcvt.s32.f32 %v2106
    %v2114 = vmul.f32 %v2113, %v2111
    %v2115 = vxor.u32 %v2114, 2147483648
    %v2116 = vsel %vm2033, %v2115, %v2114
    %v2117 = vsub.s32 4, %v2093
    %v2118 = vsel %vm2033, %v2117, %v2093
    %v2119 = vsel %vm2032, %v1721, %v2116
    %v2120 = vsel %vm2032, 0, %v2118
    %v2121 = vcosq.f32.pop %v2119
    %v2122 = vsinq.f32.pop %v2119
    %vm2123 = vweird.f32 %v1721
    %v2124 = vand.u32 %v2120, 3
    %vm2125 = vcmp.lt.s32.totalorder %v2124, 2
    %vm2126 = vcmp.eq.s32.totalorder %v2124, 0
    %v2127 = vxor.u32 %v2122, 2147483648
    %v2128 = vsel %vm2126, %v2121, %v2127
    %vm2129 = vcmp.eq.s32.totalorder %v2124, 2
    %v2130 = vxor.u32 %v2121, 2147483648
    %v2131 = vsel %vm2129, %v2130, %v2122
    %v2132 = vsel %vm2125, %v2128, %v2131
    %v2133 = vsel %vm2123, nan, %v2132
    %v2134 = vand.u32 2147483647, %v1718
    %vm2135 = vcmp.le.f32.partialorder %v2134, 0.7853982
    %vm2136 = vcmp.lt.s32.totalorder %v1718, 0
    %v2137 = vand.u32 %v1718, 2139095040
    %v2138 = vshrl.u32 %v2137, 23
    %v2139 = vsub.s32 %v2138, 127
    %v2140 = vand.u32 2147483647, %v1718
    %v2141 = vand.u32 %v2140, 8388607
    %v2142 = vor.u32 %v2141, 8388608
    %v2143 = vsub.s32 0, %v2142
    %v2144 = vadd.s32 %v2139, 1
    %vm2145 = vcmp.gt.s32.totalorder %v2144, 0
    %v2146 = vsel %vm2145, %v2144, 0
    %v2147 = vshrl.u32 %v2146, 5
    %v2148 = vand.u32 %v2146, 31
    %v2149 = vsub.s32 32, %v2148
    %v2150 = vshrl.u32 683565275, %v2149
    %v2151 = vshll.u32 683565275, %v2148
    %v2152 = vshrl.u32 2475754826, %v2149
    %v2153 = vor.u32 %v2151, %v2152
    %v2154 = vshll.u32 2475754826, %v2148
    %v2155 = vshrl.u32 2131351028, %v2149
    %v2156 = vor.u32 %v2154, %v2155
    %v2157 = vshll.u32 2131351028, %v2148
    %v2158 = vshrl.u32 2102212464, %v2149
    %v2159 = vor.u32 %v2157, %v2158
    %v2160 = vshll.u32 2102212464, %v2148
    %v2161 = vshrl.u32 920167782, %v2149
    %v2162 = vor.u32 %v2160, %v2161
    %v2163 = vshll.u32 920167782, %v2148
    %v2164 = vshrl.u32 1326507024, %v2149
    %v2165 = vor.u32 %v2163, %v2164
    %vm2166 = vcmp.lt.s32.totalorder %v2147, 1
    %vm2167 = vcmp.lt.s32.totalorder %v2147, 2
    %vm2168 = vcmp.lt.s32.totalorder %v2147, 3
    %vm2169 = vcmp.lt.s32.totalorder %v2147, 4
    %v2170 = vsel %vm2166, %v2150, %v2153
    %v2171 = vsel %vm2169, %v2159, 2102212464
    %v2172 = vsel %vm2168, %v2156, %v2171
    %v2173 = vsel %vm2167, %v2170, %v2172
    %v2174 = vsel %vm2166, %v2153, %v2156
    %v2175 = vsel %vm2169, %v2162, 920167782
    %v2176 = vsel %vm2168, %v2159, %v2175
    %v2177 = vsel %vm2167, %v2174, %v2176
    %v2178 = vsel %vm2166, %v2156, %v2159
    %v2179 = vsel %vm2169, %v2165, 1326507024
    %v2180 = vsel %vm2168, %v2162, %v2179
    %v2181 = vsel %vm2167, %v2178, %v2180
    %v2182 = vshll.u32 %v2142, 8
    %v2183 = vmul.u32.u64.compose %v2182, %v2181
    %v2184 = vextract.low.u32 %v2183
    %v2185 = vextract.high.u32 %v2183
    %v2186 = vmul.u32.u64.compose %v2182, %v2177
    %v2187 = vextract.low.u32 %v2186
    %v2188 = vextract.high.u32 %v2186
    %v2189 = vmul.u32 %v2182, %v2173
    %v2190 = vadd.s32 %v2185, %v2187
    %vm2191 = vc.u32 %v2185, %v2187
    %v2192 = vadd.s32 %v2188, 1
    %v2193 = vsel %vm2191, %v2192, %v2188
    %v2194 = vadd.s32 %v2189, %v2193
    %v2195 = vadd.s32 %v2194, 536870912
    %v2196 = vshrl.u32 %v2195, 30
    %v2197 = vshll.u32 %v2196, 30
    %v2198 = vsub.s32 %v2194, %v2197
    %vm2199 = vcmp.lt.s32.totalorder %v2198, 0
    %v2200 = vsub.s32 0, %v2198
    %v2201 = vsel %vm2199, %v2200, %v2198
    %v2202 = vclz %v2201
    %v2203 = vsub.s32 %v2202, 2
    %vm2204 = vcmp.gt.s32.totalorder 0, %v2203
    %v2205 = vsel %vm2204, 0, %v2203
    %v2206 = vsub.s32 32, %v2205
    %v2207 = vshll.u32 %v2198, %v2205
    %v2208 = vshrl.u32 %v2190, %v2206
    %v2209 = vor.u32 %v2207, %v2208
    %v2210 = vsub.s32 4294967266, %v2205
    %v2211 = vadd.s32 %v2210, 127
    %v2212 = vshll.u32 %v2211, 23
    %v2213 = vor.u32 4788187, %v2212
    %v2214 = vand.u32 2147483647, %v2213
    %v2216 = vcvt.s32.f32 %v2209
    %v2217 = vmul.f32 %v2216, %v2214
    %v2218 = vxor.u32 %v2217, 2147483648
    %v2219 = vsel %vm2136, %v2218, %v2217
    %v2220 = vsub.s32 4, %v2196
    %v2221 = vsel %vm2136, %v2220, %v2196
    %v2222 = vsel %vm2135, %v1718, %v2219
    %v2223 = vsel %vm2135, 0, %v2221
    %v2224 = vcosq.f32.pop %v2222
    %v2225 = vsinq.f32.pop %v2222
    %vm2226 = vweird.f32 %v1718
    %v2227 = vadd.s32 %v2223, 3
    %v2228 = vand.u32 %v2227, 3
    %vm2229 = vcmp.lt.s32.totalorder %v2228, 2
    %vm2230 = vcmp.eq.s32.totalorder %v2228, 0
    %v2231 = vxor.u32 %v2225, 2147483648
    %v2232 = vsel %vm2230, %v2224, %v2231
    %vm2233 = vcmp.eq.s32.totalorder %v2228, 2
    %v2234 = vxor.u32 %v2224, 2147483648
    %v2235 = vsel %vm2233, %v2234, %v2225
    %v2236 = vsel %vm2229, %v2232, %v2235
    %v2237 = vsel %vm2226, nan, %v2236
    %v2238 = vand.u32 2147483647, %v1719
    %vm2239 = vcmp.le.f32.partialorder %v2238, 0.7853982
    %vm2240 = vcmp.lt.s32.totalorder %v1719, 0
    %v2241 = vand.u32 %v1719, 2139095040
    %v2242 = vshrl.u32 %v2241, 23
    %v2243 = vsub.s32 %v2242, 127
    %v2244 = vand.u32 2147483647, %v1719
    %v2245 = vand.u32 %v2244, 8388607
    %v2246 = vor.u32 %v2245, 8388608
    %v2247 = vsub.s32 0, %v2246
    %v2248 = vadd.s32 %v2243, 1
    %vm2249 = vcmp.gt.s32.totalorder %v2248, 0
    %v2250 = vsel %vm2249, %v2248, 0
    %v2251 = vshrl.u32 %v2250, 5
    %v2252 = vand.u32 %v2250, 31
    %v2253 = vsub.s32 32, %v2252
    %v2254 = vshrl.u32 683565275, %v2253
    %v2255 = vshll.u32 683565275, %v2252
    %v2256 = vshrl.u32 2475754826, %v2253
    %v2257 = vor.u32 %v2255, %v2256
    %v2258 = vshll.u32 2475754826, %v2252
    %v2259 = vshrl.u32 2131351028, %v2253
    %v2260 = vor.u32 %v2258, %v2259
    %v2261 = vshll.u32 2131351028, %v2252
    %v2262 = vshrl.u32 2102212464, %v2253
    %v2263 = vor.u32 %v2261, %v2262
    %v2264 = vshll.u32 2102212464, %v2252
    %v2265 = vshrl.u32 920167782, %v2253
    %v2266 = vor.u32 %v2264, %v2265
    %v2267 = vshll.u32 920167782, %v2252
    %v2268 = vshrl.u32 1326507024, %v2253
    %v2269 = vor.u32 %v2267, %v2268
    %vm2270 = vcmp.lt.s32.totalorder %v2251, 1
    %vm2271 = vcmp.lt.s32.totalorder %v2251, 2
    %vm2272 = vcmp.lt.s32.totalorder %v2251, 3
    %vm2273 = vcmp.lt.s32.totalorder %v2251, 4
    %v2274 = vsel %vm2270, %v2254, %v2257
    %v2275 = vsel %vm2273, %v2263, 2102212464
    %v2276 = vsel %vm2272, %v2260, %v2275
    %v2277 = vsel %vm2271, %v2274, %v2276
    %v2278 = vsel %vm2270, %v2257, %v2260
    %v2279 = vsel %vm2273, %v2266, 920167782
    %v2280 = vsel %vm2272, %v2263, %v2279
    %v2281 = vsel %vm2271, %v2278, %v2280
    %v2282 = vsel %vm2270, %v2260, %v2263
    %v2283 = vsel %vm2273, %v2269, 1326507024
    %v2284 = vsel %vm2272, %v2266, %v2283
    %v2285 = vsel %vm2271, %v2282, %v2284
    %v2286 = vshll.u32 %v2246, 8
    %v2287 = vmul.u32.u64.compose %v2286, %v2285
    %v2288 = vextract.low.u32 %v2287
    %v2289 = vextract.high.u32 %v2287
    %v2290 = vmul.u32.u64.compose %v2286, %v2281
    %v2291 = vextract.low.u32 %v2290
    %v2292 = vextract.high.u32 %v2290
    %v2293 = vmul.u32 %v2286, %v2277
    %v2294 = vadd.s32 %v2289, %v2291
    %vm2295 = vc.u32 %v2289, %v2291
    %v2296 = vadd.s32 %v2292, 1
    %v2297 = vsel %vm2295, %v2296, %v2292
    %v2298 = vadd.s32 %v2293, %v2297
    %v2299 = vadd.s32 %v2298, 536870912
    %v2300 = vshrl.u32 %v2299, 30
    %v2301 = vshll.u32 %v2300, 30
    %v2302 = vsub.s32 %v2298, %v2301
    %vm2303 = vcmp.lt.s32.totalorder %v2302, 0
    %v2304 = vsub.s32 0, %v2302
    %v2305 = vsel %vm2303, %v2304, %v2302
    %v2306 = vclz %v2305
    %v2307 = vsub.s32 %v2306, 2
    %vm2308 = vcmp.gt.s32.totalorder 0, %v2307
    %v2309 = vsel %vm2308, 0, %v2307
    %v2310 = vsub.s32 32, %v2309
    %v2311 = vshll.u32 %v2302, %v2309
    %v2312 = vshrl.u32 %v2294, %v2310
    %v2313 = vor.u32 %v2311, %v2312
    %v2314 = vsub.s32 4294967266, %v2309
    %v2315 = vadd.s32 %v2314, 127
    %v2316 = vshll.u32 %v2315, 23
    %v2317 = vor.u32 4788187, %v2316
    %v2318 = vand.u32 2147483647, %v2317
    %v2320 = vcvt.s32.f32 %v2313
    %v2321 = vmul.f32 %v2320, %v2318
    %v2322 = vxor.u32 %v2321, 2147483648
    %v2323 = vsel %vm2240, %v2322, %v2321
    %v2324 = vsub.s32 4, %v2300
    %v2325 = vsel %vm2240, %v2324, %v2300
    %v2326 = vsel %vm2239, %v1719, %v2323
    %v2327 = vsel %vm2239, 0, %v2325
    %v2328 = vcosq.f32.pop %v2326
    %v2329 = vsinq.f32.pop %v2326
    %vm2330 = vweird.f32 %v1719
    %v2331 = vadd.s32 %v2327, 3
    %v2332 = vand.u32 %v2331, 3
    %vm2333 = vcmp.lt.s32.totalorder %v2332, 2
    %vm2334 = vcmp.eq.s32.totalorder %v2332, 0
    %v2335 = vxor.u32 %v2329, 2147483648
    %v2336 = vsel %vm2334, %v2328, %v2335
    %vm2337 = vcmp.eq.s32.totalorder %v2332, 2
    %v2338 = vxor.u32 %v2328, 2147483648
    %v2339 = vsel %vm2337, %v2338, %v2329
    %v2340 = vsel %vm2333, %v2336, %v2339
    %v2341 = vsel %vm2330, nan, %v2340
    %v2342 = vand.u32 2147483647, %v1720
    %vm2343 = vcmp.le.f32.partialorder %v2342, 0.7853982
    %vm2344 = vcmp.lt.s32.totalorder %v1720, 0
    %v2345 = vand.u32 %v1720, 2139095040
    %v2346 = vshrl.u32 %v2345, 23
    %v2347 = vsub.s32 %v2346, 127
    %v2348 = vand.u32 2147483647, %v1720
    %v2349 = vand.u32 %v2348, 8388607
    %v2350 = vor.u32 %v2349, 8388608
    %v2351 = vsub.s32 0, %v2350
    %v2352 = vadd.s32 %v2347, 1
    %vm2353 = vcmp.gt.s32.totalorder %v2352, 0
    %v2354 = vsel %vm2353, %v2352, 0
    %v2355 = vshrl.u32 %v2354, 5
    %v2356 = vand.u32 %v2354, 31
    %v2357 = vsub.s32 32, %v2356
    %v2358 = vshrl.u32 683565275, %v2357
    %v2359 = vshll.u32 683565275, %v2356
    %v2360 = vshrl.u32 2475754826, %v2357
    %v2361 = vor.u32 %v2359, %v2360
    %v2362 = vshll.u32 2475754826, %v2356
    %v2363 = vshrl.u32 2131351028, %v2357
    %v2364 = vor.u32 %v2362, %v2363
    %v2365 = vshll.u32 2131351028, %v2356
    %v2366 = vshrl.u32 2102212464, %v2357
    %v2367 = vor.u32 %v2365, %v2366
    %v2368 = vshll.u32 2102212464, %v2356
    %v2369 = vshrl.u32 920167782, %v2357
    %v2370 = vor.u32 %v2368, %v2369
    %v2371 = vshll.u32 920167782, %v2356
    %v2372 = vshrl.u32 1326507024, %v2357
    %v2373 = vor.u32 %v2371, %v2372
    %vm2374 = vcmp.lt.s32.totalorder %v2355, 1
    %vm2375 = vcmp.lt.s32.totalorder %v2355, 2
    %vm2376 = vcmp.lt.s32.totalorder %v2355, 3
    %vm2377 = vcmp.lt.s32.totalorder %v2355, 4
    %v2378 = vsel %vm2374, %v2358, %v2361
    %v2379 = vsel %vm2377, %v2367, 2102212464
    %v2380 = vsel %vm2376, %v2364, %v2379
    %v2381 = vsel %vm2375, %v2378, %v2380
    %v2382 = vsel %vm2374, %v2361, %v2364
    %v2383 = vsel %vm2377, %v2370, 920167782
    %v2384 = vsel %vm2376, %v2367, %v2383
    %v2385 = vsel %vm2375, %v2382, %v2384
    %v2386 = vsel %vm2374, %v2364, %v2367
    %v2387 = vsel %vm2377, %v2373, 1326507024
    %v2388 = vsel %vm2376, %v2370, %v2387
    %v2389 = vsel %vm2375, %v2386, %v2388
    %v2390 = vshll.u32 %v2350, 8
    %v2391 = vmul.u32.u64.compose %v2390, %v2389
    %v2392 = vextract.low.u32 %v2391
    %v2393 = vextract.high.u32 %v2391
    %v2394 = vmul.u32.u64.compose %v2390, %v2385
    %v2395 = vextract.low.u32 %v2394
    %v2396 = vextract.high.u32 %v2394
    %v2397 = vmul.u32 %v2390, %v2381
    %v2398 = vadd.s32 %v2393, %v2395
    %vm2399 = vc.u32 %v2393, %v2395
    %v2400 = vadd.s32 %v2396, 1
    %v2401 = vsel %vm2399, %v2400, %v2396
    %v2402 = vadd.s32 %v2397, %v2401
    %v2403 = vadd.s32 %v2402, 536870912
    %v2404 = vshrl.u32 %v2403, 30
    %v2405 = vshll.u32 %v2404, 30
    %v2406 = vsub.s32 %v2402, %v2405
    %vm2407 = vcmp.lt.s32.totalorder %v2406, 0
    %v2408 = vsub.s32 0, %v2406
    %v2409 = vsel %vm2407, %v2408, %v2406
    %v2410 = vclz %v2409
    %v2411 = vsub.s32 %v2410, 2
    %vm2412 = vcmp.gt.s32.totalorder 0, %v2411
    %v2413 = vsel %vm2412, 0, %v2411
    %v2414 = vsub.s32 32, %v2413
    %v2415 = vshll.u32 %v2406, %v2413
    %v2416 = vshrl.u32 %v2398, %v2414
    %v2417 = vor.u32 %v2415, %v2416
    %v2418 = vsub.s32 4294967266, %v2413
    %v2419 = vadd.s32 %v2418, 127
    %v2420 = vshll.u32 %v2419, 23
    %v2421 = vor.u32 4788187, %v2420
    %v2422 = vand.u32 2147483647, %v2421
    %v2424 = vcvt.s32.f32 %v2417
    %v2425 = vmul.f32 %v2424, %v2422
    %v2426 = vxor.u32 %v2425, 2147483648
    %v2427 = vsel %vm2344, %v2426, %v2425
    %v2428 = vsub.s32 4, %v2404
    %v2429 = vsel %vm2344, %v2428, %v2404
    %v2430 = vsel %vm2343, %v1720, %v2427
    %v2431 = vsel %vm2343, 0, %v2429
    %v2432 = vcosq.f32.pop %v2430
    %v2433 = vsinq.f32.pop %v2430
    %vm2434 = vweird.f32 %v1720
    %v2435 = vadd.s32 %v2431, 3
    %v2436 = vand.u32 %v2435, 3
    %vm2437 = vcmp.lt.s32.totalorder %v2436, 2
    %vm2438 = vcmp.eq.s32.totalorder %v2436, 0
    %v2439 = vxor.u32 %v2433, 2147483648
    %v2440 = vsel %vm2438, %v2432, %v2439
    %vm2441 = vcmp.eq.s32.totalorder %v2436, 2
    %v2442 = vxor.u32 %v2432, 2147483648
    %v2443 = vsel %vm2441, %v2442, %v2433
    %v2444 = vsel %vm2437, %v2440, %v2443
    %v2445 = vsel %vm2434, nan, %v2444
    %v2446 = vand.u32 2147483647, %v1721
    %vm2447 = vcmp.le.f32.partialorder %v2446, 0.7853982
    %vm2448 = vcmp.lt.s32.totalorder %v1721, 0
    %v2449 = vand.u32 %v1721, 2139095040
    %v2450 = vshrl.u32 %v2449, 23
    %v2451 = vsub.s32 %v2450, 127
    %v2452 = vand.u32 2147483647, %v1721
    %v2453 = vand.u32 %v2452, 8388607
    %v2454 = vor.u32 %v2453, 8388608
    %v2455 = vsub.s32 0, %v2454
    %v2456 = vadd.s32 %v2451, 1
    %vm2457 = vcmp.gt.s32.totalorder %v2456, 0
    %v2458 = vsel %vm2457, %v2456, 0
    %v2459 = vshrl.u32 %v2458, 5
    %v2460 = vand.u32 %v2458, 31
    %v2461 = vsub.s32 32, %v2460
    %v2462 = vshrl.u32 683565275, %v2461
    %v2463 = vshll.u32 683565275, %v2460
    %v2464 = vshrl.u32 2475754826, %v2461
    %v2465 = vor.u32 %v2463, %v2464
    %v2466 = vshll.u32 2475754826, %v2460
    %v2467 = vshrl.u32 2131351028, %v2461
    %v2468 = vor.u32 %v2466, %v2467
    %v2469 = vshll.u32 2131351028, %v2460
    %v2470 = vshrl.u32 2102212464, %v2461
    %v2471 = vor.u32 %v2469, %v2470
    %v2472 = vshll.u32 2102212464, %v2460
    %v2473 = vshrl.u32 920167782, %v2461
    %v2474 = vor.u32 %v2472, %v2473
    %v2475 = vshll.u32 920167782, %v2460
    %v2476 = vshrl.u32 1326507024, %v2461
    %v2477 = vor.u32 %v2475, %v2476
    %vm2478 = vcmp.lt.s32.totalorder %v2459, 1
    %vm2479 = vcmp.lt.s32.totalorder %v2459, 2
    %vm2480 = vcmp.lt.s32.totalorder %v2459, 3
    %vm2481 = vcmp.lt.s32.totalorder %v2459, 4
    %v2482 = vsel %vm2478, %v2462, %v2465
    %v2483 = vsel %vm2481, %v2471, 2102212464
    %v2484 = vsel %vm2480, %v2468, %v2483
    %v2485 = vsel %vm2479, %v2482, %v2484
    %v2486 = vsel %vm2478, %v2465, %v2468
    %v2487 = vsel %vm2481, %v2474, 920167782
    %v2488 = vsel %vm2480, %v2471, %v2487
    %v2489 = vsel %vm2479, %v2486, %v2488
    %v2490 = vsel %vm2478, %v2468, %v2471
    %v2491 = vsel %vm2481, %v2477, 1326507024
    %v2492 = vsel %vm2480, %v2474, %v2491
    %v2493 = vsel %vm2479, %v2490, %v2492
    %v2494 = vshll.u32 %v2454, 8
    %v2495 = vmul.u32.u64.compose %v2494, %v2493
    %v2496 = vextract.low.u32 %v2495
    %v2497 = vextract.high.u32 %v2495
    %v2498 = vmul.u32.u64.compose %v2494, %v2489
    %v2499 = vextract.low.u32 %v2498
    %v2500 = vextract.high.u32 %v2498
    %v2501 = vmul.u32 %v2494, %v2485
    %v2502 = vadd.s32 %v2497, %v2499
    %vm2503 = vc.u32 %v2497, %v2499
    %v2504 = vadd.s32 %v2500, 1
    %v2505 = vsel %vm2503, %v2504, %v2500
    %v2506 = vadd.s32 %v2501, %v2505
    %v2507 = vadd.s32 %v2506, 536870912
    %v2508 = vshrl.u32 %v2507, 30
    %v2509 = vshll.u32 %v2508, 30
    %v2510 = vsub.s32 %v2506, %v2509
    %vm2511 = vcmp.lt.s32.totalorder %v2510, 0
    %v2512 = vsub.s32 0, %v2510
    %v2513 = vsel %vm2511, %v2512, %v2510
    %v2514 = vclz %v2513
    %v2515 = vsub.s32 %v2514, 2
    %vm2516 = vcmp.gt.s32.totalorder 0, %v2515
    %v2517 = vsel %vm2516, 0, %v2515
    %v2518 = vsub.s32 32, %v2517
    %v2519 = vshll.u32 %v2510, %v2517
    %v2520 = vshrl.u32 %v2502, %v2518
    %v2521 = vor.u32 %v2519, %v2520
    %v2522 = vsub.s32 4294967266, %v2517
    %v2523 = vadd.s32 %v2522, 127
    %v2524 = vshll.u32 %v2523, 23
    %v2525 = vor.u32 4788187, %v2524
    %v2526 = vand.u32 2147483647, %v2525
    %v2528 = vcvt.s32.f32 %v2521
    %v2529 = vmul.f32 %v2528, %v2526
    %v2530 = vxor.u32 %v2529, 2147483648
    %v2531 = vsel %vm2448, %v2530, %v2529
    %v2532 = vsub.s32 4, %v2508
    %v2533 = vsel %vm2448, %v2532, %v2508
    %v2534 = vsel %vm2447, %v1721, %v2531
    %v2535 = vsel %vm2447, 0, %v2533
    %v2536 = vcosq.f32.pop %v2534
    %v2537 = vsinq.f32.pop %v2534
    %vm2538 = vweird.f32 %v1721
    %v2539 = vadd.s32 %v2535, 3
    %v2540 = vand.u32 %v2539, 3
    %vm2541 = vcmp.lt.s32.totalorder %v2540, 2
    %vm2542 = vcmp.eq.s32.totalorder %v2540, 0
    %v2543 = vxor.u32 %v2537, 2147483648
    %v2544 = vsel %vm2542, %v2536, %v2543
    %vm2545 = vcmp.eq.s32.totalorder %v2540, 2
    %v2546 = vxor.u32 %v2536, 2147483648
    %v2547 = vsel %vm2545, %v2546, %v2537
    %v2548 = vsel %vm2541, %v2544, %v2547
    %v2549 = vsel %vm2538, nan, %v2548
    %2554 = vrot.lane.b32.xlu0 %v136, 1
    %v2555 = vpop.permute.xlu0 %2554
    %2556 = vrot.lane.b32.xlu0 %v239, 1
    %v2557 = vpop.permute.xlu0 %2556
    %2558 = vrot.lane.b32.xlu0 %v342, 1
    %v2559 = vpop.permute.xlu0 %2558
    %2560 = vrot.lane.b32.xlu0 %v445, 1
    %v2561 = vpop.permute.xlu0 %2560
    %v2566 = vmul.f32 %v988, %v2555
    %v2567 = vmul.f32 %v1091, %v2557
    %v2568 = vmul.f32 %v1194, %v2559
    %v2569 = vmul.f32 %v1297, %v2561
    %v2570 = vsub.f32 0.0, %v1401
    %v2571 = vsub.f32 0.0, %v1505
    %v2572 = vsub.f32 0.0, %v1609
    %v2573 = vsub.f32 0.0, %v1713
    %v2574 = vmul.f32 %v2570, %v2555
    %v2575 = vmul.f32 %v2571, %v2557
    %v2576 = vmul.f32 %v2572, %v2559
    %v2577 = vmul.f32 %v2573, %v2561
    %v2578 = vsub.f32 0.0, %v1824
    %v2579 = vsub.f32 0.0, %v1927
    %v2580 = vsub.f32 0.0, %v2030
    %v2581 = vsub.f32 0.0, %v2133
    %2586 = vrot.lane.b32.xlu0 %v549, 1
    %v2587 = vpop.permute.xlu0 %2586
    %2588 = vrot.lane.b32.xlu0 %v653, 1
    %v2589 = vpop.permute.xlu0 %2588
    %2590 = vrot.lane.b32.xlu0 %v757, 1
    %v2591 = vpop.permute.xlu0 %2590
    %2592 = vrot.lane.b32.xlu0 %v861, 1
    %v2593 = vpop.permute.xlu0 %2592
    %v2598 = vmul.f32 %v2578, %v2587
    %v2599 = vmul.f32 %v2579, %v2589
    %v2600 = vmul.f32 %v2580, %v2591
    %v2601 = vmul.f32 %v2581, %v2593
    %v2602 = vsub.f32 0.0, %v2237
    %v2603 = vsub.f32 0.0, %v2341
    %v2604 = vsub.f32 0.0, %v2445
    %v2605 = vsub.f32 0.0, %v2549
    %v2606 = vmul.f32 %v2602, %v2587
    %v2607 = vmul.f32 %v2603, %v2589
    %v2608 = vmul.f32 %v2604, %v2591
    %v2609 = vmul.f32 %v2605, %v2593
    %v2610 = vmul.f32 %v1824, %v2587
    %v2611 = vmul.f32 %v1927, %v2589
    %v2612 = vmul.f32 %v2030, %v2591
    %v2613 = vmul.f32 %v2133, %v2593
    %v2614 = vmul.f32 %v1401, %v2555
    %v2615 = vmul.f32 %v1505, %v2557
    %v2616 = vmul.f32 %v1609, %v2559
    %v2617 = vmul.f32 %v1713, %v2561
    %v2618 = vadd.f32 %v2566, %v2598
    %v2619 = vadd.f32 %v2567, %v2599
    %v2620 = vadd.f32 %v2568, %v2600
    %v2621 = vadd.f32 %v2569, %v2601
    %v2622 = vmul.f32 %v2618, 0.70710677
    %v2623 = vmul.f32 %v2619, 0.70710677
    %v2624 = vmul.f32 %v2620, 0.70710677
    %v2625 = vmul.f32 %v2621, 0.70710677
    %v2626 = vadd.f32 %v2574, %v2606
    %v2627 = vadd.f32 %v2575, %v2607
    %v2628 = vadd.f32 %v2576, %v2608
    %v2629 = vadd.f32 %v2577, %v2609
    %v2630 = vmul.f32 %v2626, 0.70710677
    %v2631 = vmul.f32 %v2627, 0.70710677
    %v2632 = vmul.f32 %v2628, 0.70710677
    %v2633 = vmul.f32 %v2629, 0.70710677
    %v2634 = vsub.f32 %v2566, %v2598
    %v2635 = vsub.f32 %v2567, %v2599
    %v2636 = vsub.f32 %v2568, %v2600
    %v2637 = vsub.f32 %v2569, %v2601
    %v2638 = vmul.f32 %v2634, 0.70710677
    %v2639 = vmul.f32 %v2635, 0.70710677
    %v2640 = vmul.f32 %v2636, 0.70710677
    %v2641 = vmul.f32 %v2637, 0.70710677
    %v2642 = vsub.f32 %v2574, %v2606
    %v2643 = vsub.f32 %v2575, %v2607
    %v2644 = vsub.f32 %v2576, %v2608
    %v2645 = vsub.f32 %v2577, %v2609
    %v2646 = vmul.f32 %v2642, 0.70710677
    %v2647 = vmul.f32 %v2643, 0.70710677
    %v2648 = vmul.f32 %v2644, 0.70710677
    %v2649 = vmul.f32 %v2645, 0.70710677
    %v2650 = vadd.f32 %v2610, %v2566
    %v2651 = vadd.f32 %v2611, %v2567
    %v2652 = vadd.f32 %v2612, %v2568
    %v2653 = vadd.f32 %v2613, %v2569
    %v2654 = vmul.f32 %v2650, 0.70710677
    %v2655 = vmul.f32 %v2651, 0.70710677
    %v2656 = vmul.f32 %v2652, 0.70710677
    %v2657 = vmul.f32 %v2653, 0.70710677
    %v2658 = vadd.f32 %v2606, %v2614
    %v2659 = vadd.f32 %v2607, %v2615
    %v2660 = vadd.f32 %v2608, %v2616
    %v2661 = vadd.f32 %v2609, %v2617
    %v2662 = vmul.f32 %v2658, 0.70710677
    %v2663 = vmul.f32 %v2659, 0.70710677
    %v2664 = vmul.f32 %v2660, 0.70710677
    %v2665 = vmul.f32 %v2661, 0.70710677
    %v2666 = vsub.f32 %v2610, %v2566
    %v2667 = vsub.f32 %v2611, %v2567
    %v2668 = vsub.f32 %v2612, %v2568
    %v2669 = vsub.f32 %v2613, %v2569
    %v2670 = vmul.f32 %v2666, 0.70710677
    %v2671 = vmul.f32 %v2667, 0.70710677
    %v2672 = vmul.f32 %v2668, 0.70710677
    %v2673 = vmul.f32 %v2669, 0.70710677
    %v2674 = vsub.f32 %v2606, %v2614
    %v2675 = vsub.f32 %v2607, %v2615
    %v2676 = vsub.f32 %v2608, %v2616
    %v2677 = vsub.f32 %v2609, %v2617
    %v2678 = vmul.f32 %v2674, 0.70710677
    %v2679 = vmul.f32 %v2675, 0.70710677
    %v2680 = vmul.f32 %v2676, 0.70710677
    %v2681 = vmul.f32 %v2677, 0.70710677
    %v2682 = vlaneseq
    %v2683 = vand.u32 %v2682, 127
    %v2684 = vand.u32 %v2683, 7
    %v2685 = vld [vmem:[#allocation2] sm:$0xff]
    %v2686 = vld [vmem:[#allocation2 + $0x8] sm:$0xff]
    %v2687 = vand.u32 %v2684, 4
    %vm2688 = vcmp.eq.s32.totalorder %v2687, 0
    %2690 = vset.pattern.permute.xlu0 1
    %2691 = vperm.xlu0 %2690, %v2622
    %v2692 = vpop.permute.xlu0 %2691
    %2695 = vset.pattern.permute.xlu0 1
    %2696 = vperm.xlu0 %2695, %v2623
    %v2697 = vpop.permute.xlu0 %2696
    %2700 = vset.pattern.permute.xlu0 1
    %2701 = vperm.xlu0 %2700, %v2624
    %v2702 = vpop.permute.xlu0 %2701
    %2705 = vset.pattern.permute.xlu0 1
    %2706 = vperm.xlu0 %2705, %v2625
    %v2707 = vpop.permute.xlu0 %2706
    %2710 = vset.pattern.permute.xlu0 1
    %2711 = vperm.xlu0 %2710, %v2670
    %v2712 = vpop.permute.xlu0 %2711
    %2715 = vset.pattern.permute.xlu0 1
    %2716 = vperm.xlu0 %2715, %v2671
    %v2717 = vpop.permute.xlu0 %2716
    %2720 = vset.pattern.permute.xlu0 1
    %2721 = vperm.xlu0 %2720, %v2672
    %v2722 = vpop.permute.xlu0 %2721
    %2725 = vset.pattern.permute.xlu0 1
    %2726 = vperm.xlu0 %2725, %v2673
    %v2727 = vpop.permute.xlu0 %2726
    %v2729 = vsel %vm2688, %v2692, %v2712
    %v2730 = vsel %vm2688, %v2697, %v2717
    %v2731 = vsel %vm2688, %v2702, %v2722
    %v2732 = vsel %vm2688, %v2707, %v2727
    %2734 = vset.pattern.permute.xlu0 1
    %2735 = vperm.xlu0 %2734, %v2630
    %v2736 = vpop.permute.xlu0 %2735
    %2739 = vset.pattern.permute.xlu0 1
    %2740 = vperm.xlu0 %2739, %v2631
    %v2741 = vpop.permute.xlu0 %2740
    %2744 = vset.pattern.permute.xlu0 1
    %2745 = vperm.xlu0 %2744, %v2632
    %v2746 = vpop.permute.xlu0 %2745
    %2749 = vset.pattern.permute.xlu0 1
    %2750 = vperm.xlu0 %2749, %v2633
    %v2751 = vpop.permute.xlu0 %2750
    %2754 = vset.pattern.permute.xlu0 1
    %2755 = vperm.xlu0 %2754, %v2678
    %v2756 = vpop.permute.xlu0 %2755
    %2759 = vset.pattern.permute.xlu0 1
    %2760 = vperm.xlu0 %2759, %v2679
    %v2761 = vpop.permute.xlu0 %2760
    %2764 = vset.pattern.permute.xlu0 1
    %2765 = vperm.xlu0 %2764, %v2680
    %v2766 = vpop.permute.xlu0 %2765
    %2769 = vset.pattern.permute.xlu0 1
    %2770 = vperm.xlu0 %2769, %v2681
    %v2771 = vpop.permute.xlu0 %2770
    %v2773 = vsel %vm2688, %v2736, %v2756
    %v2774 = vsel %vm2688, %v2741, %v2761
    %v2775 = vsel %vm2688, %v2746, %v2766
    %v2776 = vsel %vm2688, %v2751, %v2771
    %2778 = vset.pattern.permute.xlu0 1
    %2779 = vperm.xlu0 %2778, %v2638
    %v2780 = vpop.permute.xlu0 %2779
    %2783 = vset.pattern.permute.xlu0 1
    %2784 = vperm.xlu0 %2783, %v2639
    %v2785 = vpop.permute.xlu0 %2784
    %2788 = vset.pattern.permute.xlu0 1
    %2789 = vperm.xlu0 %2788, %v2640
    %v2790 = vpop.permute.xlu0 %2789
    %2793 = vset.pattern.permute.xlu0 1
    %2794 = vperm.xlu0 %2793, %v2641
    %v2795 = vpop.permute.xlu0 %2794
    %2798 = vset.pattern.permute.xlu0 1
    %2799 = vperm.xlu0 %2798, %v2654
    %v2800 = vpop.permute.xlu0 %2799
    %2803 = vset.pattern.permute.xlu0 1
    %2804 = vperm.xlu0 %2803, %v2655
    %v2805 = vpop.permute.xlu0 %2804
    %2808 = vset.pattern.permute.xlu0 1
    %2809 = vperm.xlu0 %2808, %v2656
    %v2810 = vpop.permute.xlu0 %2809
    %2813 = vset.pattern.permute.xlu0 1
    %2814 = vperm.xlu0 %2813, %v2657
    %v2815 = vpop.permute.xlu0 %2814
    %v2817 = vsel %vm2688, %v2780, %v2800
    %v2818 = vsel %vm2688, %v2785, %v2805
    %v2819 = vsel %vm2688, %v2790, %v2810
    %v2820 = vsel %vm2688, %v2795, %v2815
    %2822 = vset.pattern.permute.xlu0 1
    %2823 = vperm.xlu0 %2822, %v2646
    %v2824 = vpop.permute.xlu0 %2823
    %2827 = vset.pattern.permute.xlu0 1
    %2828 = vperm.xlu0 %2827, %v2647
    %v2829 = vpop.permute.xlu0 %2828
    %2832 = vset.pattern.permute.xlu0 1
    %2833 = vperm.xlu0 %2832, %v2648
    %v2834 = vpop.permute.xlu0 %2833
    %2837 = vset.pattern.permute.xlu0 1
    %2838 = vperm.xlu0 %2837, %v2649
    %v2839 = vpop.permute.xlu0 %2838
    %2842 = vset.pattern.permute.xlu0 1
    %2843 = vperm.xlu0 %2842, %v2662
    %v2844 = vpop.permute.xlu0 %2843
    %2847 = vset.pattern.permute.xlu0 1
    %2848 = vperm.xlu0 %2847, %v2663
    %v2849 = vpop.permute.xlu0 %2848
    %2852 = vset.pattern.permute.xlu0 1
    %2853 = vperm.xlu0 %2852, %v2664
    %v2854 = vpop.permute.xlu0 %2853
    %2857 = vset.pattern.permute.xlu0 1
    %2858 = vperm.xlu0 %2857, %v2665
    %v2859 = vpop.permute.xlu0 %2858
    %v2861 = vsel %vm2688, %v2824, %v2844
    %v2862 = vsel %vm2688, %v2829, %v2849
    %v2863 = vsel %vm2688, %v2834, %v2854
    %v2864 = vsel %vm2688, %v2839, %v2859
    %s2865 = scalar_lea.vmem [#allocation2], 16
    %v2866 = vld [vmem:[%s2865] sm:$0xff]
    %v2867 = vld [vmem:[%s2865 + $0x8] sm:$0xff]
    %s2868 = scalar_lea.vmem [#allocation2], 64
    %v2869 = vld [vmem:[%s2868] sm:$0xff]
    %v2870 = vld [vmem:[%s2868 + $0x8] sm:$0xff]
    %v2871 = vand.u32 %v2684, 2
    %vm2872 = vcmp.eq.s32.totalorder %v2871, 0
    %v2873 = vsel %vm2872, %v2692, %v2712
    %v2874 = vsel %vm2872, %v2697, %v2717
    %v2875 = vsel %vm2872, %v2702, %v2722
    %v2876 = vsel %vm2872, %v2707, %v2727
    %v2877 = vsel %vm2872, %v2736, %v2756
    %v2878 = vsel %vm2872, %v2741, %v2761
    %v2879 = vsel %vm2872, %v2746, %v2766
    %v2880 = vsel %vm2872, %v2751, %v2771
    %v2881 = vsel %vm2872, %v2780, %v2800
    %v2882 = vsel %vm2872, %v2785, %v2805
    %v2883 = vsel %vm2872, %v2790, %v2810
    %v2884 = vsel %vm2872, %v2795, %v2815
    %v2885 = vsel %vm2872, %v2824, %v2844
    %v2886 = vsel %vm2872, %v2829, %v2849
    %v2887 = vsel %vm2872, %v2834, %v2854
    %v2888 = vsel %vm2872, %v2839, %v2859
    %s2889 = scalar_lea.vmem [#allocation2], 32
    %v2890 = vld [vmem:[%s2889] sm:$0xff]
    %v2891 = vld [vmem:[%s2889 + $0x8] sm:$0xff]
    %s2892 = scalar_lea.vmem [#allocation2], 80
    %v2893 = vld [vmem:[%s2892] sm:$0xff]
    %v2894 = vld [vmem:[%s2892 + $0x8] sm:$0xff]
    %v2895 = vand.u32 %v2684, 1
    %vm2896 = vcmp.eq.s32.totalorder %v2895, 0
    %v2897 = vsel %vm2896, %v2692, %v2712
    %v2898 = vsel %vm2896, %v2697, %v2717
    %v2899 = vsel %vm2896, %v2702, %v2722
    %v2900 = vsel %vm2896, %v2707, %v2727
    %v2901 = vsel %vm2896, %v2736, %v2756
    %v2902 = vsel %vm2896, %v2741, %v2761
    %v2903 = vsel %vm2896, %v2746, %v2766
    %v2904 = vsel %vm2896, %v2751, %v2771
    %v2905 = vsel %vm2896, %v2780, %v2800
    %v2906 = vsel %vm2896, %v2785, %v2805
    %v2907 = vsel %vm2896, %v2790, %v2810
    %v2908 = vsel %vm2896, %v2795, %v2815
    %v2909 = vsel %vm2896, %v2824, %v2844
    %v2910 = vsel %vm2896, %v2829, %v2849
    %v2911 = vsel %vm2896, %v2834, %v2854
    %v2912 = vsel %vm2896, %v2839, %v2859
    %s2913 = scalar_lea.vmem [#allocation2], 48
    %v2914 = vld [vmem:[%s2913] sm:$0xff]
    %v2915 = vld [vmem:[%s2913 + $0x8] sm:$0xff]
    %s2916 = scalar_lea.vmem [#allocation2], 96
    %v2917 = vld [vmem:[%s2916] sm:$0xff]
    %v2918 = vld [vmem:[%s2916 + $0x8] sm:$0xff]
    %vm2919 = vcmp.eq.s32.totalorder %v2683, 0
    %v2920 = vsel %vm2919, 1, 0
    %v2921 = vcvt.s32.f32 %v2920
    %vm2923 = vcmask 130048
    %v2924 = vsel %vm2923, %v2921, 0
    %2926 = vmatprep.subr.mxu0 0.0
    %2927 = vmatpush1.msra.mxu0 0.0
    %2928 = vmatprep.subr.mxu0 0.0
    %2929 = vmatpush1.msra.mxu0 0.0
    %2930 = vmatprep.subr.mxu0 0.0
    %2931 = vmatpush1.msra.mxu0 0.0
    %2932 = vmatprep.subr.mxu0 0.0
    %2933 = vmatpush1.msra.mxu0 0.0
    %2934 = vmatprep.subr.mxu0 0.0
    %2935 = vmatpush1.msra.mxu0 0.0
    %2936 = vmatprep.subr.mxu0 0.0
    %2937 = vmatpush1.msra.mxu0 0.0
    %2938 = vmatprep.subr.mxu0 0.0
    %2939 = vmatpush1.msra.mxu0 0.0
    %2940 = vmatprep.subr.mxu0 0.0
    %2941 = vmatpush1.msra.mxu0 0.0
    %2942 = vmatprep.subr.mxu0 0.0
    %2943 = vmatpush1.msra.mxu0 0.0
    %2944 = vmatprep.subr.mxu0 0.0
    %2945 = vmatpush1.msra.mxu0 0.0
    %2946 = vmatprep.subr.mxu0 0.0
    %2947 = vmatpush1.msra.mxu0 0.0
    %2948 = vmatprep.subr.mxu0 0.0
    %2949 = vmatpush1.msra.mxu0 0.0
    %2950 = vmatprep.subr.mxu0 0.0
    %2951 = vmatpush1.msra.mxu0 0.0
    %2952 = vmatprep.subr.mxu0 0.0
    %2953 = vmatpush1.msra.mxu0 0.0
    %2954 = vmatprep.subr.mxu0 0.0
    %2955 = vmatpush1.msra.mxu0 %v2686
    %2956 = vmatprep.subr.mxu0 0.0
    %2957 = vmatpush1.msra.mxu0 %v2685
    %2958 = vmatprep.subr.mxu0 0.0
    %2959 = vmatpush2.msra.mxu0 0.0
    %2960 = vmatprep.subr.mxu0 0.0
    %2961 = vmatpush2.msra.mxu0 0.0
    %2962 = vmatprep.subr.mxu0 0.0
    %2963 = vmatpush2.msra.mxu0 0.0
    %2964 = vmatprep.subr.mxu0 0.0
    %2965 = vmatpush2.msra.mxu0 0.0
    %2966 = vmatprep.subr.mxu0 0.0
    %2967 = vmatpush2.msra.mxu0 0.0
    %2968 = vmatprep.subr.mxu0 0.0
    %2969 = vmatpush2.msra.mxu0 0.0
    %2970 = vmatprep.subr.mxu0 0.0
    %2971 = vmatpush2.msra.mxu0 0.0
    %2972 = vmatprep.subr.mxu0 0.0
    %2973 = vmatpush2.msra.mxu0 0.0
    %2974 = vmatprep.subr.mxu0 0.0
    %2975 = vmatpush2.msra.mxu0 0.0
    %2976 = vmatprep.subr.mxu0 0.0
    %2977 = vmatpush2.msra.mxu0 0.0
    %2978 = vmatprep.subr.mxu0 0.0
    %2979 = vmatpush2.msra.mxu0 0.0
    %2980 = vmatprep.subr.mxu0 0.0
    %2981 = vmatpush2.msra.mxu0 0.0
    %2982 = vmatprep.subr.mxu0 0.0
    %2983 = vmatpush2.msra.mxu0 0.0
    %2984 = vmatprep.subr.mxu0 0.0
    %2985 = vmatpush2.msra.mxu0 0.0
    %2986 = vmatprep.subr.mxu0 0.0
    %2987 = vmatpush2.msra.mxu0 0.0
    %2988 = vmatprep.subr.mxu0 0.0
    %2989 = vmatpush2.msra.mxu0 0.0
    %2990 = vmatprep.mubr.f32.mxu0 0.0
    %2991 = vmatmul.mubr.f32.gmra.mxu0 %v2924
    %v2992 = vpop.f32.mrf.mxu0
    %v2993 = vadd.f32 0.0, %v2992
    %v2994 = vpop.f32.mrf.mxu0
    %2995 = vmatprep.mubr.f32.mxu0 0.0
    %2996 = vmatmul.mubr.f32.gmra.mxu0 %v2924
    %v2997 = vpop.f32.mrf.mxu0
    %v2998 = vadd.f32 0.0, %v2997
    %v2999 = vpop.f32.mrf.mxu0
    %3000 = vmatprep.mubr.f32.mxu0 0.0
    %3001 = vmatmul.mubr.f32.gmra.mxu0 %v2924
    %v3002 = vpop.f32.mrf.mxu0
    %v3003 = vadd.f32 0.0, %v3002
    %v3004 = vpop.f32.mrf.mxu0
    %3005 = vmatprep.mubr.f32.mxu0 0.0
    %3006 = vmatmul.mubr.f32.gmra.mxu0 %v2924
    %v3007 = vpop.f32.mrf.mxu0
    %v3008 = vadd.f32 0.0, %v3007
    %v3009 = vpop.f32.mrf.mxu0
    %3010 = vdwg.mxu0
    %3011 = vmatprep.subr.mxu0 0.0
    %3012 = vmatpush1.msra.mxu0 0.0
    %3013 = vmatprep.subr.mxu0 0.0
    %3014 = vmatpush1.msra.mxu0 0.0
    %3015 = vmatprep.subr.mxu0 0.0
    %3016 = vmatpush1.msra.mxu0 0.0
    %3017 = vmatprep.subr.mxu0 0.0
    %3018 = vmatpush1.msra.mxu0 0.0
    %3019 = vmatprep.subr.mxu0 0.0
    %3020 = vmatpush1.msra.mxu0 0.0
    %3021 = vmatprep.subr.mxu0 0.0
    %3022 = vmatpush1.msra.mxu0 0.0
    %3023 = vmatprep.subr.mxu0 0.0
    %3024 = vmatpush1.msra.mxu0 0.0
    %3025 = vmatprep.subr.mxu0 0.0
    %3026 = vmatpush1.msra.mxu0 0.0
    %3027 = vmatprep.subr.mxu0 0.0
    %3028 = vmatpush1.msra.mxu0 0.0
    %3029 = vmatprep.subr.mxu0 0.0
    %3030 = vmatpush1.msra.mxu0 0.0
    %3031 = vmatprep.subr.mxu0 0.0
    %3032 = vmatpush1.msra.mxu0 0.0
    %3033 = vmatprep.subr.mxu0 0.0
    %3034 = vmatpush1.msra.mxu0 0.0
    %3035 = vmatprep.subr.mxu0 0.0
    %3036 = vmatpush1.msra.mxu0 0.0
    %3037 = vmatprep.subr.mxu0 0.0
    %3038 = vmatpush1.msra.mxu0 0.0
    %3039 = vmatprep.subr.mxu0 0.0
    %3040 = vmatpush1.msra.mxu0 %v2867
    %3041 = vmatprep.subr.mxu0 0.0
    %3042 = vmatpush1.msra.mxu0 %v2866
    %3043 = vmatprep.subr.mxu0 0.0
    %3044 = vmatpush2.msra.mxu0 0.0
    %3045 = vmatprep.subr.mxu0 0.0
    %3046 = vmatpush2.msra.mxu0 0.0
    %3047 = vmatprep.subr.mxu0 0.0
    %3048 = vmatpush2.msra.mxu0 0.0
    %3049 = vmatprep.subr.mxu0 0.0
    %3050 = vmatpush2.msra.mxu0 0.0
    %3051 = vmatprep.subr.mxu0 0.0
    %3052 = vmatpush2.msra.mxu0 0.0
    %3053 = vmatprep.subr.mxu0 0.0
    %3054 = vmatpush2.msra.mxu0 0.0
    %3055 = vmatprep.subr.mxu0 0.0
    %3056 = vmatpush2.msra.mxu0 0.0
    %3057 = vmatprep.subr.mxu0 0.0
    %3058 = vmatpush2.msra.mxu0 0.0
    %3059 = vmatprep.subr.mxu0 0.0
    %3060 = vmatpush2.msra.mxu0 0.0
    %3061 = vmatprep.subr.mxu0 0.0
    %3062 = vmatpush2.msra.mxu0 0.0
    %3063 = vmatprep.subr.mxu0 0.0
    %3064 = vmatpush2.msra.mxu0 0.0
    %3065 = vmatprep.subr.mxu0 0.0
    %3066 = vmatpush2.msra.mxu0 0.0
    %3067 = vmatprep.subr.mxu0 0.0
    %3068 = vmatpush2.msra.mxu0 0.0
    %3069 = vmatprep.subr.mxu0 0.0
    %3070 = vmatpush2.msra.mxu0 0.0
    %3071 = vmatprep.subr.mxu0 0.0
    %3072 = vmatpush2.msra.mxu0 0.0
    %3073 = vmatprep.subr.mxu0 0.0
    %3074 = vmatpush2.msra.mxu0 0.0
    %3075 = vmatprep.mubr.f32.mxu0 0.0
    %3076 = vmatmul.mubr.f32.gmra.mxu0 %v2924
    %v3077 = vpop.f32.mrf.mxu0
    %v3078 = vadd.f32 0.0, %v3077
    %v3079 = vpop.f32.mrf.mxu0
    %3080 = vmatprep.mubr.f32.mxu0 0.0
    %3081 = vmatmul.mubr.f32.gmra.mxu0 %v2924
    %v3082 = vpop.f32.mrf.mxu0
    %v3083 = vadd.f32 0.0, %v3082
    %v3084 = vpop.f32.mrf.mxu0
    %3085 = vmatprep.mubr.f32.mxu0 0.0
    %3086 = vmatmul.mubr.f32.gmra.mxu0 %v2924
    %v3087 = vpop.f32.mrf.mxu0
    %v3088 = vadd.f32 0.0, %v3087
    %v3089 = vpop.f32.mrf.mxu0
    %3090 = vmatprep.mubr.f32.mxu0 0.0
    %3091 = vmatmul.mubr.f32.gmra.mxu0 %v2924
    %v3092 = vpop.f32.mrf.mxu0
    %v3093 = vadd.f32 0.0, %v3092
    %v3094 = vpop.f32.mrf.mxu0
    %3095 = vdwg.mxu0
    %3096 = vmatprep.subr.mxu0 0.0
    %3097 = vmatpush1.msra.mxu0 0.0
    %3098 = vmatprep.subr.mxu0 0.0
    %3099 = vmatpush1.msra.mxu0 0.0
    %3100 = vmatprep.subr.mxu0 0.0
    %3101 = vmatpush1.msra.mxu0 0.0
    %3102 = vmatprep.subr.mxu0 0.0
    %3103 = vmatpush1.msra.mxu0 0.0
    %3104 = vmatprep.subr.mxu0 0.0
    %3105 = vmatpush1.msra.mxu0 0.0
    %3106 = vmatprep.subr.mxu0 0.0
    %3107 = vmatpush1.msra.mxu0 0.0
    %3108 = vmatprep.subr.mxu0 0.0
    %3109 = vmatpush1.msra.mxu0 0.0
    %3110 = vmatprep.subr.mxu0 0.0
    %3111 = vmatpush1.msra.mxu0 0.0
    %3112 = vmatprep.subr.mxu0 0.0
    %3113 = vmatpush1.msra.mxu0 0.0
    %3114 = vmatprep.subr.mxu0 0.0
    %3115 = vmatpush1.msra.mxu0 0.0
    %3116 = vmatprep.subr.mxu0 0.0
    %3117 = vmatpush1.msra.mxu0 0.0
    %3118 = vmatprep.subr.mxu0 0.0
    %3119 = vmatpush1.msra.mxu0 0.0
    %3120 = vmatprep.subr.mxu0 0.0
    %3121 = vmatpush1.msra.mxu0 0.0
    %3122 = vmatprep.subr.mxu0 0.0
    %3123 = vmatpush1.msra.mxu0 0.0
    %3124 = vmatprep.subr.mxu0 0.0
    %3125 = vmatpush1.msra.mxu0 %v2870
    %3126 = vmatprep.subr.mxu0 0.0
    %3127 = vmatpush1.msra.mxu0 %v2869
    %3128 = vmatprep.subr.mxu0 0.0
    %3129 = vmatpush2.msra.mxu0 0.0
    %3130 = vmatprep.subr.mxu0 0.0
    %3131 = vmatpush2.msra.mxu0 0.0
    %3132 = vmatprep.subr.mxu0 0.0
    %3133 = vmatpush2.msra.mxu0 0.0
    %3134 = vmatprep.subr.mxu0 0.0
    %3135 = vmatpush2.msra.mxu0 0.0
    %3136 = vmatprep.subr.mxu0 0.0
    %3137 = vmatpush2.msra.mxu0 0.0
    %3138 = vmatprep.subr.mxu0 0.0
    %3139 = vmatpush2.msra.mxu0 0.0
    %3140 = vmatprep.subr.mxu0 0.0
    %3141 = vmatpush2.msra.mxu0 0.0
    %3142 = vmatprep.subr.mxu0 0.0
    %3143 = vmatpush2.msra.mxu0 0.0
    %3144 = vmatprep.subr.mxu0 0.0
    %3145 = vmatpush2.msra.mxu0 0.0
    %3146 = vmatprep.subr.mxu0 0.0
    %3147 = vmatpush2.msra.mxu0 0.0
    %3148 = vmatprep.subr.mxu0 0.0
    %3149 = vmatpush2.msra.mxu0 0.0
    %3150 = vmatprep.subr.mxu0 0.0
    %3151 = vmatpush2.msra.mxu0 0.0
    %3152 = vmatprep.subr.mxu0 0.0
    %3153 = vmatpush2.msra.mxu0 0.0
    %3154 = vmatprep.subr.mxu0 0.0
    %3155 = vmatpush2.msra.mxu0 0.0
    %3156 = vmatprep.subr.mxu0 0.0
    %3157 = vmatpush2.msra.mxu0 0.0
    %3158 = vmatprep.subr.mxu0 0.0
    %3159 = vmatpush2.msra.mxu0 0.0
    %3160 = vmatprep.mubr.f32.mxu0 0.0
    %3161 = vmatmul.mubr.f32.gmra.mxu0 %v2924
    %v3162 = vpop.f32.mrf.mxu0
    %v3163 = vadd.f32 0.0, %v3162
    %v3164 = vpop.f32.mrf.mxu0
    %3165 = vmatprep.mubr.f32.mxu0 0.0
    %3166 = vmatmul.mubr.f32.gmra.mxu0 %v2924
    %v3167 = vpop.f32.mrf.mxu0
    %v3168 = vadd.f32 0.0, %v3167
    %v3169 = vpop.f32.mrf.mxu0
    %3170 = vmatprep.mubr.f32.mxu0 0.0
    %3171 = vmatmul.mubr.f32.gmra.mxu0 %v2924
    %v3172 = vpop.f32.mrf.mxu0
    %v3173 = vadd.f32 0.0, %v3172
    %v3174 = vpop.f32.mrf.mxu0
    %3175 = vmatprep.mubr.f32.mxu0 0.0
    %3176 = vmatmul.mubr.f32.gmra.mxu0 %v2924
    %v3177 = vpop.f32.mrf.mxu0
    %v3178 = vadd.f32 0.0, %v3177
    %v3179 = vpop.f32.mrf.mxu0
    %3180 = vdwg.mxu0
    %v3181 = vmul.f32 %v2729, %v2921
    %v3182 = vmul.f32 %v2730, %v2921
    %v3183 = vmul.f32 %v2731, %v2921
    %v3184 = vmul.f32 %v2732, %v2921
    %v3185 = vmul.f32 %v2773, %v2993
    %v3186 = vmul.f32 %v2774, %v2998
    %v3187 = vmul.f32 %v2775, %v3003
    %v3188 = vmul.f32 %v2776, %v3008
    %v3189 = vadd.f32 %v3181, %v3185
    %v3190 = vadd.f32 %v3182, %v3186
    %v3191 = vadd.f32 %v3183, %v3187
    %v3192 = vadd.f32 %v3184, %v3188
    %v3193 = vmul.f32 %v2817, %v3078
    %v3194 = vmul.f32 %v2818, %v3083
    %v3195 = vmul.f32 %v2819, %v3088
    %v3196 = vmul.f32 %v2820, %v3093
    %v3197 = vadd.f32 %v3189, %v3193
    %v3198 = vadd.f32 %v3190, %v3194
    %v3199 = vadd.f32 %v3191, %v3195
    %v3200 = vadd.f32 %v3192, %v3196
    %v3201 = vmul.f32 %v2861, %v3163
    %v3202 = vmul.f32 %v2862, %v3168
    %v3203 = vmul.f32 %v2863, %v3173
    %v3204 = vmul.f32 %v2864, %v3178
    %v3205 = vadd.f32 %v3197, %v3201
    %v3206 = vadd.f32 %v3198, %v3202
    %v3207 = vadd.f32 %v3199, %v3203
    %v3208 = vadd.f32 %v3200, %v3204
    %v3210 = vsel %vm2923, %v3205, 0
    %v3213 = vsel %vm2923, %v3206, 0
    %v3216 = vsel %vm2923, %v3207, 0
    %v3219 = vsel %vm2923, %v3208, 0
    %3221 = vmatprep.subr.mxu0 0.0
    %3222 = vmatpush1.msra.mxu0 0.0
    %3223 = vmatprep.subr.mxu0 0.0
    %3224 = vmatpush1.msra.mxu0 0.0
    %3225 = vmatprep.subr.mxu0 0.0
    %3226 = vmatpush1.msra.mxu0 0.0
    %3227 = vmatprep.subr.mxu0 0.0
    %3228 = vmatpush1.msra.mxu0 0.0
    %3229 = vmatprep.subr.mxu0 0.0
    %3230 = vmatpush1.msra.mxu0 0.0
    %3231 = vmatprep.subr.mxu0 0.0
    %3232 = vmatpush1.msra.mxu0 0.0
    %3233 = vmatprep.subr.mxu0 0.0
    %3234 = vmatpush1.msra.mxu0 0.0
    %3235 = vmatprep.subr.mxu0 0.0
    %3236 = vmatpush1.msra.mxu0 0.0
    %3237 = vmatprep.subr.mxu0 0.0
    %3238 = vmatpush1.msra.mxu0 0.0
    %3239 = vmatprep.subr.mxu0 0.0
    %3240 = vmatpush1.msra.mxu0 0.0
    %3241 = vmatprep.subr.mxu0 0.0
    %3242 = vmatpush1.msra.mxu0 0.0
    %3243 = vmatprep.subr.mxu0 0.0
    %3244 = vmatpush1.msra.mxu0 0.0
    %3245 = vmatprep.subr.mxu0 0.0
    %3246 = vmatpush1.msra.mxu0 0.0
    %3247 = vmatprep.subr.mxu0 0.0
    %3248 = vmatpush1.msra.mxu0 0.0
    %3249 = vmatprep.subr.mxu0 0.0
    %3250 = vmatpush1.msra.mxu0 %v2686
    %3251 = vmatprep.subr.mxu0 0.0
    %3252 = vmatpush1.msra.mxu0 %v2685
    %3253 = vmatprep.subr.mxu0 0.0
    %3254 = vmatpush2.msra.mxu0 0.0
    %3255 = vmatprep.subr.mxu0 0.0
    %3256 = vmatpush2.msra.mxu0 0.0
    %3257 = vmatprep.subr.mxu0 0.0
    %3258 = vmatpush2.msra.mxu0 0.0
    %3259 = vmatprep.subr.mxu0 0.0
    %3260 = vmatpush2.msra.mxu0 0.0
    %3261 = vmatprep.subr.mxu0 0.0
    %3262 = vmatpush2.msra.mxu0 0.0
    %3263 = vmatprep.subr.mxu0 0.0
    %3264 = vmatpush2.msra.mxu0 0.0
    %3265 = vmatprep.subr.mxu0 0.0
    %3266 = vmatpush2.msra.mxu0 0.0
    %3267 = vmatprep.subr.mxu0 0.0
    %3268 = vmatpush2.msra.mxu0 0.0
    %3269 = vmatprep.subr.mxu0 0.0
    %3270 = vmatpush2.msra.mxu0 0.0
    %3271 = vmatprep.subr.mxu0 0.0
    %3272 = vmatpush2.msra.mxu0 0.0
    %3273 = vmatprep.subr.mxu0 0.0
    %3274 = vmatpush2.msra.mxu0 0.0
    %3275 = vmatprep.subr.mxu0 0.0
    %3276 = vmatpush2.msra.mxu0 0.0
    %3277 = vmatprep.subr.mxu0 0.0
    %3278 = vmatpush2.msra.mxu0 0.0
    %3279 = vmatprep.subr.mxu0 0.0
    %3280 = vmatpush2.msra.mxu0 0.0
    %3281 = vmatprep.subr.mxu0 0.0
    %3282 = vmatpush2.msra.mxu0 0.0
    %3283 = vmatprep.subr.mxu0 0.0
    %3284 = vmatpush2.msra.mxu0 0.0
    %3285 = vmatprep.mubr.f32.mxu0 0.0
    %3286 = vmatmul.mubr.f32.gmra.mxu0 %v3210
    %v3287 = vpop.f32.mrf.mxu0
    %v3288 = vadd.f32 0.0, %v3287
    %v3289 = vpop.f32.mrf.mxu0
    %3290 = vmatprep.mubr.f32.mxu0 0.0
    %3291 = vmatmul.mubr.f32.gmra.mxu0 %v3213
    %v3292 = vpop.f32.mrf.mxu0
    %v3293 = vadd.f32 0.0, %v3292
    %v3294 = vpop.f32.mrf.mxu0
    %3295 = vmatprep.mubr.f32.mxu0 0.0
    %3296 = vmatmul.mubr.f32.gmra.mxu0 %v3216
    %v3297 = vpop.f32.mrf.mxu0
    %v3298 = vadd.f32 0.0, %v3297
    %v3299 = vpop.f32.mrf.mxu0
    %3300 = vmatprep.mubr.f32.mxu0 0.0
    %3301 = vmatmul.mubr.f32.gmra.mxu0 %v3219
    %v3302 = vpop.f32.mrf.mxu0
    %v3303 = vadd.f32 0.0, %v3302
    %v3304 = vpop.f32.mrf.mxu0
    %3305 = vdwg.mxu0
    %3306 = vmatprep.subr.mxu0 0.0
    %3307 = vmatpush1.msra.mxu0 0.0
    %3308 = vmatprep.subr.mxu0 0.0
    %3309 = vmatpush1.msra.mxu0 0.0
    %3310 = vmatprep.subr.mxu0 0.0
    %3311 = vmatpush1.msra.mxu0 0.0
    %3312 = vmatprep.subr.mxu0 0.0
    %3313 = vmatpush1.msra.mxu0 0.0
    %3314 = vmatprep.subr.mxu0 0.0
    %3315 = vmatpush1.msra.mxu0 0.0
    %3316 = vmatprep.subr.mxu0 0.0
    %3317 = vmatpush1.msra.mxu0 0.0
    %3318 = vmatprep.subr.mxu0 0.0
    %3319 = vmatpush1.msra.mxu0 0.0
    %3320 = vmatprep.subr.mxu0 0.0
    %3321 = vmatpush1.msra.mxu0 0.0
    %3322 = vmatprep.subr.mxu0 0.0
    %3323 = vmatpush1.msra.mxu0 0.0
    %3324 = vmatprep.subr.mxu0 0.0
    %3325 = vmatpush1.msra.mxu0 0.0
    %3326 = vmatprep.subr.mxu0 0.0
    %3327 = vmatpush1.msra.mxu0 0.0
    %3328 = vmatprep.subr.mxu0 0.0
    %3329 = vmatpush1.msra.mxu0 0.0
    %3330 = vmatprep.subr.mxu0 0.0
    %3331 = vmatpush1.msra.mxu0 0.0
    %3332 = vmatprep.subr.mxu0 0.0
    %3333 = vmatpush1.msra.mxu0 0.0
    %3334 = vmatprep.subr.mxu0 0.0
    %3335 = vmatpush1.msra.mxu0 %v2891
    %3336 = vmatprep.subr.mxu0 0.0
    %3337 = vmatpush1.msra.mxu0 %v2890
    %3338 = vmatprep.subr.mxu0 0.0
    %3339 = vmatpush2.msra.mxu0 0.0
    %3340 = vmatprep.subr.mxu0 0.0
    %3341 = vmatpush2.msra.mxu0 0.0
    %3342 = vmatprep.subr.mxu0 0.0
    %3343 = vmatpush2.msra.mxu0 0.0
    %3344 = vmatprep.subr.mxu0 0.0
    %3345 = vmatpush2.msra.mxu0 0.0
    %3346 = vmatprep.subr.mxu0 0.0
    %3347 = vmatpush2.msra.mxu0 0.0
    %3348 = vmatprep.subr.mxu0 0.0
    %3349 = vmatpush2.msra.mxu0 0.0
    %3350 = vmatprep.subr.mxu0 0.0
    %3351 = vmatpush2.msra.mxu0 0.0
    %3352 = vmatprep.subr.mxu0 0.0
    %3353 = vmatpush2.msra.mxu0 0.0
    %3354 = vmatprep.subr.mxu0 0.0
    %3355 = vmatpush2.msra.mxu0 0.0
    %3356 = vmatprep.subr.mxu0 0.0
    %3357 = vmatpush2.msra.mxu0 0.0
    %3358 = vmatprep.subr.mxu0 0.0
    %3359 = vmatpush2.msra.mxu0 0.0
    %3360 = vmatprep.subr.mxu0 0.0
    %3361 = vmatpush2.msra.mxu0 0.0
    %3362 = vmatprep.subr.mxu0 0.0
    %3363 = vmatpush2.msra.mxu0 0.0
    %3364 = vmatprep.subr.mxu0 0.0
    %3365 = vmatpush2.msra.mxu0 0.0
    %3366 = vmatprep.subr.mxu0 0.0
    %3367 = vmatpush2.msra.mxu0 0.0
    %3368 = vmatprep.subr.mxu0 0.0
    %3369 = vmatpush2.msra.mxu0 0.0
    %3370 = vmatprep.mubr.f32.mxu0 0.0
    %3371 = vmatmul.mubr.f32.gmra.mxu0 %v3210
    %v3372 = vpop.f32.mrf.mxu0
    %v3373 = vadd.f32 0.0, %v3372
    %v3374 = vpop.f32.mrf.mxu0
    %3375 = vmatprep.mubr.f32.mxu0 0.0
    %3376 = vmatmul.mubr.f32.gmra.mxu0 %v3213
    %v3377 = vpop.f32.mrf.mxu0
    %v3378 = vadd.f32 0.0, %v3377
    %v3379 = vpop.f32.mrf.mxu0
    %3380 = vmatprep.mubr.f32.mxu0 0.0
    %3381 = vmatmul.mubr.f32.gmra.mxu0 %v3216
    %v3382 = vpop.f32.mrf.mxu0
    %v3383 = vadd.f32 0.0, %v3382
    %v3384 = vpop.f32.mrf.mxu0
    %3385 = vmatprep.mubr.f32.mxu0 0.0
    %3386 = vmatmul.mubr.f32.gmra.mxu0 %v3219
    %v3387 = vpop.f32.mrf.mxu0
    %v3388 = vadd.f32 0.0, %v3387
    %v3389 = vpop.f32.mrf.mxu0
    %3390 = vdwg.mxu0
    %3391 = vmatprep.subr.mxu0 0.0
    %3392 = vmatpush1.msra.mxu0 0.0
    %3393 = vmatprep.subr.mxu0 0.0
    %3394 = vmatpush1.msra.mxu0 0.0
    %3395 = vmatprep.subr.mxu0 0.0
    %3396 = vmatpush1.msra.mxu0 0.0
    %3397 = vmatprep.subr.mxu0 0.0
    %3398 = vmatpush1.msra.mxu0 0.0
    %3399 = vmatprep.subr.mxu0 0.0
    %3400 = vmatpush1.msra.mxu0 0.0
    %3401 = vmatprep.subr.mxu0 0.0
    %3402 = vmatpush1.msra.mxu0 0.0
    %3403 = vmatprep.subr.mxu0 0.0
    %3404 = vmatpush1.msra.mxu0 0.0
    %3405 = vmatprep.subr.mxu0 0.0
    %3406 = vmatpush1.msra.mxu0 0.0
    %3407 = vmatprep.subr.mxu0 0.0
    %3408 = vmatpush1.msra.mxu0 0.0
    %3409 = vmatprep.subr.mxu0 0.0
    %3410 = vmatpush1.msra.mxu0 0.0
    %3411 = vmatprep.subr.mxu0 0.0
    %3412 = vmatpush1.msra.mxu0 0.0
    %3413 = vmatprep.subr.mxu0 0.0
    %3414 = vmatpush1.msra.mxu0 0.0
    %3415 = vmatprep.subr.mxu0 0.0
    %3416 = vmatpush1.msra.mxu0 0.0
    %3417 = vmatprep.subr.mxu0 0.0
    %3418 = vmatpush1.msra.mxu0 0.0
    %3419 = vmatprep.subr.mxu0 0.0
    %3420 = vmatpush1.msra.mxu0 %v2894
    %3421 = vmatprep.subr.mxu0 0.0
    %3422 = vmatpush1.msra.mxu0 %v2893
    %3423 = vmatprep.subr.mxu0 0.0
    %3424 = vmatpush2.msra.mxu0 0.0
    %3425 = vmatprep.subr.mxu0 0.0
    %3426 = vmatpush2.msra.mxu0 0.0
    %3427 = vmatprep.subr.mxu0 0.0
    %3428 = vmatpush2.msra.mxu0 0.0
    %3429 = vmatprep.subr.mxu0 0.0
    %3430 = vmatpush2.msra.mxu0 0.0
    %3431 = vmatprep.subr.mxu0 0.0
    %3432 = vmatpush2.msra.mxu0 0.0
    %3433 = vmatprep.subr.mxu0 0.0
    %3434 = vmatpush2.msra.mxu0 0.0
    %3435 = vmatprep.subr.mxu0 0.0
    %3436 = vmatpush2.msra.mxu0 0.0
    %3437 = vmatprep.subr.mxu0 0.0
    %3438 = vmatpush2.msra.mxu0 0.0
    %3439 = vmatprep.subr.mxu0 0.0
    %3440 = vmatpush2.msra.mxu0 0.0
    %3441 = vmatprep.subr.mxu0 0.0
    %3442 = vmatpush2.msra.mxu0 0.0
    %3443 = vmatprep.subr.mxu0 0.0
    %3444 = vmatpush2.msra.mxu0 0.0
    %3445 = vmatprep.subr.mxu0 0.0
    %3446 = vmatpush2.msra.mxu0 0.0
    %3447 = vmatprep.subr.mxu0 0.0
    %3448 = vmatpush2.msra.mxu0 0.0
    %3449 = vmatprep.subr.mxu0 0.0
    %3450 = vmatpush2.msra.mxu0 0.0
    %3451 = vmatprep.subr.mxu0 0.0
    %3452 = vmatpush2.msra.mxu0 0.0
    %3453 = vmatprep.subr.mxu0 0.0
    %3454 = vmatpush2.msra.mxu0 0.0
    %3455 = vmatprep.mubr.f32.mxu0 0.0
    %3456 = vmatmul.mubr.f32.gmra.mxu0 %v3210
    %v3457 = vpop.f32.mrf.mxu0
    %v3458 = vadd.f32 0.0, %v3457
    %v3459 = vpop.f32.mrf.mxu0
    %3460 = vmatprep.mubr.f32.mxu0 0.0
    %3461 = vmatmul.mubr.f32.gmra.mxu0 %v3213
    %v3462 = vpop.f32.mrf.mxu0
    %v3463 = vadd.f32 0.0, %v3462
    %v3464 = vpop.f32.mrf.mxu0
    %3465 = vmatprep.mubr.f32.mxu0 0.0
    %3466 = vmatmul.mubr.f32.gmra.mxu0 %v3216
    %v3467 = vpop.f32.mrf.mxu0
    %v3468 = vadd.f32 0.0, %v3467
    %v3469 = vpop.f32.mrf.mxu0
    %3470 = vmatprep.mubr.f32.mxu0 0.0
    %3471 = vmatmul.mubr.f32.gmra.mxu0 %v3219
    %v3472 = vpop.f32.mrf.mxu0
    %v3473 = vadd.f32 0.0, %v3472
    %v3474 = vpop.f32.mrf.mxu0
    %3475 = vdwg.mxu0
    %v3476 = vmul.f32 %v2873, %v3205
    %v3477 = vmul.f32 %v2874, %v3206
    %v3478 = vmul.f32 %v2875, %v3207
    %v3479 = vmul.f32 %v2876, %v3208
    %v3480 = vmul.f32 %v2877, %v3288
    %v3481 = vmul.f32 %v2878, %v3293
    %v3482 = vmul.f32 %v2879, %v3298
    %v3483 = vmul.f32 %v2880, %v3303
    %v3484 = vadd.f32 %v3476, %v3480
    %v3485 = vadd.f32 %v3477, %v3481
    %v3486 = vadd.f32 %v3478, %v3482
    %v3487 = vadd.f32 %v3479, %v3483
    %v3488 = vmul.f32 %v2881, %v3373
    %v3489 = vmul.f32 %v2882, %v3378
    %v3490 = vmul.f32 %v2883, %v3383
    %v3491 = vmul.f32 %v2884, %v3388
    %v3492 = vadd.f32 %v3484, %v3488
    %v3493 = vadd.f32 %v3485, %v3489
    %v3494 = vadd.f32 %v3486, %v3490
    %v3495 = vadd.f32 %v3487, %v3491
    %v3496 = vmul.f32 %v2885, %v3458
    %v3497 = vmul.f32 %v2886, %v3463
    %v3498 = vmul.f32 %v2887, %v3468
    %v3499 = vmul.f32 %v2888, %v3473
    %v3500 = vadd.f32 %v3492, %v3496
    %v3501 = vadd.f32 %v3493, %v3497
    %v3502 = vadd.f32 %v3494, %v3498
    %v3503 = vadd.f32 %v3495, %v3499
    %v3505 = vsel %vm2923, %v3500, 0
    %v3508 = vsel %vm2923, %v3501, 0
    %v3511 = vsel %vm2923, %v3502, 0
    %v3514 = vsel %vm2923, %v3503, 0
    %3516 = vmatprep.subr.mxu0 0.0
    %3517 = vmatpush1.msra.mxu0 0.0
    %3518 = vmatprep.subr.mxu0 0.0
    %3519 = vmatpush1.msra.mxu0 0.0
    %3520 = vmatprep.subr.mxu0 0.0
    %3521 = vmatpush1.msra.mxu0 0.0
    %3522 = vmatprep.subr.mxu0 0.0
    %3523 = vmatpush1.msra.mxu0 0.0
    %3524 = vmatprep.subr.mxu0 0.0
    %3525 = vmatpush1.msra.mxu0 0.0
    %3526 = vmatprep.subr.mxu0 0.0
    %3527 = vmatpush1.msra.mxu0 0.0
    %3528 = vmatprep.subr.mxu0 0.0
    %3529 = vmatpush1.msra.mxu0 0.0
    %3530 = vmatprep.subr.mxu0 0.0
    %3531 = vmatpush1.msra.mxu0 0.0
    %3532 = vmatprep.subr.mxu0 0.0
    %3533 = vmatpush1.msra.mxu0 0.0
    %3534 = vmatprep.subr.mxu0 0.0
    %3535 = vmatpush1.msra.mxu0 0.0
    %3536 = vmatprep.subr.mxu0 0.0
    %3537 = vmatpush1.msra.mxu0 0.0
    %3538 = vmatprep.subr.mxu0 0.0
    %3539 = vmatpush1.msra.mxu0 0.0
    %3540 = vmatprep.subr.mxu0 0.0
    %3541 = vmatpush1.msra.mxu0 0.0
    %3542 = vmatprep.subr.mxu0 0.0
    %3543 = vmatpush1.msra.mxu0 0.0
    %3544 = vmatprep.subr.mxu0 0.0
    %3545 = vmatpush1.msra.mxu0 %v2686
    %3546 = vmatprep.subr.mxu0 0.0
    %3547 = vmatpush1.msra.mxu0 %v2685
    %3548 = vmatprep.subr.mxu0 0.0
    %3549 = vmatpush2.msra.mxu0 0.0
    %3550 = vmatprep.subr.mxu0 0.0
    %3551 = vmatpush2.msra.mxu0 0.0
    %3552 = vmatprep.subr.mxu0 0.0
    %3553 = vmatpush2.msra.mxu0 0.0
    %3554 = vmatprep.subr.mxu0 0.0
    %3555 = vmatpush2.msra.mxu0 0.0
    %3556 = vmatprep.subr.mxu0 0.0
    %3557 = vmatpush2.msra.mxu0 0.0
    %3558 = vmatprep.subr.mxu0 0.0
    %3559 = vmatpush2.msra.mxu0 0.0
    %3560 = vmatprep.subr.mxu0 0.0
    %3561 = vmatpush2.msra.mxu0 0.0
    %3562 = vmatprep.subr.mxu0 0.0
    %3563 = vmatpush2.msra.mxu0 0.0
    %3564 = vmatprep.subr.mxu0 0.0
    %3565 = vmatpush2.msra.mxu0 0.0
    %3566 = vmatprep.subr.mxu0 0.0
    %3567 = vmatpush2.msra.mxu0 0.0
    %3568 = vmatprep.subr.mxu0 0.0
    %3569 = vmatpush2.msra.mxu0 0.0
    %3570 = vmatprep.subr.mxu0 0.0
    %3571 = vmatpush2.msra.mxu0 0.0
    %3572 = vmatprep.subr.mxu0 0.0
    %3573 = vmatpush2.msra.mxu0 0.0
    %3574 = vmatprep.subr.mxu0 0.0
    %3575 = vmatpush2.msra.mxu0 0.0
    %3576 = vmatprep.subr.mxu0 0.0
    %3577 = vmatpush2.msra.mxu0 0.0
    %3578 = vmatprep.subr.mxu0 0.0
    %3579 = vmatpush2.msra.mxu0 0.0
    %3580 = vmatprep.mubr.f32.mxu0 0.0
    %3581 = vmatmul.mubr.f32.gmra.mxu0 %v3505
    %v3582 = vpop.f32.mrf.mxu0
    %v3583 = vadd.f32 0.0, %v3582
    %v3584 = vpop.f32.mrf.mxu0
    %3585 = vmatprep.mubr.f32.mxu0 0.0
    %3586 = vmatmul.mubr.f32.gmra.mxu0 %v3508
    %v3587 = vpop.f32.mrf.mxu0
    %v3588 = vadd.f32 0.0, %v3587
    %v3589 = vpop.f32.mrf.mxu0
    %3590 = vmatprep.mubr.f32.mxu0 0.0
    %3591 = vmatmul.mubr.f32.gmra.mxu0 %v3511
    %v3592 = vpop.f32.mrf.mxu0
    %v3593 = vadd.f32 0.0, %v3592
    %v3594 = vpop.f32.mrf.mxu0
    %3595 = vmatprep.mubr.f32.mxu0 0.0
    %3596 = vmatmul.mubr.f32.gmra.mxu0 %v3514
    %v3597 = vpop.f32.mrf.mxu0
    %v3598 = vadd.f32 0.0, %v3597
    %v3599 = vpop.f32.mrf.mxu0
    %3600 = vdwg.mxu0
    %3601 = vmatprep.subr.mxu0 0.0
    %3602 = vmatpush1.msra.mxu0 0.0
    %3603 = vmatprep.subr.mxu0 0.0
    %3604 = vmatpush1.msra.mxu0 0.0
    %3605 = vmatprep.subr.mxu0 0.0
    %3606 = vmatpush1.msra.mxu0 0.0
    %3607 = vmatprep.subr.mxu0 0.0
    %3608 = vmatpush1.msra.mxu0 0.0
    %3609 = vmatprep.subr.mxu0 0.0
    %3610 = vmatpush1.msra.mxu0 0.0
    %3611 = vmatprep.subr.mxu0 0.0
    %3612 = vmatpush1.msra.mxu0 0.0
    %3613 = vmatprep.subr.mxu0 0.0
    %3614 = vmatpush1.msra.mxu0 0.0
    %3615 = vmatprep.subr.mxu0 0.0
    %3616 = vmatpush1.msra.mxu0 0.0
    %3617 = vmatprep.subr.mxu0 0.0
    %3618 = vmatpush1.msra.mxu0 0.0
    %3619 = vmatprep.subr.mxu0 0.0
    %3620 = vmatpush1.msra.mxu0 0.0
    %3621 = vmatprep.subr.mxu0 0.0
    %3622 = vmatpush1.msra.mxu0 0.0
    %3623 = vmatprep.subr.mxu0 0.0
    %3624 = vmatpush1.msra.mxu0 0.0
    %3625 = vmatprep.subr.mxu0 0.0
    %3626 = vmatpush1.msra.mxu0 0.0
    %3627 = vmatprep.subr.mxu0 0.0
    %3628 = vmatpush1.msra.mxu0 0.0
    %3629 = vmatprep.subr.mxu0 0.0
    %3630 = vmatpush1.msra.mxu0 %v2915
    %3631 = vmatprep.subr.mxu0 0.0
    %3632 = vmatpush1.msra.mxu0 %v2914
    %3633 = vmatprep.subr.mxu0 0.0
    %3634 = vmatpush2.msra.mxu0 0.0
    %3635 = vmatprep.subr.mxu0 0.0
    %3636 = vmatpush2.msra.mxu0 0.0
    %3637 = vmatprep.subr.mxu0 0.0
    %3638 = vmatpush2.msra.mxu0 0.0
    %3639 = vmatprep.subr.mxu0 0.0
    %3640 = vmatpush2.msra.mxu0 0.0
    %3641 = vmatprep.subr.mxu0 0.0
    %3642 = vmatpush2.msra.mxu0 0.0
    %3643 = vmatprep.subr.mxu0 0.0
    %3644 = vmatpush2.msra.mxu0 0.0
    %3645 = vmatprep.subr.mxu0 0.0
    %3646 = vmatpush2.msra.mxu0 0.0
    %3647 = vmatprep.subr.mxu0 0.0
    %3648 = vmatpush2.msra.mxu0 0.0
    %3649 = vmatprep.subr.mxu0 0.0
    %3650 = vmatpush2.msra.mxu0 0.0
    %3651 = vmatprep.subr.mxu0 0.0
    %3652 = vmatpush2.msra.mxu0 0.0
    %3653 = vmatprep.subr.mxu0 0.0
    %3654 = vmatpush2.msra.mxu0 0.0
    %3655 = vmatprep.subr.mxu0 0.0
    %3656 = vmatpush2.msra.mxu0 0.0
    %3657 = vmatprep.subr.mxu0 0.0
    %3658 = vmatpush2.msra.mxu0 0.0
    %3659 = vmatprep.subr.mxu0 0.0
    %3660 = vmatpush2.msra.mxu0 0.0
    %3661 = vmatprep.subr.mxu0 0.0
    %3662 = vmatpush2.msra.mxu0 0.0
    %3663 = vmatprep.subr.mxu0 0.0
    %3664 = vmatpush2.msra.mxu0 0.0
    %3665 = vmatprep.mubr.f32.mxu0 0.0
    %3666 = vmatmul.mubr.f32.gmra.mxu0 %v3505
    %v3667 = vpop.f32.mrf.mxu0
    %v3668 = vadd.f32 0.0, %v3667
    %v3669 = vpop.f32.mrf.mxu0
    %3670 = vmatprep.mubr.f32.mxu0 0.0
    %3671 = vmatmul.mubr.f32.gmra.mxu0 %v3508
    %v3672 = vpop.f32.mrf.mxu0
    %v3673 = vadd.f32 0.0, %v3672
    %v3674 = vpop.f32.mrf.mxu0
    %3675 = vmatprep.mubr.f32.mxu0 0.0
    %3676 = vmatmul.mubr.f32.gmra.mxu0 %v3511
    %v3677 = vpop.f32.mrf.mxu0
    %v3678 = vadd.f32 0.0, %v3677
    %v3679 = vpop.f32.mrf.mxu0
    %3680 = vmatprep.mubr.f32.mxu0 0.0
    %3681 = vmatmul.mubr.f32.gmra.mxu0 %v3514
    %v3682 = vpop.f32.mrf.mxu0
    %v3683 = vadd.f32 0.0, %v3682
    %v3684 = vpop.f32.mrf.mxu0
    %3685 = vdwg.mxu0
    %3686 = vmatprep.subr.mxu0 0.0
    %3687 = vmatpush1.msra.mxu0 0.0
    %3688 = vmatprep.subr.mxu0 0.0
    %3689 = vmatpush1.msra.mxu0 0.0
    %3690 = vmatprep.subr.mxu0 0.0
    %3691 = vmatpush1.msra.mxu0 0.0
    %3692 = vmatprep.subr.mxu0 0.0
    %3693 = vmatpush1.msra.mxu0 0.0
    %3694 = vmatprep.subr.mxu0 0.0
    %3695 = vmatpush1.msra.mxu0 0.0
    %3696 = vmatprep.subr.mxu0 0.0
    %3697 = vmatpush1.msra.mxu0 0.0
    %3698 = vmatprep.subr.mxu0 0.0
    %3699 = vmatpush1.msra.mxu0 0.0
    %3700 = vmatprep.subr.mxu0 0.0
    %3701 = vmatpush1.msra.mxu0 0.0
    %3702 = vmatprep.subr.mxu0 0.0
    %3703 = vmatpush1.msra.mxu0 0.0
    %3704 = vmatprep.subr.mxu0 0.0
    %3705 = vmatpush1.msra.mxu0 0.0
    %3706 = vmatprep.subr.mxu0 0.0
    %3707 = vmatpush1.msra.mxu0 0.0
    %3708 = vmatprep.subr.mxu0 0.0
    %3709 = vmatpush1.msra.mxu0 0.0
    %3710 = vmatprep.subr.mxu0 0.0
    %3711 = vmatpush1.msra.mxu0 0.0
    %3712 = vmatprep.subr.mxu0 0.0
    %3713 = vmatpush1.msra.mxu0 0.0
    %3714 = vmatprep.subr.mxu0 0.0
    %3715 = vmatpush1.msra.mxu0 %v2918
    %3716 = vmatprep.subr.mxu0 0.0
    %3717 = vmatpush1.msra.mxu0 %v2917
    %3718 = vmatprep.subr.mxu0 0.0
    %3719 = vmatpush2.msra.mxu0 0.0
    %3720 = vmatprep.subr.mxu0 0.0
    %3721 = vmatpush2.msra.mxu0 0.0
    %3722 = vmatprep.subr.mxu0 0.0
    %3723 = vmatpush2.msra.mxu0 0.0
    %3724 = vmatprep.subr.mxu0 0.0
    %3725 = vmatpush2.msra.mxu0 0.0
    %3726 = vmatprep.subr.mxu0 0.0
    %3727 = vmatpush2.msra.mxu0 0.0
    %3728 = vmatprep.subr.mxu0 0.0
    %3729 = vmatpush2.msra.mxu0 0.0
    %3730 = vmatprep.subr.mxu0 0.0
    %3731 = vmatpush2.msra.mxu0 0.0
    %3732 = vmatprep.subr.mxu0 0.0
    %3733 = vmatpush2.msra.mxu0 0.0
    %3734 = vmatprep.subr.mxu0 0.0
    %3735 = vmatpush2.msra.mxu0 0.0
    %3736 = vmatprep.subr.mxu0 0.0
    %3737 = vmatpush2.msra.mxu0 0.0
    %3738 = vmatprep.subr.mxu0 0.0
    %3739 = vmatpush2.msra.mxu0 0.0
    %3740 = vmatprep.subr.mxu0 0.0
    %3741 = vmatpush2.msra.mxu0 0.0
    %3742 = vmatprep.subr.mxu0 0.0
    %3743 = vmatpush2.msra.mxu0 0.0
    %3744 = vmatprep.subr.mxu0 0.0
    %3745 = vmatpush2.msra.mxu0 0.0
    %3746 = vmatprep.subr.mxu0 0.0
    %3747 = vmatpush2.msra.mxu0 0.0
    %3748 = vmatprep.subr.mxu0 0.0
    %3749 = vmatpush2.msra.mxu0 0.0
    %3750 = vmatprep.mubr.f32.mxu0 0.0
    %3751 = vmatmul.mubr.f32.gmra.mxu0 %v3505
    %v3752 = vpop.f32.mrf.mxu0
    %v3753 = vadd.f32 0.0, %v3752
    %v3754 = vpop.f32.mrf.mxu0
    %3755 = vmatprep.mubr.f32.mxu0 0.0
    %3756 = vmatmul.mubr.f32.gmra.mxu0 %v3508
    %v3757 = vpop.f32.mrf.mxu0
    %v3758 = vadd.f32 0.0, %v3757
    %v3759 = vpop.f32.mrf.mxu0
    %3760 = vmatprep.mubr.f32.mxu0 0.0
    %3761 = vmatmul.mubr.f32.gmra.mxu0 %v3511
    %v3762 = vpop.f32.mrf.mxu0
    %v3763 = vadd.f32 0.0, %v3762
    %v3764 = vpop.f32.mrf.mxu0
    %3765 = vmatprep.mubr.f32.mxu0 0.0
    %3766 = vmatmul.mubr.f32.gmra.mxu0 %v3514
    %v3767 = vpop.f32.mrf.mxu0
    %v3768 = vadd.f32 0.0, %v3767
    %v3769 = vpop.f32.mrf.mxu0
    %3770 = vdwg.mxu0
    %v3771 = vmul.f32 %v2897, %v3500
    %v3772 = vmul.f32 %v2898, %v3501
    %v3773 = vmul.f32 %v2899, %v3502
    %v3774 = vmul.f32 %v2900, %v3503
    %v3775 = vmul.f32 %v2901, %v3583
    %v3776 = vmul.f32 %v2902, %v3588
    %v3777 = vmul.f32 %v2903, %v3593
    %v3778 = vmul.f32 %v2904, %v3598
    %v3779 = vadd.f32 %v3771, %v3775
    %v3780 = vadd.f32 %v3772, %v3776
    %v3781 = vadd.f32 %v3773, %v3777
    %v3782 = vadd.f32 %v3774, %v3778
    %v3783 = vmul.f32 %v2905, %v3668
    %v3784 = vmul.f32 %v2906, %v3673
    %v3785 = vmul.f32 %v2907, %v3678
    %v3786 = vmul.f32 %v2908, %v3683
    %v3787 = vadd.f32 %v3779, %v3783
    %v3788 = vadd.f32 %v3780, %v3784
    %v3789 = vadd.f32 %v3781, %v3785
    %v3790 = vadd.f32 %v3782, %v3786
    %v3791 = vmul.f32 %v2909, %v3753
    %v3792 = vmul.f32 %v2910, %v3758
    %v3793 = vmul.f32 %v2911, %v3763
    %v3794 = vmul.f32 %v2912, %v3768
    %v3795 = vadd.f32 %v3787, %v3791
    %v3796 = vadd.f32 %v3788, %v3792
    %v3797 = vadd.f32 %v3789, %v3793
    %v3798 = vadd.f32 %v3790, %v3794
    %s3799 = scalar_lea.vmem [#allocation2], 112
    %v3800 = vld [vmem:[%s3799] sm:$0xff]
    %v3801 = vld [vmem:[%s3799 + $0x8] sm:$0xff]
    %v3803 = vsel %vm2923, %v3795, 0
    %v3806 = vsel %vm2923, %v3796, 0
    %v3809 = vsel %vm2923, %v3797, 0
    %v3812 = vsel %vm2923, %v3798, 0
    %3814 = vmatprep.subr.mxu0 0.0
    %3815 = vmatpush1.msra.mxu0 0.0
    %3816 = vmatprep.subr.mxu0 0.0
    %3817 = vmatpush1.msra.mxu0 0.0
    %3818 = vmatprep.subr.mxu0 0.0
    %3819 = vmatpush1.msra.mxu0 0.0
    %3820 = vmatprep.subr.mxu0 0.0
    %3821 = vmatpush1.msra.mxu0 0.0
    %3822 = vmatprep.subr.mxu0 0.0
    %3823 = vmatpush1.msra.mxu0 0.0
    %3824 = vmatprep.subr.mxu0 0.0
    %3825 = vmatpush1.msra.mxu0 0.0
    %3826 = vmatprep.subr.mxu0 0.0
    %3827 = vmatpush1.msra.mxu0 0.0
    %3828 = vmatprep.subr.mxu0 0.0
    %3829 = vmatpush1.msra.mxu0 0.0
    %3830 = vmatprep.subr.mxu0 0.0
    %3831 = vmatpush1.msra.mxu0 0.0
    %3832 = vmatprep.subr.mxu0 0.0
    %3833 = vmatpush1.msra.mxu0 0.0
    %3834 = vmatprep.subr.mxu0 0.0
    %3835 = vmatpush1.msra.mxu0 0.0
    %3836 = vmatprep.subr.mxu0 0.0
    %3837 = vmatpush1.msra.mxu0 0.0
    %3838 = vmatprep.subr.mxu0 0.0
    %3839 = vmatpush1.msra.mxu0 0.0
    %3840 = vmatprep.subr.mxu0 0.0
    %3841 = vmatpush1.msra.mxu0 0.0
    %3842 = vmatprep.subr.mxu0 0.0
    %3843 = vmatpush1.msra.mxu0 %v3801
    %3844 = vmatprep.subr.mxu0 0.0
    %3845 = vmatpush1.msra.mxu0 %v3800
    %3846 = vmatprep.subr.mxu0 0.0
    %3847 = vmatpush2.msra.mxu0 0.0
    %3848 = vmatprep.subr.mxu0 0.0
    %3849 = vmatpush2.msra.mxu0 0.0
    %3850 = vmatprep.subr.mxu0 0.0
    %3851 = vmatpush2.msra.mxu0 0.0
    %3852 = vmatprep.subr.mxu0 0.0
    %3853 = vmatpush2.msra.mxu0 0.0
    %3854 = vmatprep.subr.mxu0 0.0
    %3855 = vmatpush2.msra.mxu0 0.0
    %3856 = vmatprep.subr.mxu0 0.0
    %3857 = vmatpush2.msra.mxu0 0.0
    %3858 = vmatprep.subr.mxu0 0.0
    %3859 = vmatpush2.msra.mxu0 0.0
    %3860 = vmatprep.subr.mxu0 0.0
    %3861 = vmatpush2.msra.mxu0 0.0
    %3862 = vmatprep.subr.mxu0 0.0
    %3863 = vmatpush2.msra.mxu0 0.0
    %3864 = vmatprep.subr.mxu0 0.0
    %3865 = vmatpush2.msra.mxu0 0.0
    %3866 = vmatprep.subr.mxu0 0.0
    %3867 = vmatpush2.msra.mxu0 0.0
    %3868 = vmatprep.subr.mxu0 0.0
    %3869 = vmatpush2.msra.mxu0 0.0
    %3870 = vmatprep.subr.mxu0 0.0
    %3871 = vmatpush2.msra.mxu0 0.0
    %3872 = vmatprep.subr.mxu0 0.0
    %3873 = vmatpush2.msra.mxu0 0.0
    %3874 = vmatprep.subr.mxu0 0.0
    %3875 = vmatpush2.msra.mxu0 0.0
    %3876 = vmatprep.subr.mxu0 0.0
    %3877 = vmatpush2.msra.mxu0 0.0
    %3878 = vmatprep.mubr.f32.mxu0 0.0
    %3879 = vmatmul.mubr.f32.gmra.mxu0 %v3803
    %v3880 = vpop.f32.mrf.mxu0
    %v3881 = vadd.f32 0.0, %v3880
    %v3882 = vpop.f32.mrf.mxu0
    %3883 = vmatprep.mubr.f32.mxu0 0.0
    %3884 = vmatmul.mubr.f32.gmra.mxu0 %v3806
    %v3885 = vpop.f32.mrf.mxu0
    %v3886 = vadd.f32 0.0, %v3885
    %v3887 = vpop.f32.mrf.mxu0
    %3888 = vmatprep.mubr.f32.mxu0 0.0
    %3889 = vmatmul.mubr.f32.gmra.mxu0 %v3809
    %v3890 = vpop.f32.mrf.mxu0
    %v3891 = vadd.f32 0.0, %v3890
    %v3892 = vpop.f32.mrf.mxu0
    %3893 = vmatprep.mubr.f32.mxu0 0.0
    %3894 = vmatmul.mubr.f32.gmra.mxu0 %v3812
    %v3895 = vpop.f32.mrf.mxu0
    %v3896 = vadd.f32 0.0, %v3895
    %v3897 = vpop.f32.mrf.mxu0
    %3898 = vdwg.mxu0
    %v3900 = vsel %vm2923, %v3881, 0
    %v3903 = vsel %vm2923, %v3886, 0
    %v3906 = vsel %vm2923, %v3891, 0
    %v3909 = vsel %vm2923, %v3896, 0
    %3911 = vmatprep.subr.mxu0 0.0
    %3912 = vmatpush1.msra.mxu0 0.0
    %3913 = vmatprep.subr.mxu0 0.0
    %3914 = vmatpush1.msra.mxu0 0.0
    %3915 = vmatprep.subr.mxu0 0.0
    %3916 = vmatpush1.msra.mxu0 0.0
    %3917 = vmatprep.subr.mxu0 0.0
    %3918 = vmatpush1.msra.mxu0 0.0
    %3919 = vmatprep.subr.mxu0 0.0
    %3920 = vmatpush1.msra.mxu0 0.0
    %3921 = vmatprep.subr.mxu0 0.0
    %3922 = vmatpush1.msra.mxu0 0.0
    %3923 = vmatprep.subr.mxu0 0.0
    %3924 = vmatpush1.msra.mxu0 0.0
    %3925 = vmatprep.subr.mxu0 0.0
    %3926 = vmatpush1.msra.mxu0 0.0
    %3927 = vmatprep.subr.mxu0 0.0
    %3928 = vmatpush1.msra.mxu0 0.0
    %3929 = vmatprep.subr.mxu0 0.0
    %3930 = vmatpush1.msra.mxu0 0.0
    %3931 = vmatprep.subr.mxu0 0.0
    %3932 = vmatpush1.msra.mxu0 0.0
    %3933 = vmatprep.subr.mxu0 0.0
    %3934 = vmatpush1.msra.mxu0 0.0
    %3935 = vmatprep.subr.mxu0 0.0
    %3936 = vmatpush1.msra.mxu0 0.0
    %3937 = vmatprep.subr.mxu0 0.0
    %3938 = vmatpush1.msra.mxu0 0.0
    %3939 = vmatprep.subr.mxu0 0.0
    %3940 = vmatpush1.msra.mxu0 %v2686
    %3941 = vmatprep.subr.mxu0 0.0
    %3942 = vmatpush1.msra.mxu0 %v2685
    %3943 = vmatprep.subr.mxu0 0.0
    %3944 = vmatpush2.msra.mxu0 0.0
    %3945 = vmatprep.subr.mxu0 0.0
    %3946 = vmatpush2.msra.mxu0 0.0
    %3947 = vmatprep.subr.mxu0 0.0
    %3948 = vmatpush2.msra.mxu0 0.0
    %3949 = vmatprep.subr.mxu0 0.0
    %3950 = vmatpush2.msra.mxu0 0.0
    %3951 = vmatprep.subr.mxu0 0.0
    %3952 = vmatpush2.msra.mxu0 0.0
    %3953 = vmatprep.subr.mxu0 0.0
    %3954 = vmatpush2.msra.mxu0 0.0
    %3955 = vmatprep.subr.mxu0 0.0
    %3956 = vmatpush2.msra.mxu0 0.0
    %3957 = vmatprep.subr.mxu0 0.0
    %3958 = vmatpush2.msra.mxu0 0.0
    %3959 = vmatprep.subr.mxu0 0.0
    %3960 = vmatpush2.msra.mxu0 0.0
    %3961 = vmatprep.subr.mxu0 0.0
    %3962 = vmatpush2.msra.mxu0 0.0
    %3963 = vmatprep.subr.mxu0 0.0
    %3964 = vmatpush2.msra.mxu0 0.0
    %3965 = vmatprep.subr.mxu0 0.0
    %3966 = vmatpush2.msra.mxu0 0.0
    %3967 = vmatprep.subr.mxu0 0.0
    %3968 = vmatpush2.msra.mxu0 0.0
    %3969 = vmatprep.subr.mxu0 0.0
    %3970 = vmatpush2.msra.mxu0 0.0
    %3971 = vmatprep.subr.mxu0 0.0
    %3972 = vmatpush2.msra.mxu0 0.0
    %3973 = vmatprep.subr.mxu0 0.0
    %3974 = vmatpush2.msra.mxu0 0.0
    %3975 = vmatprep.mubr.f32.mxu0 0.0
    %3976 = vmatmul.mubr.f32.gmra.mxu0 %v3900
    %v3977 = vpop.f32.mrf.mxu0
    %v3978 = vadd.f32 0.0, %v3977
    %v3979 = vpop.f32.mrf.mxu0
    %3980 = vmatprep.mubr.f32.mxu0 0.0
    %3981 = vmatmul.mubr.f32.gmra.mxu0 %v3903
    %v3982 = vpop.f32.mrf.mxu0
    %v3983 = vadd.f32 0.0, %v3982
    %v3984 = vpop.f32.mrf.mxu0
    %3985 = vmatprep.mubr.f32.mxu0 0.0
    %3986 = vmatmul.mubr.f32.gmra.mxu0 %v3906
    %v3987 = vpop.f32.mrf.mxu0
    %v3988 = vadd.f32 0.0, %v3987
    %v3989 = vpop.f32.mrf.mxu0
    %3990 = vmatprep.mubr.f32.mxu0 0.0
    %3991 = vmatmul.mubr.f32.gmra.mxu0 %v3909
    %v3992 = vpop.f32.mrf.mxu0
    %v3993 = vadd.f32 0.0, %v3992
    %v3994 = vpop.f32.mrf.mxu0
    %3995 = vdwg.mxu0
    %3996 = vmatprep.subr.mxu0 0.0
    %3997 = vmatpush1.msra.mxu0 0.0
    %3998 = vmatprep.subr.mxu0 0.0
    %3999 = vmatpush1.msra.mxu0 0.0
    %4000 = vmatprep.subr.mxu0 0.0
    %4001 = vmatpush1.msra.mxu0 0.0
    %4002 = vmatprep.subr.mxu0 0.0
    %4003 = vmatpush1.msra.mxu0 0.0
    %4004 = vmatprep.subr.mxu0 0.0
    %4005 = vmatpush1.msra.mxu0 0.0
    %4006 = vmatprep.subr.mxu0 0.0
    %4007 = vmatpush1.msra.mxu0 0.0
    %4008 = vmatprep.subr.mxu0 0.0
    %4009 = vmatpush1.msra.mxu0 0.0
    %4010 = vmatprep.subr.mxu0 0.0
    %4011 = vmatpush1.msra.mxu0 0.0
    %4012 = vmatprep.subr.mxu0 0.0
    %4013 = vmatpush1.msra.mxu0 0.0
    %4014 = vmatprep.subr.mxu0 0.0
    %4015 = vmatpush1.msra.mxu0 0.0
    %4016 = vmatprep.subr.mxu0 0.0
    %4017 = vmatpush1.msra.mxu0 0.0
    %4018 = vmatprep.subr.mxu0 0.0
    %4019 = vmatpush1.msra.mxu0 0.0
    %4020 = vmatprep.subr.mxu0 0.0
    %4021 = vmatpush1.msra.mxu0 0.0
    %4022 = vmatprep.subr.mxu0 0.0
    %4023 = vmatpush1.msra.mxu0 0.0
    %4024 = vmatprep.subr.mxu0 0.0
    %4025 = vmatpush1.msra.mxu0 %v2867
    %4026 = vmatprep.subr.mxu0 0.0
    %4027 = vmatpush1.msra.mxu0 %v2866
    %4028 = vmatprep.subr.mxu0 0.0
    %4029 = vmatpush2.msra.mxu0 0.0
    %4030 = vmatprep.subr.mxu0 0.0
    %4031 = vmatpush2.msra.mxu0 0.0
    %4032 = vmatprep.subr.mxu0 0.0
    %4033 = vmatpush2.msra.mxu0 0.0
    %4034 = vmatprep.subr.mxu0 0.0
    %4035 = vmatpush2.msra.mxu0 0.0
    %4036 = vmatprep.subr.mxu0 0.0
    %4037 = vmatpush2.msra.mxu0 0.0
    %4038 = vmatprep.subr.mxu0 0.0
    %4039 = vmatpush2.msra.mxu0 0.0
    %4040 = vmatprep.subr.mxu0 0.0
    %4041 = vmatpush2.msra.mxu0 0.0
    %4042 = vmatprep.subr.mxu0 0.0
    %4043 = vmatpush2.msra.mxu0 0.0
    %4044 = vmatprep.subr.mxu0 0.0
    %4045 = vmatpush2.msra.mxu0 0.0
    %4046 = vmatprep.subr.mxu0 0.0
    %4047 = vmatpush2.msra.mxu0 0.0
    %4048 = vmatprep.subr.mxu0 0.0
    %4049 = vmatpush2.msra.mxu0 0.0
    %4050 = vmatprep.subr.mxu0 0.0
    %4051 = vmatpush2.msra.mxu0 0.0
    %4052 = vmatprep.subr.mxu0 0.0
    %4053 = vmatpush2.msra.mxu0 0.0
    %4054 = vmatprep.subr.mxu0 0.0
    %4055 = vmatpush2.msra.mxu0 0.0
    %4056 = vmatprep.subr.mxu0 0.0
    %4057 = vmatpush2.msra.mxu0 0.0
    %4058 = vmatprep.subr.mxu0 0.0
    %4059 = vmatpush2.msra.mxu0 0.0
    %4060 = vmatprep.mubr.f32.mxu0 0.0
    %4061 = vmatmul.mubr.f32.gmra.mxu0 %v3900
    %v4062 = vpop.f32.mrf.mxu0
    %v4063 = vadd.f32 0.0, %v4062
    %v4064 = vpop.f32.mrf.mxu0
    %4065 = vmatprep.mubr.f32.mxu0 0.0
    %4066 = vmatmul.mubr.f32.gmra.mxu0 %v3903
    %v4067 = vpop.f32.mrf.mxu0
    %v4068 = vadd.f32 0.0, %v4067
    %v4069 = vpop.f32.mrf.mxu0
    %4070 = vmatprep.mubr.f32.mxu0 0.0
    %4071 = vmatmul.mubr.f32.gmra.mxu0 %v3906
    %v4072 = vpop.f32.mrf.mxu0
    %v4073 = vadd.f32 0.0, %v4072
    %v4074 = vpop.f32.mrf.mxu0
    %4075 = vmatprep.mubr.f32.mxu0 0.0
    %4076 = vmatmul.mubr.f32.gmra.mxu0 %v3909
    %v4077 = vpop.f32.mrf.mxu0
    %v4078 = vadd.f32 0.0, %v4077
    %v4079 = vpop.f32.mrf.mxu0
    %4080 = vdwg.mxu0
    %4081 = vmatprep.subr.mxu0 0.0
    %4082 = vmatpush1.msra.mxu0 0.0
    %4083 = vmatprep.subr.mxu0 0.0
    %4084 = vmatpush1.msra.mxu0 0.0
    %4085 = vmatprep.subr.mxu0 0.0
    %4086 = vmatpush1.msra.mxu0 0.0
    %4087 = vmatprep.subr.mxu0 0.0
    %4088 = vmatpush1.msra.mxu0 0.0
    %4089 = vmatprep.subr.mxu0 0.0
    %4090 = vmatpush1.msra.mxu0 0.0
    %4091 = vmatprep.subr.mxu0 0.0
    %4092 = vmatpush1.msra.mxu0 0.0
    %4093 = vmatprep.subr.mxu0 0.0
    %4094 = vmatpush1.msra.mxu0 0.0
    %4095 = vmatprep.subr.mxu0 0.0
    %4096 = vmatpush1.msra.mxu0 0.0
    %4097 = vmatprep.subr.mxu0 0.0
    %4098 = vmatpush1.msra.mxu0 0.0
    %4099 = vmatprep.subr.mxu0 0.0
    %4100 = vmatpush1.msra.mxu0 0.0
    %4101 = vmatprep.subr.mxu0 0.0
    %4102 = vmatpush1.msra.mxu0 0.0
    %4103 = vmatprep.subr.mxu0 0.0
    %4104 = vmatpush1.msra.mxu0 0.0
    %4105 = vmatprep.subr.mxu0 0.0
    %4106 = vmatpush1.msra.mxu0 0.0
    %4107 = vmatprep.subr.mxu0 0.0
    %4108 = vmatpush1.msra.mxu0 0.0
    %4109 = vmatprep.subr.mxu0 0.0
    %4110 = vmatpush1.msra.mxu0 %v2870
    %4111 = vmatprep.subr.mxu0 0.0
    %4112 = vmatpush1.msra.mxu0 %v2869
    %4113 = vmatprep.subr.mxu0 0.0
    %4114 = vmatpush2.msra.mxu0 0.0
    %4115 = vmatprep.subr.mxu0 0.0
    %4116 = vmatpush2.msra.mxu0 0.0
    %4117 = vmatprep.subr.mxu0 0.0
    %4118 = vmatpush2.msra.mxu0 0.0
    %4119 = vmatprep.subr.mxu0 0.0
    %4120 = vmatpush2.msra.mxu0 0.0
    %4121 = vmatprep.subr.mxu0 0.0
    %4122 = vmatpush2.msra.mxu0 0.0
    %4123 = vmatprep.subr.mxu0 0.0
    %4124 = vmatpush2.msra.mxu0 0.0
    %4125 = vmatprep.subr.mxu0 0.0
    %4126 = vmatpush2.msra.mxu0 0.0
    %4127 = vmatprep.subr.mxu0 0.0
    %4128 = vmatpush2.msra.mxu0 0.0
    %4129 = vmatprep.subr.mxu0 0.0
    %4130 = vmatpush2.msra.mxu0 0.0
    %4131 = vmatprep.subr.mxu0 0.0
    %4132 = vmatpush2.msra.mxu0 0.0
    %4133 = vmatprep.subr.mxu0 0.0
    %4134 = vmatpush2.msra.mxu0 0.0
    %4135 = vmatprep.subr.mxu0 0.0
    %4136 = vmatpush2.msra.mxu0 0.0
    %4137 = vmatprep.subr.mxu0 0.0
    %4138 = vmatpush2.msra.mxu0 0.0
    %4139 = vmatprep.subr.mxu0 0.0
    %4140 = vmatpush2.msra.mxu0 0.0
    %4141 = vmatprep.subr.mxu0 0.0
    %4142 = vmatpush2.msra.mxu0 0.0
    %4143 = vmatprep.subr.mxu0 0.0
    %4144 = vmatpush2.msra.mxu0 0.0
    %4145 = vmatprep.mubr.f32.mxu0 0.0
    %4146 = vmatmul.mubr.f32.gmra.mxu0 %v3900
    %v4147 = vpop.f32.mrf.mxu0
    %v4148 = vadd.f32 0.0, %v4147
    %v4149 = vpop.f32.mrf.mxu0
    %4150 = vmatprep.mubr.f32.mxu0 0.0
    %4151 = vmatmul.mubr.f32.gmra.mxu0 %v3903
    %v4152 = vpop.f32.mrf.mxu0
    %v4153 = vadd.f32 0.0, %v4152
    %v4154 = vpop.f32.mrf.mxu0
    %4155 = vmatprep.mubr.f32.mxu0 0.0
    %4156 = vmatmul.mubr.f32.gmra.mxu0 %v3906
    %v4157 = vpop.f32.mrf.mxu0
    %v4158 = vadd.f32 0.0, %v4157
    %v4159 = vpop.f32.mrf.mxu0
    %4160 = vmatprep.mubr.f32.mxu0 0.0
    %4161 = vmatmul.mubr.f32.gmra.mxu0 %v3909
    %v4162 = vpop.f32.mrf.mxu0
    %v4163 = vadd.f32 0.0, %v4162
    %v4164 = vpop.f32.mrf.mxu0
    %4165 = vdwg.mxu0
    %v4166 = vmul.f32 %v2729, %v3881
    %v4167 = vmul.f32 %v2730, %v3886
    %v4168 = vmul.f32 %v2731, %v3891
    %v4169 = vmul.f32 %v2732, %v3896
    %v4170 = vmul.f32 %v2773, %v3978
    %v4171 = vmul.f32 %v2774, %v3983
    %v4172 = vmul.f32 %v2775, %v3988
    %v4173 = vmul.f32 %v2776, %v3993
    %v4174 = vadd.f32 %v4166, %v4170
    %v4175 = vadd.f32 %v4167, %v4171
    %v4176 = vadd.f32 %v4168, %v4172
    %v4177 = vadd.f32 %v4169, %v4173
    %v4178 = vmul.f32 %v2817, %v4063
    %v4179 = vmul.f32 %v2818, %v4068
    %v4180 = vmul.f32 %v2819, %v4073
    %v4181 = vmul.f32 %v2820, %v4078
    %v4182 = vadd.f32 %v4174, %v4178
    %v4183 = vadd.f32 %v4175, %v4179
    %v4184 = vadd.f32 %v4176, %v4180
    %v4185 = vadd.f32 %v4177, %v4181
    %v4186 = vmul.f32 %v2861, %v4148
    %v4187 = vmul.f32 %v2862, %v4153
    %v4188 = vmul.f32 %v2863, %v4158
    %v4189 = vmul.f32 %v2864, %v4163
    %v4190 = vadd.f32 %v4182, %v4186
    %v4191 = vadd.f32 %v4183, %v4187
    %v4192 = vadd.f32 %v4184, %v4188
    %v4193 = vadd.f32 %v4185, %v4189
    %v4195 = vsel %vm2923, %v4190, 0
    %v4198 = vsel %vm2923, %v4191, 0
    %v4201 = vsel %vm2923, %v4192, 0
    %v4204 = vsel %vm2923, %v4193, 0
    %4206 = vmatprep.subr.mxu0 0.0
    %4207 = vmatpush1.msra.mxu0 0.0
    %4208 = vmatprep.subr.mxu0 0.0
    %4209 = vmatpush1.msra.mxu0 0.0
    %4210 = vmatprep.subr.mxu0 0.0
    %4211 = vmatpush1.msra.mxu0 0.0
    %4212 = vmatprep.subr.mxu0 0.0
    %4213 = vmatpush1.msra.mxu0 0.0
    %4214 = vmatprep.subr.mxu0 0.0
    %4215 = vmatpush1.msra.mxu0 0.0
    %4216 = vmatprep.subr.mxu0 0.0
    %4217 = vmatpush1.msra.mxu0 0.0
    %4218 = vmatprep.subr.mxu0 0.0
    %4219 = vmatpush1.msra.mxu0 0.0
    %4220 = vmatprep.subr.mxu0 0.0
    %4221 = vmatpush1.msra.mxu0 0.0
    %4222 = vmatprep.subr.mxu0 0.0
    %4223 = vmatpush1.msra.mxu0 0.0
    %4224 = vmatprep.subr.mxu0 0.0
    %4225 = vmatpush1.msra.mxu0 0.0
    %4226 = vmatprep.subr.mxu0 0.0
    %4227 = vmatpush1.msra.mxu0 0.0
    %4228 = vmatprep.subr.mxu0 0.0
    %4229 = vmatpush1.msra.mxu0 0.0
    %4230 = vmatprep.subr.mxu0 0.0
    %4231 = vmatpush1.msra.mxu0 0.0
    %4232 = vmatprep.subr.mxu0 0.0
    %4233 = vmatpush1.msra.mxu0 0.0
    %4234 = vmatprep.subr.mxu0 0.0
    %4235 = vmatpush1.msra.mxu0 %v2686
    %4236 = vmatprep.subr.mxu0 0.0
    %4237 = vmatpush1.msra.mxu0 %v2685
    %4238 = vmatprep.subr.mxu0 0.0
    %4239 = vmatpush2.msra.mxu0 0.0
    %4240 = vmatprep.subr.mxu0 0.0
    %4241 = vmatpush2.msra.mxu0 0.0
    %4242 = vmatprep.subr.mxu0 0.0
    %4243 = vmatpush2.msra.mxu0 0.0
    %4244 = vmatprep.subr.mxu0 0.0
    %4245 = vmatpush2.msra.mxu0 0.0
    %4246 = vmatprep.subr.mxu0 0.0
    %4247 = vmatpush2.msra.mxu0 0.0
    %4248 = vmatprep.subr.mxu0 0.0
    %4249 = vmatpush2.msra.mxu0 0.0
    %4250 = vmatprep.subr.mxu0 0.0
    %4251 = vmatpush2.msra.mxu0 0.0
    %4252 = vmatprep.subr.mxu0 0.0
    %4253 = vmatpush2.msra.mxu0 0.0
    %4254 = vmatprep.subr.mxu0 0.0
    %4255 = vmatpush2.msra.mxu0 0.0
    %4256 = vmatprep.subr.mxu0 0.0
    %4257 = vmatpush2.msra.mxu0 0.0
    %4258 = vmatprep.subr.mxu0 0.0
    %4259 = vmatpush2.msra.mxu0 0.0
    %4260 = vmatprep.subr.mxu0 0.0
    %4261 = vmatpush2.msra.mxu0 0.0
    %4262 = vmatprep.subr.mxu0 0.0
    %4263 = vmatpush2.msra.mxu0 0.0
    %4264 = vmatprep.subr.mxu0 0.0
    %4265 = vmatpush2.msra.mxu0 0.0
    %4266 = vmatprep.subr.mxu0 0.0
    %4267 = vmatpush2.msra.mxu0 0.0
    %4268 = vmatprep.subr.mxu0 0.0
    %4269 = vmatpush2.msra.mxu0 0.0
    %4270 = vmatprep.mubr.f32.mxu0 0.0
    %4271 = vmatmul.mubr.f32.gmra.mxu0 %v4195
    %v4272 = vpop.f32.mrf.mxu0
    %v4273 = vadd.f32 0.0, %v4272
    %v4274 = vpop.f32.mrf.mxu0
    %4275 = vmatprep.mubr.f32.mxu0 0.0
    %4276 = vmatmul.mubr.f32.gmra.mxu0 %v4198
    %v4277 = vpop.f32.mrf.mxu0
    %v4278 = vadd.f32 0.0, %v4277
    %v4279 = vpop.f32.mrf.mxu0
    %4280 = vmatprep.mubr.f32.mxu0 0.0
    %4281 = vmatmul.mubr.f32.gmra.mxu0 %v4201
    %v4282 = vpop.f32.mrf.mxu0
    %v4283 = vadd.f32 0.0, %v4282
    %v4284 = vpop.f32.mrf.mxu0
    %4285 = vmatprep.mubr.f32.mxu0 0.0
    %4286 = vmatmul.mubr.f32.gmra.mxu0 %v4204
    %v4287 = vpop.f32.mrf.mxu0
    %v4288 = vadd.f32 0.0, %v4287
    %v4289 = vpop.f32.mrf.mxu0
    %4290 = vdwg.mxu0
    %4291 = vmatprep.subr.mxu0 0.0
    %4292 = vmatpush1.msra.mxu0 0.0
    %4293 = vmatprep.subr.mxu0 0.0
    %4294 = vmatpush1.msra.mxu0 0.0
    %4295 = vmatprep.subr.mxu0 0.0
    %4296 = vmatpush1.msra.mxu0 0.0
    %4297 = vmatprep.subr.mxu0 0.0
    %4298 = vmatpush1.msra.mxu0 0.0
    %4299 = vmatprep.subr.mxu0 0.0
    %4300 = vmatpush1.msra.mxu0 0.0
    %4301 = vmatprep.subr.mxu0 0.0
    %4302 = vmatpush1.msra.mxu0 0.0
    %4303 = vmatprep.subr.mxu0 0.0
    %4304 = vmatpush1.msra.mxu0 0.0
    %4305 = vmatprep.subr.mxu0 0.0
    %4306 = vmatpush1.msra.mxu0 0.0
    %4307 = vmatprep.subr.mxu0 0.0
    %4308 = vmatpush1.msra.mxu0 0.0
    %4309 = vmatprep.subr.mxu0 0.0
    %4310 = vmatpush1.msra.mxu0 0.0
    %4311 = vmatprep.subr.mxu0 0.0
    %4312 = vmatpush1.msra.mxu0 0.0
    %4313 = vmatprep.subr.mxu0 0.0
    %4314 = vmatpush1.msra.mxu0 0.0
    %4315 = vmatprep.subr.mxu0 0.0
    %4316 = vmatpush1.msra.mxu0 0.0
    %4317 = vmatprep.subr.mxu0 0.0
    %4318 = vmatpush1.msra.mxu0 0.0
    %4319 = vmatprep.subr.mxu0 0.0
    %4320 = vmatpush1.msra.mxu0 %v2891
    %4321 = vmatprep.subr.mxu0 0.0
    %4322 = vmatpush1.msra.mxu0 %v2890
    %4323 = vmatprep.subr.mxu0 0.0
    %4324 = vmatpush2.msra.mxu0 0.0
    %4325 = vmatprep.subr.mxu0 0.0
    %4326 = vmatpush2.msra.mxu0 0.0
    %4327 = vmatprep.subr.mxu0 0.0
    %4328 = vmatpush2.msra.mxu0 0.0
    %4329 = vmatprep.subr.mxu0 0.0
    %4330 = vmatpush2.msra.mxu0 0.0
    %4331 = vmatprep.subr.mxu0 0.0
    %4332 = vmatpush2.msra.mxu0 0.0
    %4333 = vmatprep.subr.mxu0 0.0
    %4334 = vmatpush2.msra.mxu0 0.0
    %4335 = vmatprep.subr.mxu0 0.0
    %4336 = vmatpush2.msra.mxu0 0.0
    %4337 = vmatprep.subr.mxu0 0.0
    %4338 = vmatpush2.msra.mxu0 0.0
    %4339 = vmatprep.subr.mxu0 0.0
    %4340 = vmatpush2.msra.mxu0 0.0
    %4341 = vmatprep.subr.mxu0 0.0
    %4342 = vmatpush2.msra.mxu0 0.0
    %4343 = vmatprep.subr.mxu0 0.0
    %4344 = vmatpush2.msra.mxu0 0.0
    %4345 = vmatprep.subr.mxu0 0.0
    %4346 = vmatpush2.msra.mxu0 0.0
    %4347 = vmatprep.subr.mxu0 0.0
    %4348 = vmatpush2.msra.mxu0 0.0
    %4349 = vmatprep.subr.mxu0 0.0
    %4350 = vmatpush2.msra.mxu0 0.0
    %4351 = vmatprep.subr.mxu0 0.0
    %4352 = vmatpush2.msra.mxu0 0.0
    %4353 = vmatprep.subr.mxu0 0.0
    %4354 = vmatpush2.msra.mxu0 0.0
    %4355 = vmatprep.mubr.f32.mxu0 0.0
    %4356 = vmatmul.mubr.f32.gmra.mxu0 %v4195
    %v4357 = vpop.f32.mrf.mxu0
    %v4358 = vadd.f32 0.0, %v4357
    %v4359 = vpop.f32.mrf.mxu0
    %4360 = vmatprep.mubr.f32.mxu0 0.0
    %4361 = vmatmul.mubr.f32.gmra.mxu0 %v4198
    %v4362 = vpop.f32.mrf.mxu0
    %v4363 = vadd.f32 0.0, %v4362
    %v4364 = vpop.f32.mrf.mxu0
    %4365 = vmatprep.mubr.f32.mxu0 0.0
    %4366 = vmatmul.mubr.f32.gmra.mxu0 %v4201
    %v4367 = vpop.f32.mrf.mxu0
    %v4368 = vadd.f32 0.0, %v4367
    %v4369 = vpop.f32.mrf.mxu0
    %4370 = vmatprep.mubr.f32.mxu0 0.0
    %4371 = vmatmul.mubr.f32.gmra.mxu0 %v4204
    %v4372 = vpop.f32.mrf.mxu0
    %v4373 = vadd.f32 0.0, %v4372
    %v4374 = vpop.f32.mrf.mxu0
    %4375 = vdwg.mxu0
    %4376 = vmatprep.subr.mxu0 0.0
    %4377 = vmatpush1.msra.mxu0 0.0
    %4378 = vmatprep.subr.mxu0 0.0
    %4379 = vmatpush1.msra.mxu0 0.0
    %4380 = vmatprep.subr.mxu0 0.0
    %4381 = vmatpush1.msra.mxu0 0.0
    %4382 = vmatprep.subr.mxu0 0.0
    %4383 = vmatpush1.msra.mxu0 0.0
    %4384 = vmatprep.subr.mxu0 0.0
    %4385 = vmatpush1.msra.mxu0 0.0
    %4386 = vmatprep.subr.mxu0 0.0
    %4387 = vmatpush1.msra.mxu0 0.0
    %4388 = vmatprep.subr.mxu0 0.0
    %4389 = vmatpush1.msra.mxu0 0.0
    %4390 = vmatprep.subr.mxu0 0.0
    %4391 = vmatpush1.msra.mxu0 0.0
    %4392 = vmatprep.subr.mxu0 0.0
    %4393 = vmatpush1.msra.mxu0 0.0
    %4394 = vmatprep.subr.mxu0 0.0
    %4395 = vmatpush1.msra.mxu0 0.0
    %4396 = vmatprep.subr.mxu0 0.0
    %4397 = vmatpush1.msra.mxu0 0.0
    %4398 = vmatprep.subr.mxu0 0.0
    %4399 = vmatpush1.msra.mxu0 0.0
    %4400 = vmatprep.subr.mxu0 0.0
    %4401 = vmatpush1.msra.mxu0 0.0
    %4402 = vmatprep.subr.mxu0 0.0
    %4403 = vmatpush1.msra.mxu0 0.0
    %4404 = vmatprep.subr.mxu0 0.0
    %4405 = vmatpush1.msra.mxu0 %v2894
    %4406 = vmatprep.subr.mxu0 0.0
    %4407 = vmatpush1.msra.mxu0 %v2893
    %4408 = vmatprep.subr.mxu0 0.0
    %4409 = vmatpush2.msra.mxu0 0.0
    %4410 = vmatprep.subr.mxu0 0.0
    %4411 = vmatpush2.msra.mxu0 0.0
    %4412 = vmatprep.subr.mxu0 0.0
    %4413 = vmatpush2.msra.mxu0 0.0
    %4414 = vmatprep.subr.mxu0 0.0
    %4415 = vmatpush2.msra.mxu0 0.0
    %4416 = vmatprep.subr.mxu0 0.0
    %4417 = vmatpush2.msra.mxu0 0.0
    %4418 = vmatprep.subr.mxu0 0.0
    %4419 = vmatpush2.msra.mxu0 0.0
    %4420 = vmatprep.subr.mxu0 0.0
    %4421 = vmatpush2.msra.mxu0 0.0
    %4422 = vmatprep.subr.mxu0 0.0
    %4423 = vmatpush2.msra.mxu0 0.0
    %4424 = vmatprep.subr.mxu0 0.0
    %4425 = vmatpush2.msra.mxu0 0.0
    %4426 = vmatprep.subr.mxu0 0.0
    %4427 = vmatpush2.msra.mxu0 0.0
    %4428 = vmatprep.subr.mxu0 0.0
    %4429 = vmatpush2.msra.mxu0 0.0
    %4430 = vmatprep.subr.mxu0 0.0
    %4431 = vmatpush2.msra.mxu0 0.0
    %4432 = vmatprep.subr.mxu0 0.0
    %4433 = vmatpush2.msra.mxu0 0.0
    %4434 = vmatprep.subr.mxu0 0.0
    %4435 = vmatpush2.msra.mxu0 0.0
    %4436 = vmatprep.subr.mxu0 0.0
    %4437 = vmatpush2.msra.mxu0 0.0
    %4438 = vmatprep.subr.mxu0 0.0
    %4439 = vmatpush2.msra.mxu0 0.0
    %4440 = vmatprep.mubr.f32.mxu0 0.0
    %4441 = vmatmul.mubr.f32.gmra.mxu0 %v4195
    %v4442 = vpop.f32.mrf.mxu0
    %v4443 = vadd.f32 0.0, %v4442
    %v4444 = vpop.f32.mrf.mxu0
    %4445 = vmatprep.mubr.f32.mxu0 0.0
    %4446 = vmatmul.mubr.f32.gmra.mxu0 %v4198
    %v4447 = vpop.f32.mrf.mxu0
    %v4448 = vadd.f32 0.0, %v4447
    %v4449 = vpop.f32.mrf.mxu0
    %4450 = vmatprep.mubr.f32.mxu0 0.0
    %4451 = vmatmul.mubr.f32.gmra.mxu0 %v4201
    %v4452 = vpop.f32.mrf.mxu0
    %v4453 = vadd.f32 0.0, %v4452
    %v4454 = vpop.f32.mrf.mxu0
    %4455 = vmatprep.mubr.f32.mxu0 0.0
    %4456 = vmatmul.mubr.f32.gmra.mxu0 %v4204
    %v4457 = vpop.f32.mrf.mxu0
    %v4458 = vadd.f32 0.0, %v4457
    %v4459 = vpop.f32.mrf.mxu0
    %4460 = vdwg.mxu0
    %v4461 = vmul.f32 %v2873, %v4190
    %v4462 = vmul.f32 %v2874, %v4191
    %v4463 = vmul.f32 %v2875, %v4192
    %v4464 = vmul.f32 %v2876, %v4193
    %v4465 = vmul.f32 %v2877, %v4273
    %v4466 = vmul.f32 %v2878, %v4278
    %v4467 = vmul.f32 %v2879, %v4283
    %v4468 = vmul.f32 %v2880, %v4288
    %v4469 = vadd.f32 %v4461, %v4465
    %v4470 = vadd.f32 %v4462, %v4466
    %v4471 = vadd.f32 %v4463, %v4467
    %v4472 = vadd.f32 %v4464, %v4468
    %v4473 = vmul.f32 %v2881, %v4358
    %v4474 = vmul.f32 %v2882, %v4363
    %v4475 = vmul.f32 %v2883, %v4368
    %v4476 = vmul.f32 %v2884, %v4373
    %v4477 = vadd.f32 %v4469, %v4473
    %v4478 = vadd.f32 %v4470, %v4474
    %v4479 = vadd.f32 %v4471, %v4475
    %v4480 = vadd.f32 %v4472, %v4476
    %v4481 = vmul.f32 %v2885, %v4443
    %v4482 = vmul.f32 %v2886, %v4448
    %v4483 = vmul.f32 %v2887, %v4453
    %v4484 = vmul.f32 %v2888, %v4458
    %v4485 = vadd.f32 %v4477, %v4481
    %v4486 = vadd.f32 %v4478, %v4482
    %v4487 = vadd.f32 %v4479, %v4483
    %v4488 = vadd.f32 %v4480, %v4484
    %v4490 = vsel %vm2923, %v4485, 0
    %v4493 = vsel %vm2923, %v4486, 0
    %v4496 = vsel %vm2923, %v4487, 0
    %v4499 = vsel %vm2923, %v4488, 0
    %4501 = vmatprep.subr.mxu0 0.0
    %4502 = vmatpush1.msra.mxu0 0.0
    %4503 = vmatprep.subr.mxu0 0.0
    %4504 = vmatpush1.msra.mxu0 0.0
    %4505 = vmatprep.subr.mxu0 0.0
    %4506 = vmatpush1.msra.mxu0 0.0
    %4507 = vmatprep.subr.mxu0 0.0
    %4508 = vmatpush1.msra.mxu0 0.0
    %4509 = vmatprep.subr.mxu0 0.0
    %4510 = vmatpush1.msra.mxu0 0.0
    %4511 = vmatprep.subr.mxu0 0.0
    %4512 = vmatpush1.msra.mxu0 0.0
    %4513 = vmatprep.subr.mxu0 0.0
    %4514 = vmatpush1.msra.mxu0 0.0
    %4515 = vmatprep.subr.mxu0 0.0
    %4516 = vmatpush1.msra.mxu0 0.0
    %4517 = vmatprep.subr.mxu0 0.0
    %4518 = vmatpush1.msra.mxu0 0.0
    %4519 = vmatprep.subr.mxu0 0.0
    %4520 = vmatpush1.msra.mxu0 0.0
    %4521 = vmatprep.subr.mxu0 0.0
    %4522 = vmatpush1.msra.mxu0 0.0
    %4523 = vmatprep.subr.mxu0 0.0
    %4524 = vmatpush1.msra.mxu0 0.0
    %4525 = vmatprep.subr.mxu0 0.0
    %4526 = vmatpush1.msra.mxu0 0.0
    %4527 = vmatprep.subr.mxu0 0.0
    %4528 = vmatpush1.msra.mxu0 0.0
    %4529 = vmatprep.subr.mxu0 0.0
    %4530 = vmatpush1.msra.mxu0 %v2686
    %4531 = vmatprep.subr.mxu0 0.0
    %4532 = vmatpush1.msra.mxu0 %v2685
    %4533 = vmatprep.subr.mxu0 0.0
    %4534 = vmatpush2.msra.mxu0 0.0
    %4535 = vmatprep.subr.mxu0 0.0
    %4536 = vmatpush2.msra.mxu0 0.0
    %4537 = vmatprep.subr.mxu0 0.0
    %4538 = vmatpush2.msra.mxu0 0.0
    %4539 = vmatprep.subr.mxu0 0.0
    %4540 = vmatpush2.msra.mxu0 0.0
    %4541 = vmatprep.subr.mxu0 0.0
    %4542 = vmatpush2.msra.mxu0 0.0
    %4543 = vmatprep.subr.mxu0 0.0
    %4544 = vmatpush2.msra.mxu0 0.0
    %4545 = vmatprep.subr.mxu0 0.0
    %4546 = vmatpush2.msra.mxu0 0.0
    %4547 = vmatprep.subr.mxu0 0.0
    %4548 = vmatpush2.msra.mxu0 0.0
    %4549 = vmatprep.subr.mxu0 0.0
    %4550 = vmatpush2.msra.mxu0 0.0
    %4551 = vmatprep.subr.mxu0 0.0
    %4552 = vmatpush2.msra.mxu0 0.0
    %4553 = vmatprep.subr.mxu0 0.0
    %4554 = vmatpush2.msra.mxu0 0.0
    %4555 = vmatprep.subr.mxu0 0.0
    %4556 = vmatpush2.msra.mxu0 0.0
    %4557 = vmatprep.subr.mxu0 0.0
    %4558 = vmatpush2.msra.mxu0 0.0
    %4559 = vmatprep.subr.mxu0 0.0
    %4560 = vmatpush2.msra.mxu0 0.0
    %4561 = vmatprep.subr.mxu0 0.0
    %4562 = vmatpush2.msra.mxu0 0.0
    %4563 = vmatprep.subr.mxu0 0.0
    %4564 = vmatpush2.msra.mxu0 0.0
    %4565 = vmatprep.mubr.f32.mxu0 0.0
    %4566 = vmatmul.mubr.f32.gmra.mxu0 %v4490
    %v4567 = vpop.f32.mrf.mxu0
    %v4568 = vadd.f32 0.0, %v4567
    %v4569 = vpop.f32.mrf.mxu0
    %4570 = vmatprep.mubr.f32.mxu0 0.0
    %4571 = vmatmul.mubr.f32.gmra.mxu0 %v4493
    %v4572 = vpop.f32.mrf.mxu0
    %v4573 = vadd.f32 0.0, %v4572
    %v4574 = vpop.f32.mrf.mxu0
    %4575 = vmatprep.mubr.f32.mxu0 0.0
    %4576 = vmatmul.mubr.f32.gmra.mxu0 %v4496
    %v4577 = vpop.f32.mrf.mxu0
    %v4578 = vadd.f32 0.0, %v4577
    %v4579 = vpop.f32.mrf.mxu0
    %4580 = vmatprep.mubr.f32.mxu0 0.0
    %4581 = vmatmul.mubr.f32.gmra.mxu0 %v4499
    %v4582 = vpop.f32.mrf.mxu0
    %v4583 = vadd.f32 0.0, %v4582
    %v4584 = vpop.f32.mrf.mxu0
    %4585 = vdwg.mxu0
    %4586 = vmatprep.subr.mxu0 0.0
    %4587 = vmatpush1.msra.mxu0 0.0
    %4588 = vmatprep.subr.mxu0 0.0
    %4589 = vmatpush1.msra.mxu0 0.0
    %4590 = vmatprep.subr.mxu0 0.0
    %4591 = vmatpush1.msra.mxu0 0.0
    %4592 = vmatprep.subr.mxu0 0.0
    %4593 = vmatpush1.msra.mxu0 0.0
    %4594 = vmatprep.subr.mxu0 0.0
    %4595 = vmatpush1.msra.mxu0 0.0
    %4596 = vmatprep.subr.mxu0 0.0
    %4597 = vmatpush1.msra.mxu0 0.0
    %4598 = vmatprep.subr.mxu0 0.0
    %4599 = vmatpush1.msra.mxu0 0.0
    %4600 = vmatprep.subr.mxu0 0.0
    %4601 = vmatpush1.msra.mxu0 0.0
    %4602 = vmatprep.subr.mxu0 0.0
    %4603 = vmatpush1.msra.mxu0 0.0
    %4604 = vmatprep.subr.mxu0 0.0
    %4605 = vmatpush1.msra.mxu0 0.0
    %4606 = vmatprep.subr.mxu0 0.0
    %4607 = vmatpush1.msra.mxu0 0.0
    %4608 = vmatprep.subr.mxu0 0.0
    %4609 = vmatpush1.msra.mxu0 0.0
    %4610 = vmatprep.subr.mxu0 0.0
    %4611 = vmatpush1.msra.mxu0 0.0
    %4612 = vmatprep.subr.mxu0 0.0
    %4613 = vmatpush1.msra.mxu0 0.0
    %4614 = vmatprep.subr.mxu0 0.0
    %4615 = vmatpush1.msra.mxu0 %v2915
    %4616 = vmatprep.subr.mxu0 0.0
    %4617 = vmatpush1.msra.mxu0 %v2914
    %4618 = vmatprep.subr.mxu0 0.0
    %4619 = vmatpush2.msra.mxu0 0.0
    %4620 = vmatprep.subr.mxu0 0.0
    %4621 = vmatpush2.msra.mxu0 0.0
    %4622 = vmatprep.subr.mxu0 0.0
    %4623 = vmatpush2.msra.mxu0 0.0
    %4624 = vmatprep.subr.mxu0 0.0
    %4625 = vmatpush2.msra.mxu0 0.0
    %4626 = vmatprep.subr.mxu0 0.0
    %4627 = vmatpush2.msra.mxu0 0.0
    %4628 = vmatprep.subr.mxu0 0.0
    %4629 = vmatpush2.msra.mxu0 0.0
    %4630 = vmatprep.subr.mxu0 0.0
    %4631 = vmatpush2.msra.mxu0 0.0
    %4632 = vmatprep.subr.mxu0 0.0
    %4633 = vmatpush2.msra.mxu0 0.0
    %4634 = vmatprep.subr.mxu0 0.0
    %4635 = vmatpush2.msra.mxu0 0.0
    %4636 = vmatprep.subr.mxu0 0.0
    %4637 = vmatpush2.msra.mxu0 0.0
    %4638 = vmatprep.subr.mxu0 0.0
    %4639 = vmatpush2.msra.mxu0 0.0
    %4640 = vmatprep.subr.mxu0 0.0
    %4641 = vmatpush2.msra.mxu0 0.0
    %4642 = vmatprep.subr.mxu0 0.0
    %4643 = vmatpush2.msra.mxu0 0.0
    %4644 = vmatprep.subr.mxu0 0.0
    %4645 = vmatpush2.msra.mxu0 0.0
    %4646 = vmatprep.subr.mxu0 0.0
    %4647 = vmatpush2.msra.mxu0 0.0
    %4648 = vmatprep.subr.mxu0 0.0
    %4649 = vmatpush2.msra.mxu0 0.0
    %4650 = vmatprep.mubr.f32.mxu0 0.0
    %4651 = vmatmul.mubr.f32.gmra.mxu0 %v4490
    %v4652 = vpop.f32.mrf.mxu0
    %v4653 = vadd.f32 0.0, %v4652
    %v4654 = vpop.f32.mrf.mxu0
    %4655 = vmatprep.mubr.f32.mxu0 0.0
    %4656 = vmatmul.mubr.f32.gmra.mxu0 %v4493
    %v4657 = vpop.f32.mrf.mxu0
    %v4658 = vadd.f32 0.0, %v4657
    %v4659 = vpop.f32.mrf.mxu0
    %4660 = vmatprep.mubr.f32.mxu0 0.0
    %4661 = vmatmul.mubr.f32.gmra.mxu0 %v4496
    %v4662 = vpop.f32.mrf.mxu0
    %v4663 = vadd.f32 0.0, %v4662
    %v4664 = vpop.f32.mrf.mxu0
    %4665 = vmatprep.mubr.f32.mxu0 0.0
    %4666 = vmatmul.mubr.f32.gmra.mxu0 %v4499
    %v4667 = vpop.f32.mrf.mxu0
    %v4668 = vadd.f32 0.0, %v4667
    %v4669 = vpop.f32.mrf.mxu0
    %4670 = vdwg.mxu0
    %4671 = vmatprep.subr.mxu0 0.0
    %4672 = vmatpush1.msra.mxu0 0.0
    %4673 = vmatprep.subr.mxu0 0.0
    %4674 = vmatpush1.msra.mxu0 0.0
    %4675 = vmatprep.subr.mxu0 0.0
    %4676 = vmatpush1.msra.mxu0 0.0
    %4677 = vmatprep.subr.mxu0 0.0
    %4678 = vmatpush1.msra.mxu0 0.0
    %4679 = vmatprep.subr.mxu0 0.0
    %4680 = vmatpush1.msra.mxu0 0.0
    %4681 = vmatprep.subr.mxu0 0.0
    %4682 = vmatpush1.msra.mxu0 0.0
    %4683 = vmatprep.subr.mxu0 0.0
    %4684 = vmatpush1.msra.mxu0 0.0
    %4685 = vmatprep.subr.mxu0 0.0
    %4686 = vmatpush1.msra.mxu0 0.0
    %4687 = vmatprep.subr.mxu0 0.0
    %4688 = vmatpush1.msra.mxu0 0.0
    %4689 = vmatprep.subr.mxu0 0.0
    %4690 = vmatpush1.msra.mxu0 0.0
    %4691 = vmatprep.subr.mxu0 0.0
    %4692 = vmatpush1.msra.mxu0 0.0
    %4693 = vmatprep.subr.mxu0 0.0
    %4694 = vmatpush1.msra.mxu0 0.0
    %4695 = vmatprep.subr.mxu0 0.0
    %4696 = vmatpush1.msra.mxu0 0.0
    %4697 = vmatprep.subr.mxu0 0.0
    %4698 = vmatpush1.msra.mxu0 0.0
    %4699 = vmatprep.subr.mxu0 0.0
    %4700 = vmatpush1.msra.mxu0 %v2918
    %4701 = vmatprep.subr.mxu0 0.0
    %4702 = vmatpush1.msra.mxu0 %v2917
    %4703 = vmatprep.subr.mxu0 0.0
    %4704 = vmatpush2.msra.mxu0 0.0
    %4705 = vmatprep.subr.mxu0 0.0
    %4706 = vmatpush2.msra.mxu0 0.0
    %4707 = vmatprep.subr.mxu0 0.0
    %4708 = vmatpush2.msra.mxu0 0.0
    %4709 = vmatprep.subr.mxu0 0.0
    %4710 = vmatpush2.msra.mxu0 0.0
    %4711 = vmatprep.subr.mxu0 0.0
    %4712 = vmatpush2.msra.mxu0 0.0
    %4713 = vmatprep.subr.mxu0 0.0
    %4714 = vmatpush2.msra.mxu0 0.0
    %4715 = vmatprep.subr.mxu0 0.0
    %4716 = vmatpush2.msra.mxu0 0.0
    %4717 = vmatprep.subr.mxu0 0.0
    %4718 = vmatpush2.msra.mxu0 0.0
    %4719 = vmatprep.subr.mxu0 0.0
    %4720 = vmatpush2.msra.mxu0 0.0
    %4721 = vmatprep.subr.mxu0 0.0
    %4722 = vmatpush2.msra.mxu0 0.0
    %4723 = vmatprep.subr.mxu0 0.0
    %4724 = vmatpush2.msra.mxu0 0.0
    %4725 = vmatprep.subr.mxu0 0.0
    %4726 = vmatpush2.msra.mxu0 0.0
    %4727 = vmatprep.subr.mxu0 0.0
    %4728 = vmatpush2.msra.mxu0 0.0
    %4729 = vmatprep.subr.mxu0 0.0
    %4730 = vmatpush2.msra.mxu0 0.0
    %4731 = vmatprep.subr.mxu0 0.0
    %4732 = vmatpush2.msra.mxu0 0.0
    %4733 = vmatprep.subr.mxu0 0.0
    %4734 = vmatpush2.msra.mxu0 0.0
    %4735 = vmatprep.mubr.f32.mxu0 0.0
    %4736 = vmatmul.mubr.f32.gmra.mxu0 %v4490
    %v4737 = vpop.f32.mrf.mxu0
    %v4738 = vadd.f32 0.0, %v4737
    %v4739 = vpop.f32.mrf.mxu0
    %4740 = vmatprep.mubr.f32.mxu0 0.0
    %4741 = vmatmul.mubr.f32.gmra.mxu0 %v4493
    %v4742 = vpop.f32.mrf.mxu0
    %v4743 = vadd.f32 0.0, %v4742
    %v4744 = vpop.f32.mrf.mxu0
    %4745 = vmatprep.mubr.f32.mxu0 0.0
    %4746 = vmatmul.mubr.f32.gmra.mxu0 %v4496
    %v4747 = vpop.f32.mrf.mxu0
    %v4748 = vadd.f32 0.0, %v4747
    %v4749 = vpop.f32.mrf.mxu0
    %4750 = vmatprep.mubr.f32.mxu0 0.0
    %4751 = vmatmul.mubr.f32.gmra.mxu0 %v4499
    %v4752 = vpop.f32.mrf.mxu0
    %v4753 = vadd.f32 0.0, %v4752
    %v4754 = vpop.f32.mrf.mxu0
    %4755 = vdwg.mxu0
    %v4756 = vmul.f32 %v2897, %v4485
    %v4757 = vmul.f32 %v2898, %v4486
    %v4758 = vmul.f32 %v2899, %v4487
    %v4759 = vmul.f32 %v2900, %v4488
    %v4760 = vmul.f32 %v2901, %v4568
    %v4761 = vmul.f32 %v2902, %v4573
    %v4762 = vmul.f32 %v2903, %v4578
    %v4763 = vmul.f32 %v2904, %v4583
    %v4764 = vadd.f32 %v4756, %v4760
    %v4765 = vadd.f32 %v4757, %v4761
    %v4766 = vadd.f32 %v4758, %v4762
    %v4767 = vadd.f32 %v4759, %v4763
    %v4768 = vmul.f32 %v2905, %v4653
    %v4769 = vmul.f32 %v2906, %v4658
    %v4770 = vmul.f32 %v2907, %v4663
    %v4771 = vmul.f32 %v2908, %v4668
    %v4772 = vadd.f32 %v4764, %v4768
    %v4773 = vadd.f32 %v4765, %v4769
    %v4774 = vadd.f32 %v4766, %v4770
    %v4775 = vadd.f32 %v4767, %v4771
    %v4776 = vmul.f32 %v2909, %v4738
    %v4777 = vmul.f32 %v2910, %v4743
    %v4778 = vmul.f32 %v2911, %v4748
    %v4779 = vmul.f32 %v2912, %v4753
    %v4780 = vadd.f32 %v4772, %v4776
    %v4781 = vadd.f32 %v4773, %v4777
    %v4782 = vadd.f32 %v4774, %v4778
    %v4783 = vadd.f32 %v4775, %v4779
    %s4784 = scalar_lea.vmem [#allocation2], 128
    %v4785 = vld [vmem:[%s4784] sm:$0xff]
    %v4786 = vld [vmem:[%s4784 + $0x8] sm:$0xff]
    %v4788 = vsel %vm2923, %v4780, 0
    %v4791 = vsel %vm2923, %v4781, 0
    %v4794 = vsel %vm2923, %v4782, 0
    %v4797 = vsel %vm2923, %v4783, 0
    %4799 = vmatprep.subr.mxu0 0.0
    %4800 = vmatpush1.msra.mxu0 0.0
    %4801 = vmatprep.subr.mxu0 0.0
    %4802 = vmatpush1.msra.mxu0 0.0
    %4803 = vmatprep.subr.mxu0 0.0
    %4804 = vmatpush1.msra.mxu0 0.0
    %4805 = vmatprep.subr.mxu0 0.0
    %4806 = vmatpush1.msra.mxu0 0.0
    %4807 = vmatprep.subr.mxu0 0.0
    %4808 = vmatpush1.msra.mxu0 0.0
    %4809 = vmatprep.subr.mxu0 0.0
    %4810 = vmatpush1.msra.mxu0 0.0
    %4811 = vmatprep.subr.mxu0 0.0
    %4812 = vmatpush1.msra.mxu0 0.0
    %4813 = vmatprep.subr.mxu0 0.0
    %4814 = vmatpush1.msra.mxu0 0.0
    %4815 = vmatprep.subr.mxu0 0.0
    %4816 = vmatpush1.msra.mxu0 0.0
    %4817 = vmatprep.subr.mxu0 0.0
    %4818 = vmatpush1.msra.mxu0 0.0
    %4819 = vmatprep.subr.mxu0 0.0
    %4820 = vmatpush1.msra.mxu0 0.0
    %4821 = vmatprep.subr.mxu0 0.0
    %4822 = vmatpush1.msra.mxu0 0.0
    %4823 = vmatprep.subr.mxu0 0.0
    %4824 = vmatpush1.msra.mxu0 0.0
    %4825 = vmatprep.subr.mxu0 0.0
    %4826 = vmatpush1.msra.mxu0 0.0
    %4827 = vmatprep.subr.mxu0 0.0
    %4828 = vmatpush1.msra.mxu0 %v4786
    %4829 = vmatprep.subr.mxu0 0.0
    %4830 = vmatpush1.msra.mxu0 %v4785
    %4831 = vmatprep.subr.mxu0 0.0
    %4832 = vmatpush2.msra.mxu0 0.0
    %4833 = vmatprep.subr.mxu0 0.0
    %4834 = vmatpush2.msra.mxu0 0.0
    %4835 = vmatprep.subr.mxu0 0.0
    %4836 = vmatpush2.msra.mxu0 0.0
    %4837 = vmatprep.subr.mxu0 0.0
    %4838 = vmatpush2.msra.mxu0 0.0
    %4839 = vmatprep.subr.mxu0 0.0
    %4840 = vmatpush2.msra.mxu0 0.0
    %4841 = vmatprep.subr.mxu0 0.0
    %4842 = vmatpush2.msra.mxu0 0.0
    %4843 = vmatprep.subr.mxu0 0.0
    %4844 = vmatpush2.msra.mxu0 0.0
    %4845 = vmatprep.subr.mxu0 0.0
    %4846 = vmatpush2.msra.mxu0 0.0
    %4847 = vmatprep.subr.mxu0 0.0
    %4848 = vmatpush2.msra.mxu0 0.0
    %4849 = vmatprep.subr.mxu0 0.0
    %4850 = vmatpush2.msra.mxu0 0.0
    %4851 = vmatprep.subr.mxu0 0.0
    %4852 = vmatpush2.msra.mxu0 0.0
    %4853 = vmatprep.subr.mxu0 0.0
    %4854 = vmatpush2.msra.mxu0 0.0
    %4855 = vmatprep.subr.mxu0 0.0
    %4856 = vmatpush2.msra.mxu0 0.0
    %4857 = vmatprep.subr.mxu0 0.0
    %4858 = vmatpush2.msra.mxu0 0.0
    %4859 = vmatprep.subr.mxu0 0.0
    %4860 = vmatpush2.msra.mxu0 0.0
    %4861 = vmatprep.subr.mxu0 0.0
    %4862 = vmatpush2.msra.mxu0 0.0
    %4863 = vmatprep.mubr.f32.mxu0 0.0
    %4864 = vmatmul.mubr.f32.gmra.mxu0 %v4788
    %v4865 = vpop.f32.mrf.mxu0
    %v4866 = vadd.f32 0.0, %v4865
    %v4867 = vpop.f32.mrf.mxu0
    %4868 = vmatprep.mubr.f32.mxu0 0.0
    %4869 = vmatmul.mubr.f32.gmra.mxu0 %v4791
    %v4870 = vpop.f32.mrf.mxu0
    %v4871 = vadd.f32 0.0, %v4870
    %v4872 = vpop.f32.mrf.mxu0
    %4873 = vmatprep.mubr.f32.mxu0 0.0
    %4874 = vmatmul.mubr.f32.gmra.mxu0 %v4794
    %v4875 = vpop.f32.mrf.mxu0
    %v4876 = vadd.f32 0.0, %v4875
    %v4877 = vpop.f32.mrf.mxu0
    %4878 = vmatprep.mubr.f32.mxu0 0.0
    %4879 = vmatmul.mubr.f32.gmra.mxu0 %v4797
    %v4880 = vpop.f32.mrf.mxu0
    %v4881 = vadd.f32 0.0, %v4880
    %v4882 = vpop.f32.mrf.mxu0
    %4883 = vdwg.mxu0
    %4884 = vset.pattern.permute.xlu0 3
    %4885 = vperm.xlu0 %4884, %v26
    %v4886 = vpop.permute.xlu0 %4885
    %4888 = vset.pattern.permute.xlu0 3
    %4889 = vperm.xlu0 %4888, %v27
    %v4890 = vpop.permute.xlu0 %4889
    %4892 = vset.pattern.permute.xlu0 3
    %4893 = vperm.xlu0 %4892, %v28
    %v4894 = vpop.permute.xlu0 %4893
    %4896 = vset.pattern.permute.xlu0 3
    %4897 = vperm.xlu0 %4896, %v29
    %v4898 = vpop.permute.xlu0 %4897
    %v4900 = vmul.f32 %v4886, %v4866
    %v4901 = vmul.f32 %v4890, %v4871
    %v4902 = vmul.f32 %v4894, %v4876
    %v4903 = vmul.f32 %v4898, %v4881
    %v4904 = vlaneseq
    %v4905 = vshrl.u32 %v4904, 7
    %v4906 = vmul.u32 %v4905, 4
    %v4907 = vsub.s32 %v2683, %v4906
    %vm4908 = vcmp.ge.s32.totalorder %v4907, 0
    %vm4909 = vcmp.lt.s32.totalorder %v4907, 4
    %vm4910 = vmand %vm4908, %vm4909
    %v4911 = vsel %vm4910, 1, 0
    %v4912 = vcvt.s32.f32 %v4911
    %vm4913 = vcmask 261120
    %v4915 = vsel %vm4913, %v4912, 0
    %4917 = vmatprep.subr.mxu0 0.0
    %4918 = vmatpush1.msra.mxu0 0.0
    %4919 = vmatprep.subr.mxu0 0.0
    %4920 = vmatpush1.msra.mxu0 0.0
    %4921 = vmatprep.subr.mxu0 0.0
    %4922 = vmatpush1.msra.mxu0 0.0
    %4923 = vmatprep.subr.mxu0 0.0
    %4924 = vmatpush1.msra.mxu0 0.0
    %4925 = vmatprep.subr.mxu0 0.0
    %4926 = vmatpush1.msra.mxu0 0.0
    %4927 = vmatprep.subr.mxu0 0.0
    %4928 = vmatpush1.msra.mxu0 0.0
    %4929 = vmatprep.subr.mxu0 0.0
    %4930 = vmatpush1.msra.mxu0 0.0
    %4931 = vmatprep.subr.mxu0 0.0
    %4932 = vmatpush1.msra.mxu0 0.0
    %4933 = vmatprep.subr.mxu0 0.0
    %4934 = vmatpush1.msra.mxu0 0.0
    %4935 = vmatprep.subr.mxu0 0.0
    %4936 = vmatpush1.msra.mxu0 0.0
    %4937 = vmatprep.subr.mxu0 0.0
    %4938 = vmatpush1.msra.mxu0 0.0
    %4939 = vmatprep.subr.mxu0 0.0
    %4940 = vmatpush1.msra.mxu0 0.0
    %4941 = vmatprep.subr.mxu0 0.0
    %4942 = vmatpush1.msra.mxu0 %v4903
    %4943 = vmatprep.subr.mxu0 0.0
    %4944 = vmatpush1.msra.mxu0 %v4902
    %4945 = vmatprep.subr.mxu0 0.0
    %4946 = vmatpush1.msra.mxu0 %v4901
    %4947 = vmatprep.subr.mxu0 0.0
    %4948 = vmatpush1.msra.mxu0 %v4900
    %4949 = vmatprep.subr.mxu0 0.0
    %4950 = vmatpush2.msra.mxu0 0.0
    %4951 = vmatprep.subr.mxu0 0.0
    %4952 = vmatpush2.msra.mxu0 0.0
    %4953 = vmatprep.subr.mxu0 0.0
    %4954 = vmatpush2.msra.mxu0 0.0
    %4955 = vmatprep.subr.mxu0 0.0
    %4956 = vmatpush2.msra.mxu0 0.0
    %4957 = vmatprep.subr.mxu0 0.0
    %4958 = vmatpush2.msra.mxu0 0.0
    %4959 = vmatprep.subr.mxu0 0.0
    %4960 = vmatpush2.msra.mxu0 0.0
    %4961 = vmatprep.subr.mxu0 0.0
    %4962 = vmatpush2.msra.mxu0 0.0
    %4963 = vmatprep.subr.mxu0 0.0
    %4964 = vmatpush2.msra.mxu0 0.0
    %4965 = vmatprep.subr.mxu0 0.0
    %4966 = vmatpush2.msra.mxu0 0.0
    %4967 = vmatprep.subr.mxu0 0.0
    %4968 = vmatpush2.msra.mxu0 0.0
    %4969 = vmatprep.subr.mxu0 0.0
    %4970 = vmatpush2.msra.mxu0 0.0
    %4971 = vmatprep.subr.mxu0 0.0
    %4972 = vmatpush2.msra.mxu0 0.0
    %4973 = vmatprep.subr.mxu0 0.0
    %4974 = vmatpush2.msra.mxu0 0.0
    %4975 = vmatprep.subr.mxu0 0.0
    %4976 = vmatpush2.msra.mxu0 0.0
    %4977 = vmatprep.subr.mxu0 0.0
    %4978 = vmatpush2.msra.mxu0 0.0
    %4979 = vmatprep.subr.mxu0 0.0
    %4980 = vmatpush2.msra.mxu0 0.0
    %4981 = vmatprep.mubr.f32.mxu0 0.0
    %4982 = vmatmul.mubr.f32.gmra.mxu0 %v4915
    %v4983 = vpop.f32.mrf.mxu0
    %v4984 = vadd.f32 0.0, %v4983
    %v4985 = vpop.f32.mrf.mxu0
    %4986 = vdwg.mxu0
    %v4987 = vmul.f32 %v4984, %v4984
    %4988 = vst.msk [vmem:[#allocation5] sm:$0xff] %vm2923, %v4987
    // Predicated region
    $region14: #{tpu_custom_call.1} parent=1 // pred_check
      _
    $region15: #{tpu_custom_call.1} parent=1 // pred_check_branch
      %4990 = sbr.rel (0) target = $region17
    $region16: #{tpu_custom_call.1} parent=1 // pred_region
      %s4992 = ssub.s32 128, 128
      %4993 = vsyncadd [#allocation4], %s4992
      %s4995 = sshll.u32 [#allocation5], 4
      %s4996 = int_to_ptr.vmem [resolvable:$true] %s4995
      %4998 = dma.vmem_to_hbm [thread:$0]  %s4996, 128, %s2, [#allocation4]
    $region17: #{tpu_custom_call.1} parent=1 // pred_fallthru
      _
    // Predicated region
    $region18: #{tpu_custom_call.1} parent=1 // pred_check
      _
    $region19: #{tpu_custom_call.1} parent=1 // pred_check_branch
      %5000 = sbr.rel (0) target = $region21
    $region20: #{tpu_custom_call.1} parent=1 // pred_region
      %5001 = dma.done [#allocation4], 128
    $region21: #{tpu_custom_call.1} parent=1 // pred_fallthru
      _
    %5002 = vsyncpa [#allocation3], 1
    %5003 = vsyncpa [#allocation4], 1

</llo_original>
